<compile_context>
chip_gen: v7x
topology: tpu7x:2x2x1
jax: 0.10.0
libtpu: 0.0.40
codegen_flags: <defaults>
</compile_context>

<pallas_src>
import functools

import jax
import jax.numpy as jnp
from jax.experimental import pallas as pl
from jax.experimental.pallas import tpu as pltpu

_BF16 = jnp.bfloat16


# ----------------------------- in-kernel helpers -----------------------------

def _layernorm(x, gamma, beta, eps=1e-5):
    mu = jnp.mean(x, axis=-1, keepdims=True)
    var = jnp.mean((x - mu) ** 2, axis=-1, keepdims=True)
    return (x - mu) * jax.lax.rsqrt(var + eps) * gamma + beta


def _gelu_exact(x):
    # PyTorch nn.GELU() default = exact erf formulation.
    return 0.5 * x * (1.0 + jax.lax.erf(x * 0.7071067811865476))


# --------------------------- patch-embedding kernel ---------------------------

def make_patch_embed_kernel(B, n, dim):
    def kernel(patches_ref, pre_ref, wpatch_ref, post_ref, pos_ref, emb_ref):
        p = patches_ref[...].astype(jnp.float32)                # (B*n, patch_dim)
        pn = _layernorm(p, pre_ref[0:1, :], pre_ref[1:2, :])    # LN(patch_dim)
        y = jnp.dot(pn.astype(_BF16), wpatch_ref[...],
                    preferred_element_type=jnp.float32)         # Linear(patch_dim, dim)
        y = y + post_ref[0:1, :]                                # + bias
        y = _layernorm(y, post_ref[1:2, :], post_ref[2:3, :])   # LN(dim)
        y = y.reshape(B, n, dim) + pos_ref[...]                 # + pos (broadcast over B)
        emb_ref[...] = y.reshape(B * n, dim)
    return kernel


def patch_embed_call(patches, pre_vecs, w_patch, post_vecs, pos, *, B, n, dim,
                     patch_dim):
    return pl.pallas_call(
        make_patch_embed_kernel(B, n, dim),
        out_shape=jax.ShapeDtypeStruct((B * n, dim), jnp.float32),
        grid=(1,),
        in_specs=[
            pl.BlockSpec((B * n, patch_dim), lambda i: (0, 0)),   # patches (bf16)
            pl.BlockSpec((2, patch_dim), lambda i: (0, 0)),       # [ln_pre_g ; ln_pre_b]
            pl.BlockSpec((patch_dim, dim), lambda i: (0, 0)),     # w_patch (bf16)
            pl.BlockSpec((3, dim), lambda i: (0, 0)),             # [b_patch ; ln_post_g ; ln_post_b]
            pl.BlockSpec((n, dim), lambda i: (0, 0)),             # pos (n, dim), not B-tiled
        ],
        out_specs=pl.BlockSpec((B * n, dim), lambda i: (0, 0)),
        compiler_params=pltpu.CompilerParams(
            dimension_semantics=("arbitrary",)),
    )(patches, pre_vecs, w_patch, post_vecs, pos)


# ----------------------------- transformer kernel ------------------------------

def make_transformer_kernel(bt, n, dim, heads, dim_head, mlp_dim):
    rows = bt * n
    inner = heads * dim_head
    scale = dim_head ** (-0.5)

    def kernel(emb_hbm, lvec_ref, b1_ref, wqkv_ref, wo_ref, w1_ref, w2_ref,
               o_ref, dma_sem):
        t = pl.program_id(0)
        layer = pl.program_id(1)

        # Layer 0: pull this tile's embeddings straight from HBM into the
        # resident output block; no embedding input block stays in VMEM across
        # the depth loop.
        @pl.when(layer == 0)
        def _():
            cp = pltpu.make_async_copy(emb_hbm.at[t], o_ref, dma_sem.at[0])
            cp.start()
            cp.wait()

        x = o_ref[...]                                           # (rows, dim) f32

        attn_g = lvec_ref[0, 0:1, :]
        attn_b = lvec_ref[0, 1:2, :]
        attn_out_b = lvec_ref[0, 2:3, :]
        ff_g = lvec_ref[0, 3:4, :]
        ff_b = lvec_ref[0, 4:5, :]
        ff_out_b = lvec_ref[0, 5:6, :]

        # ---- PreNorm + multi-head self-attention ---------------------------
        xn = _layernorm(x, attn_g, attn_b).astype(_BF16)         # (rows, dim)

        # Per-(q/k/v, head) projections: weights pre-split per head at pack
        # time -> leading-dim ref indexing only, full K=dim contraction, and no
        # lane slicing of the qkv activations.
        def head_proj(kind, h):
            w = wqkv_ref[0, kind * heads + h]                    # (dim, dh) bf16
            y = jnp.dot(xn, w, preferred_element_type=jnp.float32)
            return y.reshape(bt, n, dim_head)

        # Merge (heads, images-in-tile) into one leading batch axis so the
        # scores / AV contractions are a single pair of batched 3-D einsums
        # (the single-leading-batch-dim form Mosaic's dot_general supports).
        q = jnp.concatenate([head_proj(0, h) for h in range(heads)], axis=0)
        k = jnp.concatenate([head_proj(1, h) for h in range(heads)], axis=0)
        v = jnp.concatenate([head_proj(2, h) for h in range(heads)], axis=0)
        q = (q * scale).astype(_BF16)                            # fold scale into q
        k = k.astype(_BF16)
        v = v.astype(_BF16)

        dots = jnp.einsum('znd,zmd->znm', q, k,
                          preferred_element_type=jnp.float32)    # (heads*bt, n, n)
        m = jnp.max(dots, axis=-1, keepdims=True)
        e = jnp.exp(dots - m)                                    # f32 softmax
        attn = e * pl.reciprocal(jnp.sum(e, axis=-1, keepdims=True), approx=True)
        o = jnp.einsum('znm,zmd->znd', attn.astype(_BF16), v,
                       preferred_element_type=jnp.float32)       # (heads*bt, n, dh)

        # Re-assemble token-major (rows, inner) once (leading-dim slices + one
        # lane concat) and do the output projection as a single K=inner matmul.
        o_cat = jnp.concatenate(
            [o[h * bt:(h + 1) * bt].reshape(rows, dim_head) for h in range(heads)],
            axis=-1)                                             # (rows, inner)
        proj = jnp.dot(o_cat.astype(_BF16), wo_ref[0],
                       preferred_element_type=jnp.float32)       # (rows, dim)
        x = x + proj + attn_out_b                                # residual + out bias

        # ---- PreNorm + FeedForward ------------------------------------------
        xn2 = _layernorm(x, ff_g, ff_b).astype(_BF16)
        h1 = jnp.dot(xn2, w1_ref[0],
                     preferred_element_type=jnp.float32) + b1_ref[0]
        h1 = _gelu_exact(h1)
        ff = jnp.dot(h1.astype(_BF16), w2_ref[0],
                     preferred_element_type=jnp.float32) + ff_out_b
        o_ref[...] = x + ff                                      # residual

    return kernel


def transformer_call(emb, packed, *, T, bt, n, dim, heads, dim_head, mlp_dim,
                     depth):
    rows = bt * n
    inner = heads * dim_head
    BN = T * rows
    B_total = T * bt

    # Advisory cost estimate (helps XLA overlap the wrapper-side rearranges).
    matmul_flops = depth * (
        2 * BN * dim * (3 * inner)                      # q/k/v projections
        + 2 * B_total * heads * n * n * dim_head * 2    # scores + AV
        + 2 * BN * inner * dim                          # output projection
        + 2 * BN * dim * mlp_dim * 2)                   # FFN
    transcendentals = depth * (B_total * heads * n * n + BN * mlp_dim)
    weight_bytes = depth * 2 * (dim * 3 * inner + inner * dim + 2 * dim * mlp_dim)
    vec_bytes = depth * 4 * (6 * dim + mlp_dim)
    bytes_accessed = 2 * BN * dim * 4 + weight_bytes + vec_bytes
    cost = pl.CostEstimate(flops=int(matmul_flops),
                           transcendentals=int(transcendentals),
                           bytes_accessed=int(bytes_accessed))

    # VMEM budget: double-buffered per-layer weights + resident activations +
    # in-flight working set, with headroom; clamp to a safe range.
    per_layer_w = 2 * (dim * 3 * inner + inner * dim + 2 * dim * mlp_dim)  # bf16
    per_layer_v = 4 * (6 * dim + mlp_dim)
    working = rows * (3 * inner + mlp_dim) * 4 + heads * bt * n * n * 4
    est = 2 * (per_layer_w + per_layer_v) + 2 * rows * dim * 4 + working
    vmem_limit = int(min(max(4 * est, 32 * 1024 * 1024), 96 * 1024 * 1024))

    def per_layer3(shape):
        return pl.BlockSpec(shape, lambda t, l: (l, 0, 0))

    def per_layer4(shape):
        return pl.BlockSpec(shape, lambda t, l: (l, 0, 0, 0))

    return pl.pallas_call(
        make_transformer_kernel(bt, n, dim, heads, dim_head, mlp_dim),
        out_shape=jax.ShapeDtypeStruct((BN, dim), jnp.float32),
        grid=(T, depth),
        in_specs=[
            pl.BlockSpec(memory_space=pl.ANY),           # emb (T, rows, dim), raw HBM
            per_layer3((1, 6, dim)),                     # [ga ba bo gf bf b2] per layer
            per_layer3((1, 1, mlp_dim)),                 # b1 per layer
            per_layer4((1, 3 * heads, dim, dim_head)),   # per-(kind,head) qkv weights (bf16)
            per_layer3((1, inner, dim)),                 # wo per layer (bf16)
            per_layer3((1, dim, mlp_dim)),               # w1 per layer (bf16)
            per_layer3((1, mlp_dim, dim)),               # w2 per layer (bf16)
        ],
        out_specs=pl.BlockSpec((rows, dim), lambda t, l: (t, 0)),
        scratch_shapes=[pltpu.SemaphoreType.DMA((1,))],
        compiler_params=pltpu.CompilerParams(
            dimension_semantics=("parallel", "arbitrary"),
            vmem_limit_bytes=vmem_limit),
        cost_estimate=cost,
    )(emb.reshape(T, rows, dim),
      packed['layer_vecs'], packed['b1'],
      packed['wqkv'], packed['wo'], packed['w1'], packed['w2'])


# --------------------------------- packing ------------------------------------

def posemb_sincos_2d(h, w, dim, temperature=10000.0, dtype=jnp.float32):
    assert dim % 4 == 0, 'feature dimension must be multiple of 4 for sincos emb'
    y, x = jnp.meshgrid(jnp.arange(h, dtype=jnp.float32),
                        jnp.arange(w, dtype=jnp.float32), indexing='ij')
    omega = jnp.arange(dim // 4, dtype=jnp.float32) / float(dim // 4 - 1)
    omega = 1.0 / (temperature ** omega)
    yv = y.flatten()[:, None] * omega[None, :]
    xv = x.flatten()[:, None] * omega[None, :]
    pe = jnp.concatenate([jnp.sin(xv), jnp.cos(xv), jnp.sin(yv), jnp.cos(yv)],
                         axis=1)
    return pe.astype(dtype)


def pack_params(params, *, heads, dim_head):
    f32 = jnp.float32
    layers = params['layers']

    def split_heads_qkv(w):
        # (dim, 3*inner) columns ordered (kind, head, dh) -> (3*heads, dim, dh)
        d = w.shape[0]
        w = w.reshape(d, 3, heads, dim_head)
        w = jnp.transpose(w, (1, 2, 0, 3))
        return w.reshape(3 * heads, d, dim_head)

    return {
        'pre_vecs': jnp.stack([params['ln_pre_g'], params['ln_pre_b']]).astype(f32),
        'w_patch': params['w_patch'].astype(_BF16),
        'post_vecs': jnp.stack([params['b_patch'], params['ln_post_g'],
                                params['ln_post_b']]).astype(f32),
        'layer_vecs': jnp.stack([
            jnp.stack([lp['ga'], lp['ba'], lp['bo'], lp['gf'], lp['bf'], lp['b2']])
            for lp in layers]).astype(f32),                          # (depth, 6, dim)
        'b1': jnp.stack([lp['b1'][None, :] for lp in layers]).astype(f32),
        'wqkv': jnp.stack([split_heads_qkv(lp['wqkv'])
                           for lp in layers]).astype(_BF16),         # (depth, 3H, dim, dh)
        'wo': jnp.stack([lp['wo'] for lp in layers]).astype(_BF16),  # (depth, inner, dim)
        'w1': jnp.stack([lp['w1'] for lp in layers]).astype(_BF16),
        'w2': jnp.stack([lp['w2'] for lp in layers]).astype(_BF16),
    }


def simple_vit_forward(img, params, *, patch_size, heads, dim_head, batch_tile=1):
    B, C, H, W = img.shape
    p = patch_size
    h, w = H // p, W // p
    n = h * w
    # einops: 'b c (h p1) (w p2) -> b (h w) (p1 p2 c)', then flatten tokens.
    x = img.reshape(B, C, h, p, w, p)
    x = jnp.transpose(x, (0, 2, 4, 3, 5, 1))                # b h w p1 p2 c
    patches = x.reshape(B * n, p * p * C).astype(_BF16)     # bf16 HBM stream

    dim = params['w_patch'].shape[1]
    mlp_dim = params['layers'][0]['w1'].shape[1]
    depth = len(params['layers'])
    patch_dim = p * p * C
    assert n % 8 == 0, 'tokens per image should be a multiple of 8 (sublane tile)'
    assert B % batch_tile == 0

    pos = posemb_sincos_2d(h, w, dim)
    packed = pack_params(params, heads=heads, dim_head=dim_head)

    emb = patch_embed_call(patches, packed['pre_vecs'], packed['w_patch'],
                           packed['post_vecs'], pos,
                           B=B, n=n, dim=dim, patch_dim=patch_dim)

    T = B // batch_tile
    out = transformer_call(emb, packed, T=T, bt=batch_tile, n=n, dim=dim,
                           heads=heads, dim_head=dim_head, mlp_dim=mlp_dim,
                           depth=depth)
    return out.reshape(B, n, dim)


# ------------------------------- parameter init --------------------------------

def init_params(key, *, channels, patch_size, dim, depth, heads, dim_head, mlp_dim):
    patch_dim = channels * patch_size * patch_size
    inner = heads * dim_head
    keys = iter(jax.random.split(key, 8 + depth * 12))

    def nrm(shape, scale=0.02):
        return scale * jax.random.normal(next(keys), shape, jnp.float32)

    params = {
        'ln_pre_g': 1.0 + nrm((patch_dim,), 0.1),
        'ln_pre_b': nrm((patch_dim,), 0.1),
        'w_patch': nrm((patch_dim, dim)),
        'b_patch': nrm((dim,)),
        'ln_post_g': 1.0 + nrm((dim,), 0.1),
        'ln_post_b': nrm((dim,), 0.1),
        'layers': [],
    }
    for _ in range(depth):
        params['layers'].append({
            'ga': 1.0 + nrm((dim,), 0.1),
            'ba': nrm((dim,), 0.1),
            'wqkv': nrm((dim, 3 * inner)),
            'wo': nrm((inner, dim)),
            'bo': nrm((dim,)),
            'gf': 1.0 + nrm((dim,), 0.1),
            'bf': nrm((dim,), 0.1),
            'w1': nrm((dim, mlp_dim)),
            'b1': nrm((mlp_dim,)),
            'w2': nrm((mlp_dim, dim)),
            'b2': nrm((dim,)),
        })
    return params


# ------------------------------------ main --------------------------------------

if __name__ == "__main__":
    # Config consistent with SimpleViT(image_size=16, patch_size=4, dim=128,
    # depth=2, heads=4, mlp_dim=256, channels=4, dim_head=32): small, but with
    # lane-dense (128-multiple) model / inner / mlp widths.
    B, C, H, W = 2, 4, 16, 16
    patch_size = 4
    dim, depth, heads, dim_head, mlp_dim = 128, 2, 4, 32, 256

    key = jax.random.PRNGKey(0)
    k_img, k_par = jax.random.split(key)
    img = jax.random.normal(k_img, (B, C, H, W), jnp.float32)

    params = init_params(k_par, channels=C, patch_size=patch_size, dim=dim,
                         depth=depth, heads=heads, dim_head=dim_head,
                         mlp_dim=mlp_dim)

    fwd = jax.jit(functools.partial(simple_vit_forward, patch_size=patch_size,
                                    heads=heads, dim_head=dim_head,
                                    batch_tile=1))
    out = fwd(img, params)
    jax.block_until_ready(out)
    assert out.shape == (B, (H // patch_size) * (W // patch_size), dim)
    assert bool(jnp.all(jnp.isfinite(out)))
    print("KERNEL_OK")
</pallas_src>

<mosaic_0001>
module attributes {stable_mosaic.version = 11 : i64} {
  func.func @kernel(%arg0: i32, %arg1: memref<32x64xbf16, #tpu.memory_space<vmem>>, %arg2: memref<2x64xf32, #tpu.memory_space<vmem>>, %arg3: memref<64x128xbf16, #tpu.memory_space<vmem>>, %arg4: memref<3x128xf32, #tpu.memory_space<vmem>>, %arg5: memref<16x128xf32, #tpu.memory_space<vmem>>, %arg6: memref<32x128xf32, #tpu.memory_space<vmem>>) attributes {dimension_semantics = [#tpu.dimension_semantics<arbitrary>], iteration_bounds = array<i64: 1>, scalar_prefetch = 0 : i64, scratch_operands = 0 : i64, tpu.core_type = #tpu.core_type<tc>, window_params = [{pipeline_mode = #tpu.pipeline_mode<synchronous>, transform_indices = @transform_0, window_bounds = array<i64: 32, 64>}, {pipeline_mode = #tpu.pipeline_mode<synchronous>, transform_indices = @transform_1, window_bounds = array<i64: 2, 64>}, {pipeline_mode = #tpu.pipeline_mode<synchronous>, transform_indices = @transform_2, window_bounds = array<i64: 64, 128>}, {pipeline_mode = #tpu.pipeline_mode<synchronous>, transform_indices = @transform_3, window_bounds = array<i64: 3, 128>}, {pipeline_mode = #tpu.pipeline_mode<synchronous>, transform_indices = @transform_4, window_bounds = array<i64: 16, 128>}, {pipeline_mode = #tpu.pipeline_mode<synchronous>, transform_indices = @transform_5, window_bounds = array<i64: 32, 128>}]} {
    %c0 = arith.constant 0 : index
    %c0_0 = arith.constant 0 : index
    %0 = vector.load %arg1[%c0, %c0_0] : memref<32x64xbf16, #tpu.memory_space<vmem>>, vector<32x64xbf16>
    %1 = arith.extf %0 : vector<32x64xbf16> to vector<32x64xf32>
    %c0_1 = arith.constant 0 : index
    %c0_2 = arith.constant 0 : index
    %2 = vector.load %arg2[%c0_1, %c0_2] : memref<2x64xf32, #tpu.memory_space<vmem>>, vector<1x64xf32>
    %c1 = arith.constant 1 : index
    %c0_3 = arith.constant 0 : index
    %3 = vector.load %arg2[%c1, %c0_3] : memref<2x64xf32, #tpu.memory_space<vmem>>, vector<1x64xf32>
    %cst = arith.constant dense<0.000000e+00> : vector<32xf32>
    %4 = vector.multi_reduction <add>, %1, %cst [1] : vector<32x64xf32> to vector<32xf32>
    %5 = vector.shape_cast %4 : vector<32xf32> to vector<32x1xf32>
    %cst_4 = arith.constant 6.400000e+01 : f32
    %6 = vector.broadcast %cst_4 : f32 to vector<32x1xf32>
    %7 = arith.divf %5, %6 : vector<32x1xf32>
    %8 = vector.broadcast %7 : vector<32x1xf32> to vector<32x64xf32>
    %9 = arith.subf %1, %8 : vector<32x64xf32>
    %10 = arith.mulf %9, %9 : vector<32x64xf32>
    %cst_5 = arith.constant dense<0.000000e+00> : vector<32xf32>
    %11 = vector.multi_reduction <add>, %10, %cst_5 [1] : vector<32x64xf32> to vector<32xf32>
    %12 = vector.shape_cast %11 : vector<32xf32> to vector<32x1xf32>
    %cst_6 = arith.constant 6.400000e+01 : f32
    %13 = vector.broadcast %cst_6 : f32 to vector<32x1xf32>
    %14 = arith.divf %12, %13 : vector<32x1xf32>
    %15 = vector.broadcast %7 : vector<32x1xf32> to vector<32x64xf32>
    %16 = arith.subf %1, %15 : vector<32x64xf32>
    %cst_7 = arith.constant 9.99999974E-6 : f32
    %17 = vector.broadcast %cst_7 : f32 to vector<32x1xf32>
    %18 = arith.addf %14, %17 : vector<32x1xf32>
    %19 = math.rsqrt %18 : vector<32x1xf32>
    %20 = vector.broadcast %19 : vector<32x1xf32> to vector<32x64xf32>
    %21 = arith.mulf %16, %20 : vector<32x64xf32>
    %22 = vector.broadcast %2 : vector<1x64xf32> to vector<32x64xf32>
    %23 = arith.mulf %21, %22 : vector<32x64xf32>
    %24 = vector.broadcast %3 : vector<1x64xf32> to vector<32x64xf32>
    %25 = arith.addf %23, %24 : vector<32x64xf32>
    %26 = arith.truncf %25 : vector<32x64xf32> to vector<32x64xbf16>
    %c0_8 = arith.constant 0 : index
    %c0_9 = arith.constant 0 : index
    %27 = vector.load %arg3[%c0_8, %c0_9] : memref<64x128xbf16, #tpu.memory_space<vmem>>, vector<64x128xbf16>
    %cst_10 = arith.constant dense<0.000000e+00> : vector<32x128xf32>
    %28 = tpu.matmul %26, %27, %cst_10 {dimension_numbers = #tpu.dot_dimension_numbers<[1], [0], [0], [1], [0, 0, 1, 1], [], []>} : vector<32x64xbf16>, vector<64x128xbf16>, vector<32x128xf32> -> vector<32x128xf32>
    %c0_11 = arith.constant 0 : index
    %c0_12 = arith.constant 0 : index
    %29 = vector.load %arg4[%c0_11, %c0_12] : memref<3x128xf32, #tpu.memory_space<vmem>>, vector<1x128xf32>
    %30 = vector.broadcast %29 : vector<1x128xf32> to vector<32x128xf32>
    %31 = arith.addf %28, %30 : vector<32x128xf32>
    %c1_13 = arith.constant 1 : index
    %c0_14 = arith.constant 0 : index
    %32 = vector.load %arg4[%c1_13, %c0_14] : memref<3x128xf32, #tpu.memory_space<vmem>>, vector<1x128xf32>
    %c2 = arith.constant 2 : index
    %c0_15 = arith.constant 0 : index
    %33 = vector.load %arg4[%c2, %c0_15] : memref<3x128xf32, #tpu.memory_space<vmem>>, vector<1x128xf32>
    %cst_16 = arith.constant dense<0.000000e+00> : vector<32xf32>
    %34 = vector.multi_reduction <add>, %31, %cst_16 [1] : vector<32x128xf32> to vector<32xf32>
    %35 = vector.shape_cast %34 : vector<32xf32> to vector<32x1xf32>
    %cst_17 = arith.constant 1.280000e+02 : f32
    %36 = vector.broadcast %cst_17 : f32 to vector<32x1xf32>
    %37 = arith.divf %35, %36 : vector<32x1xf32>
    %38 = vector.broadcast %37 : vector<32x1xf32> to vector<32x128xf32>
    %39 = arith.subf %31, %38 : vector<32x128xf32>
    %40 = arith.mulf %39, %39 : vector<32x128xf32>
    %cst_18 = arith.constant dense<0.000000e+00> : vector<32xf32>
    %41 = vector.multi_reduction <add>, %40, %cst_18 [1] : vector<32x128xf32> to vector<32xf32>
    %42 = vector.shape_cast %41 : vector<32xf32> to vector<32x1xf32>
    %cst_19 = arith.constant 1.280000e+02 : f32
    %43 = vector.broadcast %cst_19 : f32 to vector<32x1xf32>
    %44 = arith.divf %42, %43 : vector<32x1xf32>
    %45 = vector.broadcast %37 : vector<32x1xf32> to vector<32x128xf32>
    %46 = arith.subf %31, %45 : vector<32x128xf32>
    %cst_20 = arith.constant 9.99999974E-6 : f32
    %47 = vector.broadcast %cst_20 : f32 to vector<32x1xf32>
    %48 = arith.addf %44, %47 : vector<32x1xf32>
    %49 = math.rsqrt %48 : vector<32x1xf32>
    %50 = vector.broadcast %49 : vector<32x1xf32> to vector<32x128xf32>
    %51 = arith.mulf %46, %50 : vector<32x128xf32>
    %52 = vector.broadcast %32 : vector<1x128xf32> to vector<32x128xf32>
    %53 = arith.mulf %51, %52 : vector<32x128xf32>
    %54 = vector.broadcast %33 : vector<1x128xf32> to vector<32x128xf32>
    %55 = arith.addf %53, %54 : vector<32x128xf32>
    %56 = vector.shape_cast %55 : vector<32x128xf32> to vector<2x16x128xf32>
    %c0_21 = arith.constant 0 : index
    %c0_22 = arith.constant 0 : index
    %57 = vector.load %arg5[%c0_21, %c0_22] : memref<16x128xf32, #tpu.memory_space<vmem>>, vector<16x128xf32>
    %58 = vector.shape_cast %57 : vector<16x128xf32> to vector<1x16x128xf32>
    %59 = vector.broadcast %58 : vector<1x16x128xf32> to vector<2x16x128xf32>
    %60 = arith.addf %56, %59 : vector<2x16x128xf32>
    %61 = vector.shape_cast %60 : vector<2x16x128xf32> to vector<32x128xf32>
    %c0_23 = arith.constant 0 : index
    %c0_24 = arith.constant 0 : index
    %62 = vector.load %arg6[%c0_23, %c0_24] : memref<32x128xf32, #tpu.memory_space<vmem>>, vector<32x128xf32>
    tpu.vector_store %arg6[%c0_23, %c0_24], %61 {strides = array<i32>} : memref<32x128xf32, #tpu.memory_space<vmem>>, vector<32x128xf32>,
    return
  }
  func.func @transform_0(%arg0: i32) -> (i32, i32) {
    %c0_i32 = arith.constant 0 : i32
    %c0_i32_0 = arith.constant 0 : i32
    %c0_i32_1 = arith.constant 0 : i32
    return %c0_i32, %c0_i32_0 : i32, i32
  }
  func.func @transform_1(%arg0: i32) -> (i32, i32) {
    %c0_i32 = arith.constant 0 : i32
    %c0_i32_0 = arith.constant 0 : i32
    %c0_i32_1 = arith.constant 0 : i32
    return %c0_i32, %c0_i32_0 : i32, i32
  }
  func.func @transform_2(%arg0: i32) -> (i32, i32) {
    %c0_i32 = arith.constant 0 : i32
    %c0_i32_0 = arith.constant 0 : i32
    %c0_i32_1 = arith.constant 0 : i32
    return %c0_i32, %c0_i32_0 : i32, i32
  }
  func.func @transform_3(%arg0: i32) -> (i32, i32) {
    %c0_i32 = arith.constant 0 : i32
    %c0_i32_0 = arith.constant 0 : i32
    %c0_i32_1 = arith.constant 0 : i32
    return %c0_i32, %c0_i32_0 : i32, i32
  }
  func.func @transform_4(%arg0: i32) -> (i32, i32) {
    %c0_i32 = arith.constant 0 : i32
    %c0_i32_0 = arith.constant 0 : i32
    %c0_i32_1 = arith.constant 0 : i32
    return %c0_i32, %c0_i32_0 : i32, i32
  }
  func.func @transform_5(%arg0: i32) -> (i32, i32) {
    %c0_i32 = arith.constant 0 : i32
    %c0_i32_0 = arith.constant 0 : i32
    %c0_i32_1 = arith.constant 0 : i32
    return %c0_i32, %c0_i32_0 : i32, i32
  }
}

module attributes {stable_mosaic.version = 11 : i64} {
  func.func @kernel(%arg0: i32, %arg1: i32, %arg2: memref<2x16x128xf32, #tpu.memory_space<any>>, %arg3: memref<1x6x128xf32, #tpu.memory_space<vmem>>, %arg4: memref<1x1x256xf32, #tpu.memory_space<vmem>>, %arg5: memref<1x12x128x32xbf16, #tpu.memory_space<vmem>>, %arg6: memref<1x128x128xbf16, #tpu.memory_space<vmem>>, %arg7: memref<1x128x256xbf16, #tpu.memory_space<vmem>>, %arg8: memref<1x256x128xbf16, #tpu.memory_space<vmem>>, %arg9: memref<16x128xf32, #tpu.memory_space<vmem>>, %arg10: memref<1x!tpu.dma_semaphore, #tpu.memory_space<semaphore_mem>>) attributes {dimension_semantics = [#tpu.dimension_semantics<parallel>, #tpu.dimension_semantics<arbitrary>], iteration_bounds = array<i64: 2, 2>, scalar_prefetch = 0 : i64, scratch_operands = 1 : i64, tpu.core_type = #tpu.core_type<tc>, window_params = [{}, {transform_indices = @transform_1, window_bounds = array<i64: 1, 6, 128>}, {transform_indices = @transform_2, window_bounds = array<i64: 1, 1, 256>}, {transform_indices = @transform_3, window_bounds = array<i64: 1, 12, 128, 32>}, {transform_indices = @transform_4, window_bounds = array<i64: 1, 128, 128>}, {transform_indices = @transform_5, window_bounds = array<i64: 1, 128, 256>}, {transform_indices = @transform_6, window_bounds = array<i64: 1, 256, 128>}, {transform_indices = @transform_7, window_bounds = array<i64: 16, 128>}]} {
    %c0_i32 = arith.constant 0 : i32
    %0 = arith.cmpi eq, %arg1, %c0_i32 : i32
    %1 = arith.extui %0 : i1 to i32
    %c0_i32_0 = arith.constant 0 : i32
    %2 = arith.cmpi ne, %1, %c0_i32_0 : i32
    scf.if %2 {
      %c0_i32_103 = arith.constant 0 : i32
      %c0_i32_104 = arith.constant 0 : i32
      %c0_i32_105 = arith.constant 0 : i32
      %170 = tpu.memref_slice %arg2[%arg0, %c0_i32_104, %c0_i32_105] : memref<2x16x128xf32, #tpu.memory_space<any>> -> memref<1x16x128xf32, #tpu.memory_space<any>>
      %171 = tpu.memref_squeeze %170 : memref<1x16x128xf32, #tpu.memory_space<any>> -> memref<16x128xf32, #tpu.memory_space<any>>
      %172 = tpu.memref_slice %arg10[%c0_i32_103] : memref<1x!tpu.dma_semaphore, #tpu.memory_space<semaphore_mem>> -> memref<1x!tpu.dma_semaphore, #tpu.memory_space<semaphore_mem>>
      %173 = tpu.memref_squeeze %172 : memref<1x!tpu.dma_semaphore, #tpu.memory_space<semaphore_mem>> -> memref<!tpu.dma_semaphore, #tpu.memory_space<semaphore_mem>>
      tpu.enqueue_dma source(%171 : memref<16x128xf32, #tpu.memory_space<any>>) target(%arg9 : memref<16x128xf32, #tpu.memory_space<vmem>>) target_semaphore(%173 : memref<!tpu.dma_semaphore, #tpu.memory_space<semaphore_mem>>)
      %c0_i32_106 = arith.constant 0 : i32
      %c0_i32_107 = arith.constant 0 : i32
      %c0_i32_108 = arith.constant 0 : i32
      %174 = tpu.memref_slice %arg2[%arg0, %c0_i32_107, %c0_i32_108] : memref<2x16x128xf32, #tpu.memory_space<any>> -> memref<1x16x128xf32, #tpu.memory_space<any>>
      %175 = tpu.memref_squeeze %174 : memref<1x16x128xf32, #tpu.memory_space<any>> -> memref<16x128xf32, #tpu.memory_space<any>>
      %176 = tpu.memref_slice %arg10[%c0_i32_106] : memref<1x!tpu.dma_semaphore, #tpu.memory_space<semaphore_mem>> -> memref<1x!tpu.dma_semaphore, #tpu.memory_space<semaphore_mem>>
      %177 = tpu.memref_squeeze %176 : memref<1x!tpu.dma_semaphore, #tpu.memory_space<semaphore_mem>> -> memref<!tpu.dma_semaphore, #tpu.memory_space<semaphore_mem>>
      tpu.wait_dma2 semaphore(%177 : memref<!tpu.dma_semaphore, #tpu.memory_space<semaphore_mem>>) src(%175 : memref<16x128xf32, #tpu.memory_space<any>>) dst(%arg9 : memref<16x128xf32, #tpu.memory_space<vmem>>)
    } else {
    }
    %c0 = arith.constant 0 : index
    %c0_1 = arith.constant 0 : index
    %3 = vector.load %arg9[%c0, %c0_1] : memref<16x128xf32, #tpu.memory_space<vmem>>, vector<16x128xf32>
    %c0_2 = arith.constant 0 : index
    %c0_3 = arith.constant 0 : index
    %c0_4 = arith.constant 0 : index
    %4 = vector.load %arg3[%c0_2, %c0_3, %c0_4] : memref<1x6x128xf32, #tpu.memory_space<vmem>>, vector<1x1x128xf32>
    %5 = vector.shape_cast %4 : vector<1x1x128xf32> to vector<1x128xf32>
    %c0_5 = arith.constant 0 : index
    %c1 = arith.constant 1 : index
    %c0_6 = arith.constant 0 : index
    %6 = vector.load %arg3[%c0_5, %c1, %c0_6] : memref<1x6x128xf32, #tpu.memory_space<vmem>>, vector<1x1x128xf32>
    %7 = vector.shape_cast %6 : vector<1x1x128xf32> to vector<1x128xf32>
    %c0_7 = arith.constant 0 : index
    %c2 = arith.constant 2 : index
    %c0_8 = arith.constant 0 : index
    %8 = vector.load %arg3[%c0_7, %c2, %c0_8] : memref<1x6x128xf32, #tpu.memory_space<vmem>>, vector<1x1x128xf32>
    %9 = vector.shape_cast %8 : vector<1x1x128xf32> to vector<1x128xf32>
    %c0_9 = arith.constant 0 : index
    %c3 = arith.constant 3 : index
    %c0_10 = arith.constant 0 : index
    %10 = vector.load %arg3[%c0_9, %c3, %c0_10] : memref<1x6x128xf32, #tpu.memory_space<vmem>>, vector<1x1x128xf32>
    %11 = vector.shape_cast %10 : vector<1x1x128xf32> to vector<1x128xf32>
    %c0_11 = arith.constant 0 : index
    %c4 = arith.constant 4 : index
    %c0_12 = arith.constant 0 : index
    %12 = vector.load %arg3[%c0_11, %c4, %c0_12] : memref<1x6x128xf32, #tpu.memory_space<vmem>>, vector<1x1x128xf32>
    %13 = vector.shape_cast %12 : vector<1x1x128xf32> to vector<1x128xf32>
    %c0_13 = arith.constant 0 : index
    %c5 = arith.constant 5 : index
    %c0_14 = arith.constant 0 : index
    %14 = vector.load %arg3[%c0_13, %c5, %c0_14] : memref<1x6x128xf32, #tpu.memory_space<vmem>>, vector<1x1x128xf32>
    %15 = vector.shape_cast %14 : vector<1x1x128xf32> to vector<1x128xf32>
    %cst = arith.constant dense<0.000000e+00> : vector<16xf32>
    %16 = vector.multi_reduction <add>, %3, %cst [1] : vector<16x128xf32> to vector<16xf32>
    %17 = vector.shape_cast %16 : vector<16xf32> to vector<16x1xf32>
    %cst_15 = arith.constant 1.280000e+02 : f32
    %18 = vector.broadcast %cst_15 : f32 to vector<16x1xf32>
    %19 = arith.divf %17, %18 : vector<16x1xf32>
    %20 = vector.broadcast %19 : vector<16x1xf32> to vector<16x128xf32>
    %21 = arith.subf %3, %20 : vector<16x128xf32>
    %22 = arith.mulf %21, %21 : vector<16x128xf32>
    %cst_16 = arith.constant dense<0.000000e+00> : vector<16xf32>
    %23 = vector.multi_reduction <add>, %22, %cst_16 [1] : vector<16x128xf32> to vector<16xf32>
    %24 = vector.shape_cast %23 : vector<16xf32> to vector<16x1xf32>
    %cst_17 = arith.constant 1.280000e+02 : f32
    %25 = vector.broadcast %cst_17 : f32 to vector<16x1xf32>
    %26 = arith.divf %24, %25 : vector<16x1xf32>
    %27 = vector.broadcast %19 : vector<16x1xf32> to vector<16x128xf32>
    %28 = arith.subf %3, %27 : vector<16x128xf32>
    %cst_18 = arith.constant 9.99999974E-6 : f32
    %29 = vector.broadcast %cst_18 : f32 to vector<16x1xf32>
    %30 = arith.addf %26, %29 : vector<16x1xf32>
    %31 = math.rsqrt %30 : vector<16x1xf32>
    %32 = vector.broadcast %31 : vector<16x1xf32> to vector<16x128xf32>
    %33 = arith.mulf %28, %32 : vector<16x128xf32>
    %34 = vector.broadcast %5 : vector<1x128xf32> to vector<16x128xf32>
    %35 = arith.mulf %33, %34 : vector<16x128xf32>
    %36 = vector.broadcast %7 : vector<1x128xf32> to vector<16x128xf32>
    %37 = arith.addf %35, %36 : vector<16x128xf32>
    %38 = arith.truncf %37 : vector<16x128xf32> to vector<16x128xbf16>
    %c0_19 = arith.constant 0 : index
    %c0_20 = arith.constant 0 : index
    %c0_21 = arith.constant 0 : index
    %c0_22 = arith.constant 0 : index
    %39 = vector.load %arg5[%c0_19, %c0_20, %c0_21, %c0_22] : memref<1x12x128x32xbf16, #tpu.memory_space<vmem>>, vector<1x1x128x32xbf16>
    %40 = vector.shape_cast %39 : vector<1x1x128x32xbf16> to vector<128x32xbf16>
    %cst_23 = arith.constant dense<0.000000e+00> : vector<16x32xf32>
    %41 = tpu.matmul %38, %40, %cst_23 {dimension_numbers = #tpu.dot_dimension_numbers<[1], [0], [0], [1], [0, 0, 1, 1], [], []>} : vector<16x128xbf16>, vector<128x32xbf16>, vector<16x32xf32> -> vector<16x32xf32>
    %42 = vector.shape_cast %41 : vector<16x32xf32> to vector<1x16x32xf32>
    %c0_24 = arith.constant 0 : index
    %c1_25 = arith.constant 1 : index
    %c0_26 = arith.constant 0 : index
    %c0_27 = arith.constant 0 : index
    %43 = vector.load %arg5[%c0_24, %c1_25, %c0_26, %c0_27] : memref<1x12x128x32xbf16, #tpu.memory_space<vmem>>, vector<1x1x128x32xbf16>
    %44 = vector.shape_cast %43 : vector<1x1x128x32xbf16> to vector<128x32xbf16>
    %cst_28 = arith.constant dense<0.000000e+00> : vector<16x32xf32>
    %45 = tpu.matmul %38, %44, %cst_28 {dimension_numbers = #tpu.dot_dimension_numbers<[1], [0], [0], [1], [0, 0, 1, 1], [], []>} : vector<16x128xbf16>, vector<128x32xbf16>, vector<16x32xf32> -> vector<16x32xf32>
    %46 = vector.shape_cast %45 : vector<16x32xf32> to vector<1x16x32xf32>
    %c0_29 = arith.constant 0 : index
    %c2_30 = arith.constant 2 : index
    %c0_31 = arith.constant 0 : index
    %c0_32 = arith.constant 0 : index
    %47 = vector.load %arg5[%c0_29, %c2_30, %c0_31, %c0_32] : memref<1x12x128x32xbf16, #tpu.memory_space<vmem>>, vector<1x1x128x32xbf16>
    %48 = vector.shape_cast %47 : vector<1x1x128x32xbf16> to vector<128x32xbf16>
    %cst_33 = arith.constant dense<0.000000e+00> : vector<16x32xf32>
    %49 = tpu.matmul %38, %48, %cst_33 {dimension_numbers = #tpu.dot_dimension_numbers<[1], [0], [0], [1], [0, 0, 1, 1], [], []>} : vector<16x128xbf16>, vector<128x32xbf16>, vector<16x32xf32> -> vector<16x32xf32>
    %50 = vector.shape_cast %49 : vector<16x32xf32> to vector<1x16x32xf32>
    %c0_34 = arith.constant 0 : index
    %c3_35 = arith.constant 3 : index
    %c0_36 = arith.constant 0 : index
    %c0_37 = arith.constant 0 : index
    %51 = vector.load %arg5[%c0_34, %c3_35, %c0_36, %c0_37] : memref<1x12x128x32xbf16, #tpu.memory_space<vmem>>, vector<1x1x128x32xbf16>
    %52 = vector.shape_cast %51 : vector<1x1x128x32xbf16> to vector<128x32xbf16>
    %cst_38 = arith.constant dense<0.000000e+00> : vector<16x32xf32>
    %53 = tpu.matmul %38, %52, %cst_38 {dimension_numbers = #tpu.dot_dimension_numbers<[1], [0], [0], [1], [0, 0, 1, 1], [], []>} : vector<16x128xbf16>, vector<128x32xbf16>, vector<16x32xf32> -> vector<16x32xf32>
    %54 = vector.shape_cast %53 : vector<16x32xf32> to vector<1x16x32xf32>
    %55 = tpu.concatenate %42, %46, %50, %54 in 0 : vector<1x16x32xf32>, vector<1x16x32xf32>, vector<1x16x32xf32>, vector<1x16x32xf32> -> vector<4x16x32xf32>
    %c0_39 = arith.constant 0 : index
    %c4_40 = arith.constant 4 : index
    %c0_41 = arith.constant 0 : index
    %c0_42 = arith.constant 0 : index
    %56 = vector.load %arg5[%c0_39, %c4_40, %c0_41, %c0_42] : memref<1x12x128x32xbf16, #tpu.memory_space<vmem>>, vector<1x1x128x32xbf16>
    %57 = vector.shape_cast %56 : vector<1x1x128x32xbf16> to vector<128x32xbf16>
    %cst_43 = arith.constant dense<0.000000e+00> : vector<16x32xf32>
    %58 = tpu.matmul %38, %57, %cst_43 {dimension_numbers = #tpu.dot_dimension_numbers<[1], [0], [0], [1], [0, 0, 1, 1], [], []>} : vector<16x128xbf16>, vector<128x32xbf16>, vector<16x32xf32> -> vector<16x32xf32>
    %59 = vector.shape_cast %58 : vector<16x32xf32> to vector<1x16x32xf32>
    %c0_44 = arith.constant 0 : index
    %c5_45 = arith.constant 5 : index
    %c0_46 = arith.constant 0 : index
    %c0_47 = arith.constant 0 : index
    %60 = vector.load %arg5[%c0_44, %c5_45, %c0_46, %c0_47] : memref<1x12x128x32xbf16, #tpu.memory_space<vmem>>, vector<1x1x128x32xbf16>
    %61 = vector.shape_cast %60 : vector<1x1x128x32xbf16> to vector<128x32xbf16>
    %cst_48 = arith.constant dense<0.000000e+00> : vector<16x32xf32>
    %62 = tpu.matmul %38, %61, %cst_48 {dimension_numbers = #tpu.dot_dimension_numbers<[1], [0], [0], [1], [0, 0, 1, 1], [], []>} : vector<16x128xbf16>, vector<128x32xbf16>, vector<16x32xf32> -> vector<16x32xf32>
    %63 = vector.shape_cast %62 : vector<16x32xf32> to vector<1x16x32xf32>
    %c0_49 = arith.constant 0 : index
    %c6 = arith.constant 6 : index
    %c0_50 = arith.constant 0 : index
    %c0_51 = arith.constant 0 : index
    %64 = vector.load %arg5[%c0_49, %c6, %c0_50, %c0_51] : memref<1x12x128x32xbf16, #tpu.memory_space<vmem>>, vector<1x1x128x32xbf16>
    %65 = vector.shape_cast %64 : vector<1x1x128x32xbf16> to vector<128x32xbf16>
    %cst_52 = arith.constant dense<0.000000e+00> : vector<16x32xf32>
    %66 = tpu.matmul %38, %65, %cst_52 {dimension_numbers = #tpu.dot_dimension_numbers<[1], [0], [0], [1], [0, 0, 1, 1], [], []>} : vector<16x128xbf16>, vector<128x32xbf16>, vector<16x32xf32> -> vector<16x32xf32>
    %67 = vector.shape_cast %66 : vector<16x32xf32> to vector<1x16x32xf32>
    %c0_53 = arith.constant 0 : index
    %c7 = arith.constant 7 : index
    %c0_54 = arith.constant 0 : index
    %c0_55 = arith.constant 0 : index
    %68 = vector.load %arg5[%c0_53, %c7, %c0_54, %c0_55] : memref<1x12x128x32xbf16, #tpu.memory_space<vmem>>, vector<1x1x128x32xbf16>
    %69 = vector.shape_cast %68 : vector<1x1x128x32xbf16> to vector<128x32xbf16>
    %cst_56 = arith.constant dense<0.000000e+00> : vector<16x32xf32>
    %70 = tpu.matmul %38, %69, %cst_56 {dimension_numbers = #tpu.dot_dimension_numbers<[1], [0], [0], [1], [0, 0, 1, 1], [], []>} : vector<16x128xbf16>, vector<128x32xbf16>, vector<16x32xf32> -> vector<16x32xf32>
    %71 = vector.shape_cast %70 : vector<16x32xf32> to vector<1x16x32xf32>
    %72 = tpu.concatenate %59, %63, %67, %71 in 0 : vector<1x16x32xf32>, vector<1x16x32xf32>, vector<1x16x32xf32>, vector<1x16x32xf32> -> vector<4x16x32xf32>
    %c0_57 = arith.constant 0 : index
    %c8 = arith.constant 8 : index
    %c0_58 = arith.constant 0 : index
    %c0_59 = arith.constant 0 : index
    %73 = vector.load %arg5[%c0_57, %c8, %c0_58, %c0_59] : memref<1x12x128x32xbf16, #tpu.memory_space<vmem>>, vector<1x1x128x32xbf16>
    %74 = vector.shape_cast %73 : vector<1x1x128x32xbf16> to vector<128x32xbf16>
    %cst_60 = arith.constant dense<0.000000e+00> : vector<16x32xf32>
    %75 = tpu.matmul %38, %74, %cst_60 {dimension_numbers = #tpu.dot_dimension_numbers<[1], [0], [0], [1], [0, 0, 1, 1], [], []>} : vector<16x128xbf16>, vector<128x32xbf16>, vector<16x32xf32> -> vector<16x32xf32>
    %76 = vector.shape_cast %75 : vector<16x32xf32> to vector<1x16x32xf32>
    %c0_61 = arith.constant 0 : index
    %c9 = arith.constant 9 : index
    %c0_62 = arith.constant 0 : index
    %c0_63 = arith.constant 0 : index
    %77 = vector.load %arg5[%c0_61, %c9, %c0_62, %c0_63] : memref<1x12x128x32xbf16, #tpu.memory_space<vmem>>, vector<1x1x128x32xbf16>
    %78 = vector.shape_cast %77 : vector<1x1x128x32xbf16> to vector<128x32xbf16>
    %cst_64 = arith.constant dense<0.000000e+00> : vector<16x32xf32>
    %79 = tpu.matmul %38, %78, %cst_64 {dimension_numbers = #tpu.dot_dimension_numbers<[1], [0], [0], [1], [0, 0, 1, 1], [], []>} : vector<16x128xbf16>, vector<128x32xbf16>, vector<16x32xf32> -> vector<16x32xf32>
    %80 = vector.shape_cast %79 : vector<16x32xf32> to vector<1x16x32xf32>
    %c0_65 = arith.constant 0 : index
    %c10 = arith.constant 10 : index
    %c0_66 = arith.constant 0 : index
    %c0_67 = arith.constant 0 : index
    %81 = vector.load %arg5[%c0_65, %c10, %c0_66, %c0_67] : memref<1x12x128x32xbf16, #tpu.memory_space<vmem>>, vector<1x1x128x32xbf16>
    %82 = vector.shape_cast %81 : vector<1x1x128x32xbf16> to vector<128x32xbf16>
    %cst_68 = arith.constant dense<0.000000e+00> : vector<16x32xf32>
    %83 = tpu.matmul %38, %82, %cst_68 {dimension_numbers = #tpu.dot_dimension_numbers<[1], [0], [0], [1], [0, 0, 1, 1], [], []>} : vector<16x128xbf16>, vector<128x32xbf16>, vector<16x32xf32> -> vector<16x32xf32>
    %84 = vector.shape_cast %83 : vector<16x32xf32> to vector<1x16x32xf32>
    %c0_69 = arith.constant 0 : index
    %c11 = arith.constant 11 : index
    %c0_70 = arith.constant 0 : index
    %c0_71 = arith.constant 0 : index
    %85 = vector.load %arg5[%c0_69, %c11, %c0_70, %c0_71] : memref<1x12x128x32xbf16, #tpu.memory_space<vmem>>, vector<1x1x128x32xbf16>
    %86 = vector.shape_cast %85 : vector<1x1x128x32xbf16> to vector<128x32xbf16>
    %cst_72 = arith.constant dense<0.000000e+00> : vector<16x32xf32>
    %87 = tpu.matmul %38, %86, %cst_72 {dimension_numbers = #tpu.dot_dimension_numbers<[1], [0], [0], [1], [0, 0, 1, 1], [], []>} : vector<16x128xbf16>, vector<128x32xbf16>, vector<16x32xf32> -> vector<16x32xf32>
    %88 = vector.shape_cast %87 : vector<16x32xf32> to vector<1x16x32xf32>
    %89 = tpu.concatenate %76, %80, %84, %88 in 0 : vector<1x16x32xf32>, vector<1x16x32xf32>, vector<1x16x32xf32>, vector<1x16x32xf32> -> vector<4x16x32xf32>
    %cst_73 = arith.constant 0.176776692 : f32
    %90 = vector.broadcast %cst_73 : f32 to vector<4x16x32xf32>
    %91 = arith.mulf %55, %90 : vector<4x16x32xf32>
    %92 = arith.truncf %91 : vector<4x16x32xf32> to vector<4x16x32xbf16>
    %93 = arith.truncf %72 : vector<4x16x32xf32> to vector<4x16x32xbf16>
    %94 = arith.truncf %89 : vector<4x16x32xf32> to vector<4x16x32xbf16>
    "tpu.trace_start"() <{level = 10 : i32, message = "znd,zmd->znm"}> : () -> ()
    %cst_74 = arith.constant dense<0.000000e+00> : vector<4x16x16xf32>
    %95 = tpu.matmul %92, %93, %cst_74 {dimension_numbers = #tpu.dot_dimension_numbers<[2], [2], [1], [1], [0, 0, 0, 1, 1, 1], [0], [0]>} : vector<4x16x32xbf16>, vector<4x16x32xbf16>, vector<4x16x16xf32> -> vector<4x16x16xf32>
    "tpu.trace_stop"() : () -> ()
    %cst_75 = arith.constant dense<0xFF800000> : vector<4x16xf32>
    %96 = vector.multi_reduction <maximumf>, %95, %cst_75 [2] : vector<4x16x16xf32> to vector<4x16xf32>
    %97 = vector.shape_cast %96 : vector<4x16xf32> to vector<4x16x1xf32>
    %98 = vector.broadcast %97 : vector<4x16x1xf32> to vector<4x16x16xf32>
    %99 = arith.subf %95, %98 : vector<4x16x16xf32>
    %100 = math.exp %99 : vector<4x16x16xf32>
    %cst_76 = arith.constant dense<0.000000e+00> : vector<4x16xf32>
    %101 = vector.multi_reduction <add>, %100, %cst_76 [2] : vector<4x16x16xf32> to vector<4x16xf32>
    %102 = vector.shape_cast %101 : vector<4x16xf32> to vector<4x16x1xf32>
    %103 = tpu.reciprocal %102 {approx = true} : vector<4x16x1xf32> -> vector<4x16x1xf32>
    %104 = vector.broadcast %103 : vector<4x16x1xf32> to vector<4x16x16xf32>
    %105 = arith.mulf %100, %104 : vector<4x16x16xf32>
    %106 = arith.truncf %105 : vector<4x16x16xf32> to vector<4x16x16xbf16>
    "tpu.trace_start"() <{level = 10 : i32, message = "znm,zmd->znd"}> : () -> ()
    %cst_77 = arith.constant dense<0.000000e+00> : vector<4x16x32xf32>
    %107 = tpu.matmul %106, %94, %cst_77 {dimension_numbers = #tpu.dot_dimension_numbers<[2], [1], [1], [2], [0, 0, 0, 1, 1, 2], [0], [0]>} : vector<4x16x16xbf16>, vector<4x16x32xbf16>, vector<4x16x32xf32> -> vector<4x16x32xf32>
    "tpu.trace_stop"() : () -> ()
    %108 = vector.extract_strided_slice %107 {offsets = [0, 0, 0], sizes = [1, 16, 32], strides = [1, 1, 1]} : vector<4x16x32xf32> to vector<1x16x32xf32>
    %109 = vector.shape_cast %108 : vector<1x16x32xf32> to vector<16x32xf32>
    %110 = vector.extract_strided_slice %107 {offsets = [1, 0, 0], sizes = [1, 16, 32], strides = [1, 1, 1]} : vector<4x16x32xf32> to vector<1x16x32xf32>
    %111 = vector.shape_cast %110 : vector<1x16x32xf32> to vector<16x32xf32>
    %112 = vector.extract_strided_slice %107 {offsets = [2, 0, 0], sizes = [1, 16, 32], strides = [1, 1, 1]} : vector<4x16x32xf32> to vector<1x16x32xf32>
    %113 = vector.shape_cast %112 : vector<1x16x32xf32> to vector<16x32xf32>
    %114 = vector.extract_strided_slice %107 {offsets = [3, 0, 0], sizes = [1, 16, 32], strides = [1, 1, 1]} : vector<4x16x32xf32> to vector<1x16x32xf32>
    %115 = vector.shape_cast %114 : vector<1x16x32xf32> to vector<16x32xf32>
    %116 = tpu.concatenate %109, %111, %113, %115 in 1 : vector<16x32xf32>, vector<16x32xf32>, vector<16x32xf32>, vector<16x32xf32> -> vector<16x128xf32>
    %117 = arith.truncf %116 : vector<16x128xf32> to vector<16x128xbf16>
    %c0_78 = arith.constant 0 : index
    %c0_79 = arith.constant 0 : index
    %c0_80 = arith.constant 0 : index
    %118 = vector.load %arg6[%c0_78, %c0_79, %c0_80] : memref<1x128x128xbf16, #tpu.memory_space<vmem>>, vector<1x128x128xbf16>
    %119 = vector.shape_cast %118 : vector<1x128x128xbf16> to vector<128x128xbf16>
    %cst_81 = arith.constant dense<0.000000e+00> : vector<16x128xf32>
    %120 = tpu.matmul %117, %119, %cst_81 {dimension_numbers = #tpu.dot_dimension_numbers<[1], [0], [0], [1], [0, 0, 1, 1], [], []>} : vector<16x128xbf16>, vector<128x128xbf16>, vector<16x128xf32> -> vector<16x128xf32>
    %121 = arith.addf %3, %120 : vector<16x128xf32>
    %122 = vector.broadcast %9 : vector<1x128xf32> to vector<16x128xf32>
    %123 = arith.addf %121, %122 : vector<16x128xf32>
    %cst_82 = arith.constant dense<0.000000e+00> : vector<16xf32>
    %124 = vector.multi_reduction <add>, %123, %cst_82 [1] : vector<16x128xf32> to vector<16xf32>
    %125 = vector.shape_cast %124 : vector<16xf32> to vector<16x1xf32>
    %cst_83 = arith.constant 1.280000e+02 : f32
    %126 = vector.broadcast %cst_83 : f32 to vector<16x1xf32>
    %127 = arith.divf %125, %126 : vector<16x1xf32>
    %128 = vector.broadcast %127 : vector<16x1xf32> to vector<16x128xf32>
    %129 = arith.subf %123, %128 : vector<16x128xf32>
    %130 = arith.mulf %129, %129 : vector<16x128xf32>
    %cst_84 = arith.constant dense<0.000000e+00> : vector<16xf32>
    %131 = vector.multi_reduction <add>, %130, %cst_84 [1] : vector<16x128xf32> to vector<16xf32>
    %132 = vector.shape_cast %131 : vector<16xf32> to vector<16x1xf32>
    %cst_85 = arith.constant 1.280000e+02 : f32
    %133 = vector.broadcast %cst_85 : f32 to vector<16x1xf32>
    %134 = arith.divf %132, %133 : vector<16x1xf32>
    %135 = vector.broadcast %127 : vector<16x1xf32> to vector<16x128xf32>
    %136 = arith.subf %123, %135 : vector<16x128xf32>
    %cst_86 = arith.constant 9.99999974E-6 : f32
    %137 = vector.broadcast %cst_86 : f32 to vector<16x1xf32>
    %138 = arith.addf %134, %137 : vector<16x1xf32>
    %139 = math.rsqrt %138 : vector<16x1xf32>
    %140 = vector.broadcast %139 : vector<16x1xf32> to vector<16x128xf32>
    %141 = arith.mulf %136, %140 : vector<16x128xf32>
    %142 = vector.broadcast %11 : vector<1x128xf32> to vector<16x128xf32>
    %143 = arith.mulf %141, %142 : vector<16x128xf32>
    %144 = vector.broadcast %13 : vector<1x128xf32> to vector<16x128xf32>
    %145 = arith.addf %143, %144 : vector<16x128xf32>
    %146 = arith.truncf %145 : vector<16x128xf32> to vector<16x128xbf16>
    %c0_87 = arith.constant 0 : index
    %c0_88 = arith.constant 0 : index
    %c0_89 = arith.constant 0 : index
    %147 = vector.load %arg7[%c0_87, %c0_88, %c0_89] : memref<1x128x256xbf16, #tpu.memory_space<vmem>>, vector<1x128x256xbf16>
    %148 = vector.shape_cast %147 : vector<1x128x256xbf16> to vector<128x256xbf16>
    %cst_90 = arith.constant dense<0.000000e+00> : vector<16x256xf32>
    %149 = tpu.matmul %146, %148, %cst_90 {dimension_numbers = #tpu.dot_dimension_numbers<[1], [0], [0], [1], [0, 0, 1, 1], [], []>} : vector<16x128xbf16>, vector<128x256xbf16>, vector<16x256xf32> -> vector<16x256xf32>
    %c0_91 = arith.constant 0 : index
    %c0_92 = arith.constant 0 : index
    %c0_93 = arith.constant 0 : index
    %150 = vector.load %arg4[%c0_91, %c0_92, %c0_93] : memref<1x1x256xf32, #tpu.memory_space<vmem>>, vector<1x1x256xf32>
    %151 = vector.shape_cast %150 : vector<1x1x256xf32> to vector<1x256xf32>
    %152 = vector.broadcast %151 : vector<1x256xf32> to vector<16x256xf32>
    %153 = arith.addf %149, %152 : vector<16x256xf32>
    %cst_94 = arith.constant 5.000000e-01 : f32
    %154 = vector.broadcast %cst_94 : f32 to vector<16x256xf32>
    %155 = arith.mulf %154, %153 : vector<16x256xf32>
    %cst_95 = arith.constant 0.707106769 : f32
    %156 = vector.broadcast %cst_95 : f32 to vector<16x256xf32>
    %157 = arith.mulf %153, %156 : vector<16x256xf32>
    %158 = math.erf %157 : vector<16x256xf32>
    %cst_96 = arith.constant 1.000000e+00 : f32
    %159 = vector.broadcast %cst_96 : f32 to vector<16x256xf32>
    %160 = arith.addf %159, %158 : vector<16x256xf32>
    %161 = arith.mulf %155, %160 : vector<16x256xf32>
    %162 = arith.truncf %161 : vector<16x256xf32> to vector<16x256xbf16>
    %c0_97 = arith.constant 0 : index
    %c0_98 = arith.constant 0 : index
    %c0_99 = arith.constant 0 : index
    %163 = vector.load %arg8[%c0_97, %c0_98, %c0_99] : memref<1x256x128xbf16, #tpu.memory_space<vmem>>, vector<1x256x128xbf16>
    %164 = vector.shape_cast %163 : vector<1x256x128xbf16> to vector<256x128xbf16>
    %cst_100 = arith.constant dense<0.000000e+00> : vector<16x128xf32>
    %165 = tpu.matmul %162, %164, %cst_100 {dimension_numbers = #tpu.dot_dimension_numbers<[1], [0], [0], [1], [0, 0, 1, 1], [], []>} : vector<16x256xbf16>, vector<256x128xbf16>, vector<16x128xf32> -> vector<16x128xf32>
    %166 = vector.broadcast %15 : vector<1x128xf32> to vector<16x128xf32>
    %167 = arith.addf %165, %166 : vector<16x128xf32>
    %168 = arith.addf %123, %167 : vector<16x128xf32>
    %c0_101 = arith.constant 0 : index
    %c0_102 = arith.constant 0 : index
    %169 = vector.load %arg9[%c0_101, %c0_102] : memref<16x128xf32, #tpu.memory_space<vmem>>, vector<16x128xf32>
    tpu.vector_store %arg9[%c0_101, %c0_102], %168 {strides = array<i32>} : memref<16x128xf32, #tpu.memory_space<vmem>>, vector<16x128xf32>,
    return
  }
  func.func @transform_1(%arg0: i32, %arg1: i32) -> (i32, i32, i32) {
    %c0_i32 = arith.constant 0 : i32
    %c0_i32_0 = arith.constant 0 : i32
    %c0_i32_1 = arith.constant 0 : i32
    return %arg1, %c0_i32, %c0_i32_0 : i32, i32, i32
  }
  func.func @transform_2(%arg0: i32, %arg1: i32) -> (i32, i32, i32) {
    %c0_i32 = arith.constant 0 : i32
    %c0_i32_0 = arith.constant 0 : i32
    %c0_i32_1 = arith.constant 0 : i32
    return %arg1, %c0_i32, %c0_i32_0 : i32, i32, i32
  }
  func.func @transform_3(%arg0: i32, %arg1: i32) -> (i32, i32, i32, i32) {
    %c0_i32 = arith.constant 0 : i32
    %c0_i32_0 = arith.constant 0 : i32
    %c0_i32_1 = arith.constant 0 : i32
    %c0_i32_2 = arith.constant 0 : i32
    return %arg1, %c0_i32, %c0_i32_0, %c0_i32_1 : i32, i32, i32, i32
  }
  func.func @transform_4(%arg0: i32, %arg1: i32) -> (i32, i32, i32) {
    %c0_i32 = arith.constant 0 : i32
    %c0_i32_0 = arith.constant 0 : i32
    %c0_i32_1 = arith.constant 0 : i32
    return %arg1, %c0_i32, %c0_i32_0 : i32, i32, i32
  }
  func.func @transform_5(%arg0: i32, %arg1: i32) -> (i32, i32, i32) {
    %c0_i32 = arith.constant 0 : i32
    %c0_i32_0 = arith.constant 0 : i32
    %c0_i32_1 = arith.constant 0 : i32
    return %arg1, %c0_i32, %c0_i32_0 : i32, i32, i32
  }
  func.func @transform_6(%arg0: i32, %arg1: i32) -> (i32, i32, i32) {
    %c0_i32 = arith.constant 0 : i32
    %c0_i32_0 = arith.constant 0 : i32
    %c0_i32_1 = arith.constant 0 : i32
    return %arg1, %c0_i32, %c0_i32_0 : i32, i32, i32
  }
  func.func @transform_7(%arg0: i32, %arg1: i32) -> (i32, i32) {
    %c0_i32 = arith.constant 0 : i32
    %c0_i32_0 = arith.constant 0 : i32
    return %arg0, %c0_i32 : i32, i32
  }
}

</mosaic_0001>

<llo_original>
// kernel: mul.22
$region0: #{mul.22}
  %s0 = inlined_call_operand.vmem [shape: f32[4,4], index: 0, kind: input, shape index: {}]
  %s1 = inlined_call_operand.vmem [shape: f32[16], index: 1, kind: output, shape index: {}]
  $region1: #{mul.22} parent=0
    #allocation0 [shape = 'u8[4096]{0}', space=vmem, size = 0x1000, scoped, tag = 'scoped mem for output reshape']
    #allocation1 [shape = 'u8[4096]{0}', space=vmem, size = 0x1000, scoped, tag = 'scoped mem for input reshape']
    %s3 = sshllo.u32 0, 4
    %v4 = vld [vmem:[%s0] sm:%s3]
    %5 = vst [vmem:[#allocation1] sm:%s3] %v4
    %v6 = vld [vmem:[#allocation1] sm:$0x1]
    %vm7 = vcmask 31744
    %8 = vst.msk [vmem:[#allocation0] sm:$0x1] %vm7, %v6
    %s9 = scalar_lea.vmem [#allocation1], 3
    %v10 = vld [vmem:[%s9] sm:$0x1]
    %11 = vrot.lane.b32.xlu0 %v10, 12
    %v12 = vpop.permute.xlu0 %11
    %vm13 = vcmask 130144
    %14 = vst.msk [vmem:[#allocation0] sm:$0x1] %vm13, %v12
    %s15 = scalar_lea.vmem [#allocation1], 2
    %v16 = vld [vmem:[%s15] sm:$0x1]
    %17 = vrot.lane.b32.xlu0 %v16, 8
    %v18 = vpop.permute.xlu0 %17
    %vm19 = vcmask 97344
    %20 = vst.msk [vmem:[#allocation0] sm:$0x1] %vm19, %v18
    %s21 = scalar_lea.vmem [#allocation1], 1
    %v22 = vld [vmem:[%s21] sm:$0x1]
    %23 = vrot.lane.b32.xlu0 %v22, 4
    %v24 = vpop.permute.xlu0 %23
    %vm25 = vcmask 64544
    %26 = vst.msk [vmem:[#allocation0] sm:$0x1] %vm25, %v24
    %s28 = sshllo.u32 0, 1
    %v30 = vld [vmem:[#allocation0] sm:%s28]
    %s31 = sshllo.u32 0, 1
    %32 = vst [vmem:[%s1] sm:%s31] %v30

// kernel: simple_vit_forward.2
$region0: #{simple_vit_forward.2}
  #allocation0 [shape = 'u32[]', space=smem, size = 0x4, offset = 0x4, fixed_abs, tag = 'smem constant byte address 0x4 - core index']
  #allocation1 [shape = 'u32[144,128]{1,0:T(1,128)}', space=vmem, size = 0x12000, scoped, tag = 'internal scratch']
  %s0 = inlined_call_operand.vmem [shape: bf16[32,64], index: 0, kind: input, shape index: {}]
  %s1 = inlined_call_operand.vmem [shape: f32[2,64], index: 1, kind: input, shape index: {}]
  %s2 = inlined_call_operand.vmem [shape: bf16[64,128], index: 2, kind: input, shape index: {}]
  %s3 = inlined_call_operand.vmem [shape: f32[3,128], index: 3, kind: input, shape index: {}]
  %s4 = inlined_call_operand.vmem [shape: f32[16,128], index: 4, kind: input, shape index: {}]
  %s5 = inlined_call_operand.vmem [shape: f32[32,128], index: 5, kind: output, shape index: {}]
  %s6 = sld [smem:[#allocation0]]
  $region30: #{simple_vit_forward.2} parent=0
    _
  %s8 = ssub.s32 1, %s6
  %s9 = scalar_select 0, %s8, %s6
  // Predicated region
  $region2: #{simple_vit_forward.2} parent=0 // pred_check
    _
  $region3: #{simple_vit_forward.2} parent=0 // pred_check_branch
    %11 = sbr.rel (0) target = $region5
  $region4: #{simple_vit_forward.2} parent=0 // pred_region
    _
  $region5: #{simple_vit_forward.2} parent=0 // pred_fallthru
    _
  // Predicated region
  $region6: #{simple_vit_forward.2} parent=0 // pred_check
    _
  $region7: #{simple_vit_forward.2} parent=0 // pred_check_branch
    %13 = sbr.rel (0) target = $region9
  $region8: #{simple_vit_forward.2} parent=0 // pred_region
    _
  $region9: #{simple_vit_forward.2} parent=0 // pred_fallthru
    _
  // Predicated region
  $region10: #{simple_vit_forward.2} parent=0 // pred_check
    _
  $region11: #{simple_vit_forward.2} parent=0 // pred_check_branch
    %15 = sbr.rel (0) target = $region13
  $region12: #{simple_vit_forward.2} parent=0 // pred_region
    _
  $region13: #{simple_vit_forward.2} parent=0 // pred_fallthru
    _
  // Predicated region
  $region14: #{simple_vit_forward.2} parent=0 // pred_check
    _
  $region15: #{simple_vit_forward.2} parent=0 // pred_check_branch
    %17 = sbr.rel (0) target = $region17
  $region16: #{simple_vit_forward.2} parent=0 // pred_region
    _
  $region17: #{simple_vit_forward.2} parent=0 // pred_fallthru
    _
  // Predicated region
  $region18: #{simple_vit_forward.2} parent=0 // pred_check
    _
  $region19: #{simple_vit_forward.2} parent=0 // pred_check_branch
    %19 = sbr.rel (0) target = $region21
  $region20: #{simple_vit_forward.2} parent=0 // pred_region
    _
  $region21: #{simple_vit_forward.2} parent=0 // pred_fallthru
    _
  %v21 = vld [vmem:[%s0] sm:$0xf]
  %v22 = vld [vmem:[%s0 + $0x4] sm:$0xf]
  %v23 = vld [vmem:[%s0 + $0x8] sm:$0xf]
  %v24 = vld [vmem:[%s0 + $0xc] sm:$0xf]
  %v25 = vunpack.c.l.bf16 %v21
  %v26 = vunpack.c.l.bf16 %v22
  %v27 = vunpack.c.l.bf16 %v23
  %v28 = vunpack.c.l.bf16 %v24
  %v29 = vld [vmem:[%s1] sm:$0x1]
  %v30 = vld [vmem:[%s1 + $0x1] sm:$0x1]
  %vm31 = vcmask 523264
  %v32 = vsel %vm31, %v25, 0.0
  %33 = vadd.xlane.f32.xlu0 %v32
  %v34 = vpop.xlane.xlu0 %33
  %v35 = vsel %vm31, %v26, 0.0
  %36 = vadd.xlane.f32.xlu0 %v35
  %v37 = vpop.xlane.xlu0 %36
  %v38 = vsel %vm31, %v27, 0.0
  %39 = vadd.xlane.f32.xlu0 %v38
  %v40 = vpop.xlane.xlu0 %39
  %v41 = vsel %vm31, %v28, 0.0
  %42 = vadd.xlane.f32.xlu0 %v41
  %v43 = vpop.xlane.xlu0 %42
  %v44 = vrcp.pop 64.0
  %v45 = vmul.f32 %v34, %v44
  %v46 = vmul.f32 %v37, %v44
  %v47 = vmul.f32 %v40, %v44
  %v48 = vmul.f32 %v43, %v44
  %v49 = vsub.f32 %v25, %v45
  %v50 = vsub.f32 %v26, %v46
  %v51 = vsub.f32 %v27, %v47
  %v52 = vsub.f32 %v28, %v48
  %v53 = vmul.f32 %v49, %v49
  %v54 = vmul.f32 %v50, %v50
  %v55 = vmul.f32 %v51, %v51
  %v56 = vmul.f32 %v52, %v52
  %v57 = vsel %vm31, %v53, 0.0
  %58 = vadd.xlane.f32.xlu0 %v57
  %v59 = vpop.xlane.xlu0 %58
  %v60 = vsel %vm31, %v54, 0.0
  %61 = vadd.xlane.f32.xlu0 %v60
  %v62 = vpop.xlane.xlu0 %61
  %v63 = vsel %vm31, %v55, 0.0
  %64 = vadd.xlane.f32.xlu0 %v63
  %v65 = vpop.xlane.xlu0 %64
  %v66 = vsel %vm31, %v56, 0.0
  %67 = vadd.xlane.f32.xlu0 %v66
  %v68 = vpop.xlane.xlu0 %67
  %v69 = vmul.f32 %v59, %v44
  %v70 = vmul.f32 %v62, %v44
  %v71 = vmul.f32 %v65, %v44
  %v72 = vmul.f32 %v68, %v44
  %v73 = vadd.f32 %v69, 1e-05
  %v74 = vadd.f32 %v70, 1e-05
  %v75 = vadd.f32 %v71, 1e-05
  %v76 = vadd.f32 %v72, 1e-05
  %v77 = vrsqrt.pop %v73
  %v78 = vrsqrt.pop %v74
  %v79 = vrsqrt.pop %v75
  %v80 = vrsqrt.pop %v76
  %v81 = vmul.f32 %v49, %v77
  %v82 = vmul.f32 %v50, %v78
  %v83 = vmul.f32 %v51, %v79
  %v84 = vmul.f32 %v52, %v80
  %v85 = vlaneseq
  %v86 = vshrl.u32 %v85, 7
  %v87 = vsub.s32 0, %v86
  %v88 = vrot.slane %v29, %v87
  %v89 = vmul.f32 %v81, %v88
  %v90 = vmul.f32 %v82, %v88
  %v91 = vmul.f32 %v83, %v88
  %v92 = vmul.f32 %v84, %v88
  %v93 = vlaneseq
  %v94 = vshrl.u32 %v93, 7
  %v95 = vsub.s32 0, %v94
  %v96 = vrot.slane %v30, %v95
  %v97 = vadd.f32 %v89, %v96
  %v98 = vadd.f32 %v90, %v96
  %v99 = vadd.f32 %v91, %v96
  %v100 = vadd.f32 %v92, %v96
  %v101 = vpack.c.bf16 %v98, %v97
  %v102 = vpack.c.bf16 %v100, %v99
  %v103 = vld [vmem:[%s2] sm:$0xf]
  %v104 = vld [vmem:[%s2 + $0x4] sm:$0xf]
  %v105 = vld [vmem:[%s2 + $0x8] sm:$0xf]
  %v106 = vld [vmem:[%s2 + $0xc] sm:$0xf]
  %v107 = vld [vmem:[%s2 + $0x10] sm:$0xf]
  %v108 = vld [vmem:[%s2 + $0x14] sm:$0xf]
  %v109 = vld [vmem:[%s2 + $0x18] sm:$0xf]
  %v110 = vld [vmem:[%s2 + $0x1c] sm:$0xf]
  %v111 = vld [vmem:[%s3] sm:$0x1]
  %v112 = vlaneseq
  %v113 = vshrl.u32 %v112, 7
  %v114 = vsub.s32 0, %v113
  %v115 = vrot.slane %v111, %v114
  %v124 = vunpack.c.l.b16 %v103
  %v125 = vunpack.c.l.b16 %v104
  %v126 = vunpack.c.l.b16 %v105
  %v127 = vunpack.c.l.b16 %v106
  %v128 = vunpack.c.l.b16 %v107
  %v129 = vunpack.c.l.b16 %v108
  %v130 = vunpack.c.l.b16 %v109
  %v131 = vunpack.c.l.b16 %v110
  %v132 = vpack.c.b16 %v125, %v124
  %v133 = vpack.c.b16 %v127, %v126
  %v134 = vpack.c.b16 %v129, %v128
  %v135 = vpack.c.b16 %v131, %v130
  %v141 = vsel %vm31, %v101, 0
  %v144 = vsel %vm31, %v102, 0
  %146 = vmatprep.subr.bf16.mxu0 0
  %147 = vmatpush1.bf16.msra.mxu0 %v132
  %148 = vmatprep.subr.bf16.mxu0 0
  %149 = vmatpush1.bf16.msra.mxu0 %v133
  %150 = vmatprep.subr.bf16.mxu0 0
  %151 = vmatpush1.bf16.msra.mxu0 %v134
  %152 = vmatprep.subr.bf16.mxu0 0
  %153 = vmatpush1.bf16.msra.mxu0 %v135
  %154 = vmatprep.subr.bf16.mxu0 0
  %155 = vmatpush1.bf16.msra.mxu0 0
  %156 = vmatprep.subr.bf16.mxu0 0
  %157 = vmatpush1.bf16.msra.mxu0 0
  %158 = vmatprep.subr.bf16.mxu0 0
  %159 = vmatpush1.bf16.msra.mxu0 0
  %160 = vmatprep.subr.bf16.mxu0 0
  %161 = vmatpush1.bf16.msra.mxu0 0
  %162 = vmatprep.subr.bf16.mxu0 0
  %163 = vmatpush1.bf16.msra.mxu0 0
  %164 = vmatprep.subr.bf16.mxu0 0
  %165 = vmatpush1.bf16.msra.mxu0 0
  %166 = vmatprep.subr.bf16.mxu0 0
  %167 = vmatpush1.bf16.msra.mxu0 0
  %168 = vmatprep.subr.bf16.mxu0 0
  %169 = vmatpush1.bf16.msra.mxu0 0
  %170 = vmatprep.subr.bf16.mxu0 0
  %171 = vmatpush1.bf16.msra.mxu0 0
  %172 = vmatprep.subr.bf16.mxu0 0
  %173 = vmatpush1.bf16.msra.mxu0 0
  %174 = vmatprep.subr.bf16.mxu0 0
  %175 = vmatpush1.bf16.msra.mxu0 0
  %176 = vmatprep.subr.bf16.mxu0 0
  %177 = vmatpush1.bf16.msra.mxu0 0
  %178 = vmatprep.mubr.bf16.mxu0 0
  %179 = vmatmul.mubr.bf16.gmra.mrb[0].mxu0 %v141
  %v180 = vpop.f32.mrb[0].mxu0
  %v181 = vadd.f32 %v115, %v180
  %v182 = vpop.f32.mrb[0].mxu0
  %v183 = vpop.f32.mrb[0].mxu0
  %v184 = vadd.f32 %v115, %v183
  %v185 = vpop.f32.mrb[0].mxu0
  %186 = vmatprep.mubr.bf16.mxu0 0
  %187 = vmatmul.mubr.bf16.gmra.mrb[0].mxu0 %v144
  %v188 = vpop.f32.mrb[0].mxu0
  %v189 = vadd.f32 %v115, %v188
  %v190 = vpop.f32.mrb[0].mxu0
  %v191 = vpop.f32.mrb[0].mxu0
  %v192 = vadd.f32 %v115, %v191
  %v193 = vpop.f32.mrb[0].mxu0
  %194 = vdwg.mxu0
  %v195 = vld [vmem:[%s3 + $0x1] sm:$0x1]
  %v196 = vld [vmem:[%s3 + $0x2] sm:$0x1]
  %197 = vadd.xlane.f32.xlu0 %v181
  %v198 = vpop.xlane.xlu0 %197
  %199 = vadd.xlane.f32.xlu0 %v184
  %v200 = vpop.xlane.xlu0 %199
  %201 = vadd.xlane.f32.xlu0 %v189
  %v202 = vpop.xlane.xlu0 %201
  %203 = vadd.xlane.f32.xlu0 %v192
  %v204 = vpop.xlane.xlu0 %203
  %v205 = vrcp.pop 128.0
  %v206 = vmul.f32 %v198, %v205
  %v207 = vmul.f32 %v200, %v205
  %v208 = vmul.f32 %v202, %v205
  %v209 = vmul.f32 %v204, %v205
  %v210 = vsub.f32 %v181, %v206
  %v211 = vsub.f32 %v184, %v207
  %v212 = vsub.f32 %v189, %v208
  %v213 = vsub.f32 %v192, %v209
  %v214 = vmul.f32 %v210, %v210
  %v215 = vmul.f32 %v211, %v211
  %v216 = vmul.f32 %v212, %v212
  %v217 = vmul.f32 %v213, %v213
  %218 = vadd.xlane.f32.xlu0 %v214
  %v219 = vpop.xlane.xlu0 %218
  %220 = vadd.xlane.f32.xlu0 %v215
  %v221 = vpop.xlane.xlu0 %220
  %222 = vadd.xlane.f32.xlu0 %v216
  %v223 = vpop.xlane.xlu0 %222
  %224 = vadd.xlane.f32.xlu0 %v217
  %v225 = vpop.xlane.xlu0 %224
  %v226 = vmul.f32 %v219, %v205
  %v227 = vmul.f32 %v221, %v205
  %v228 = vmul.f32 %v223, %v205
  %v229 = vmul.f32 %v225, %v205
  %v230 = vadd.f32 %v226, 1e-05
  %v231 = vadd.f32 %v227, 1e-05
  %v232 = vadd.f32 %v228, 1e-05
  %v233 = vadd.f32 %v229, 1e-05
  %v234 = vrsqrt.pop %v230
  %v235 = vrsqrt.pop %v231
  %v236 = vrsqrt.pop %v232
  %v237 = vrsqrt.pop %v233
  %v238 = vmul.f32 %v210, %v234
  %v239 = vmul.f32 %v211, %v235
  %v240 = vmul.f32 %v212, %v236
  %v241 = vmul.f32 %v213, %v237
  %v242 = vlaneseq
  %v243 = vshrl.u32 %v242, 7
  %v244 = vsub.s32 0, %v243
  %v245 = vrot.slane %v195, %v244
  %v246 = vmul.f32 %v238, %v245
  %v247 = vmul.f32 %v239, %v245
  %v248 = vmul.f32 %v240, %v245
  %v249 = vmul.f32 %v241, %v245
  %v250 = vlaneseq
  %v251 = vshrl.u32 %v250, 7
  %v252 = vsub.s32 0, %v251
  %v253 = vrot.slane %v196, %v252
  %v254 = vadd.f32 %v246, %v253
  %v255 = vadd.f32 %v247, %v253
  %v256 = vadd.f32 %v248, %v253
  %v257 = vadd.f32 %v249, %v253
  %v258 = vld [vmem:[%s4] sm:$0xff]
  %v259 = vld [vmem:[%s4 + $0x8] sm:$0xff]
  %v260 = vadd.f32 %v254, %v258
  %v261 = vadd.f32 %v255, %v259
  %v262 = vadd.f32 %v256, %v258
  %v263 = vadd.f32 %v257, %v259
  %264 = vst [vmem:[%s5] sm:$0xff] %v260
  %265 = vst [vmem:[%s5 + $0x8] sm:$0xff] %v261
  %266 = vst [vmem:[%s5 + $0x10] sm:$0xff] %v262
  %267 = vst [vmem:[%s5 + $0x18] sm:$0xff] %v263
  // Predicated region
  $region22: #{simple_vit_forward.2} parent=0 // pred_check
    _
  $region23: #{simple_vit_forward.2} parent=0 // pred_check_branch
    %269 = sbr.rel (0) target = $region25
  $region24: #{simple_vit_forward.2} parent=0 // pred_region
    _
  $region25: #{simple_vit_forward.2} parent=0 // pred_fallthru
    _
  // Predicated region
  $region26: #{simple_vit_forward.2} parent=0 // pred_check
    _
  $region27: #{simple_vit_forward.2} parent=0 // pred_check_branch
    %271 = sbr.rel (0) target = $region29
  $region28: #{simple_vit_forward.2} parent=0 // pred_region
    _
  $region29: #{simple_vit_forward.2} parent=0 // pred_fallthru
    _

// kernel: simple_vit_forward.3
$region0: #{simple_vit_forward.3}
  #allocation0 [shape = 'u32[]', space=smem, size = 0x4, offset = 0x4, fixed_abs, tag = 'smem constant byte address 0x4 - core index']
  #allocation1 [shape = 'u32[144,128]{1,0:T(1,128)}', space=vmem, size = 0x12000, scoped, tag = 'internal scratch']
  #allocation2 [shape = 's32[1]{0}', space=sflag, size = 0x4, scoped, tag = 'scratch operand']
  #allocation5 [shape = 's32[]', space=sflag, size = 0x4, offset = 0, fixed_abs, tag = 'sflag constant byte address 0x0 - dummy sync flag']
  %s0 = inlined_call_operand.vmem [shape: f32[2,16,128], index: 0, kind: input, shape index: {}]
  %s1 = inlined_call_operand.vmem [shape: f32[2,6,128], index: 1, kind: input, shape index: {}]
  %s2 = inlined_call_operand.vmem [shape: f32[2,1,256], index: 2, kind: input, shape index: {}]
  %s3 = inlined_call_operand.vmem [shape: bf16[2,12,128,32], index: 3, kind: input, shape index: {}]
  %s4 = inlined_call_operand.vmem [shape: bf16[2,128,128], index: 4, kind: input, shape index: {}]
  %s5 = inlined_call_operand.vmem [shape: bf16[2,128,256], index: 5, kind: input, shape index: {}]
  %s6 = inlined_call_operand.vmem [shape: bf16[2,256,128], index: 6, kind: input, shape index: {}]
  %s7 = inlined_call_operand.hbm [shape: f32[32,128], index: 7, kind: output, shape index: {}]
  %s8 = sld [smem:[#allocation0]]
  $region95: #{simple_vit_forward.3} parent=0
    _
  %s10 = ssub.s32 1, %s8
  %s11 = scalar_select 0, %s10, %s8
  $region1: #{simple_vit_forward.3} parent=0
    #allocation3 [shape = 'u8[16384]{0}', space=vmem, size = 0x4000, scoped, tag = 'output window, operand 0']
    #allocation4 [shape = 's32[2]{0}', space=sflag, size = 0x8, scoped, tag = 'scoped memory for simple_vit_forward.3']
    %12 = vsyncpa [#allocation4], 0
    %s13 = scalar_lea.sflag [#allocation4], 1
    %14 = vsyncpa %s13, 0
    loop: start=0, step=1, limit=6
    $region2: #{simple_vit_forward.3} parent=1 // loop_pre_header
      _
    $region3: #{simple_vit_forward.3} parent=1 // loop_header
      %s16 = sphi 0, %s20
      %p17 = scmp.ge.s32.totalorder %s16, 6
      %s23 = sphi 0, %s35
      %s24 = sphi 0, %s31
      %s25 = sphi 0, %s23
      %s26 = sphi 0, %s24
      %s27 = sphi 0, %s25
      %s28 = sphi 0, %s26
      %s38 = sphi 0, %s40
      %s41 = sphi 0, %s38
      %s42 = sphi 0, %s41
      %s58 = sphi 0, %s42
      %s64 = sphi 0, %s66
      %s67 = sphi 0, %s64
      %s68 = sphi 0, %s67
      %s84 = sphi 0, %s68
      %s90 = sphi 0, %s92
      %s93 = sphi 0, %s90
      %s94 = sphi 0, %s93
      %s110 = sphi 0, %s94
      %s116 = sphi 0, %s118
      %s119 = sphi 0, %s116
      %s120 = sphi 0, %s119
      %s136 = sphi 0, %s120
      %s142 = sphi 0, %s144
      %s145 = sphi 0, %s142
      %s146 = sphi 0, %s145
      %s162 = sphi 0, %s146
      %s168 = sphi 0, %s170
      %s171 = sphi 0, %s168
      %s172 = sphi 0, %s171
      %s188 = sphi 0, %s172
      %s194 = sphi 0, %s196
      %s197 = sphi 0, %s194
      %s198 = sphi 0, %s197
      %s214 = sphi 0, %s198
    $region4: #{simple_vit_forward.3} parent=1 // loop_header_branch
      %19 = sbr.rel (%p17) target = $region8
    $region5: #{simple_vit_forward.3} parent=1 // loop_body
      %s21 = ssub.s32 %s16, 1
      %s22 = ssub.s32 %s16, 2
      %s29 = sadd.s32 1, %s24
      %p30 = scmp.ge.s32.totalorder %s29, 2
      %s31 = scalar_select %p30, 0, %s29
      %s32 = sadd.s32 1, %s23
      %s33 = scalar_select %p30, %s32, %s23
      %p34 = scmp.ge.s32.totalorder %s33, 2
      %s35 = scalar_select %p34, 0, %s33
      %s36 = ssub.s32 %s24, %s31
      %p37 = scmp.eq.s32.totalorder %s36, 0
      %s39 = sadd.s32 %s38, 1
      %s40 = scalar_select %p37, %s38, %s39
      %p43 = pneg %p37
      %p44 = scmp.eq.s32.totalorder %s16, 3
      %p45 = por %p43, %p44
      %p46 = scmp.ne.s32.totalorder %s38, %s41
      %p47 = scmp.eq.s32.totalorder %s16, 0
      %p48 = por %p46, %p47
      %p49 = scmp.ne.s32.totalorder %s38, %s41
      %p50 = scmp.eq.s32.totalorder %s21, 3
      %p51 = por %p49, %p50
      %p52 = scmp.ne.s32.totalorder %s41, %s42
      %p53 = scmp.eq.s32.totalorder %s21, 0
      %p54 = por %p52, %p53
      %p55 = scmp.ne.s32.totalorder %s41, %s42
      %p56 = scmp.eq.s32.totalorder %s22, 3
      %p57 = por %p55, %p56
      %p59 = scmp.ne.s32.totalorder %s42, %s58
      %p60 = scmp.eq.s32.totalorder %s22, 0
      %p61 = por %p59, %p60
      %s62 = ssub.s32 %s24, %s31
      %p63 = scmp.eq.s32.totalorder %s62, 0
      %s65 = sadd.s32 %s64, 1
      %s66 = scalar_select %p63, %s64, %s65
      %p69 = pneg %p63
      %p70 = scmp.eq.s32.totalorder %s16, 3
      %p71 = por %p69, %p70
      %p72 = scmp.ne.s32.totalorder %s64, %s67
      %p73 = scmp.eq.s32.totalorder %s16, 0
      %p74 = por %p72, %p73
      %p75 = scmp.ne.s32.totalorder %s64, %s67
      %p76 = scmp.eq.s32.totalorder %s21, 3
      %p77 = por %p75, %p76
      %p78 = scmp.ne.s32.totalorder %s67, %s68
      %p79 = scmp.eq.s32.totalorder %s21, 0
      %p80 = por %p78, %p79
      %p81 = scmp.ne.s32.totalorder %s67, %s68
      %p82 = scmp.eq.s32.totalorder %s22, 3
      %p83 = por %p81, %p82
      %p85 = scmp.ne.s32.totalorder %s68, %s84
      %p86 = scmp.eq.s32.totalorder %s22, 0
      %p87 = por %p85, %p86
      %s88 = ssub.s32 %s24, %s31
      %p89 = scmp.eq.s32.totalorder %s88, 0
      %s91 = sadd.s32 %s90, 1
      %s92 = scalar_select %p89, %s90, %s91
      %p95 = pneg %p89
      %p96 = scmp.eq.s32.totalorder %s16, 3
      %p97 = por %p95, %p96
      %p98 = scmp.ne.s32.totalorder %s90, %s93
      %p99 = scmp.eq.s32.totalorder %s16, 0
      %p100 = por %p98, %p99
      %p101 = scmp.ne.s32.totalorder %s90, %s93
      %p102 = scmp.eq.s32.totalorder %s21, 3
      %p103 = por %p101, %p102
      %p104 = scmp.ne.s32.totalorder %s93, %s94
      %p105 = scmp.eq.s32.totalorder %s21, 0
      %p106 = por %p104, %p105
      %p107 = scmp.ne.s32.totalorder %s93, %s94
      %p108 = scmp.eq.s32.totalorder %s22, 3
      %p109 = por %p107, %p108
      %p111 = scmp.ne.s32.totalorder %s94, %s110
      %p112 = scmp.eq.s32.totalorder %s22, 0
      %p113 = por %p111, %p112
      %s114 = ssub.s32 %s24, %s31
      %p115 = scmp.eq.s32.totalorder %s114, 0
      %s117 = sadd.s32 %s116, 1
      %s118 = scalar_select %p115, %s116, %s117
      %p121 = pneg %p115
      %p122 = scmp.eq.s32.totalorder %s16, 3
      %p123 = por %p121, %p122
      %p124 = scmp.ne.s32.totalorder %s116, %s119
      %p125 = scmp.eq.s32.totalorder %s16, 0
      %p126 = por %p124, %p125
      %p127 = scmp.ne.s32.totalorder %s116, %s119
      %p128 = scmp.eq.s32.totalorder %s21, 3
      %p129 = por %p127, %p128
      %p130 = scmp.ne.s32.totalorder %s119, %s120
      %p131 = scmp.eq.s32.totalorder %s21, 0
      %p132 = por %p130, %p131
      %p133 = scmp.ne.s32.totalorder %s119, %s120
      %p134 = scmp.eq.s32.totalorder %s22, 3
      %p135 = por %p133, %p134
      %p137 = scmp.ne.s32.totalorder %s120, %s136
      %p138 = scmp.eq.s32.totalorder %s22, 0
      %p139 = por %p137, %p138
      %s140 = ssub.s32 %s24, %s31
      %p141 = scmp.eq.s32.totalorder %s140, 0
      %s143 = sadd.s32 %s142, 1
      %s144 = scalar_select %p141, %s142, %s143
      %p147 = pneg %p141
      %p148 = scmp.eq.s32.totalorder %s16, 3
      %p149 = por %p147, %p148
      %p150 = scmp.ne.s32.totalorder %s142, %s145
      %p151 = scmp.eq.s32.totalorder %s16, 0
      %p152 = por %p150, %p151
      %p153 = scmp.ne.s32.totalorder %s142, %s145
      %p154 = scmp.eq.s32.totalorder %s21, 3
      %p155 = por %p153, %p154
      %p156 = scmp.ne.s32.totalorder %s145, %s146
      %p157 = scmp.eq.s32.totalorder %s21, 0
      %p158 = por %p156, %p157
      %p159 = scmp.ne.s32.totalorder %s145, %s146
      %p160 = scmp.eq.s32.totalorder %s22, 3
      %p161 = por %p159, %p160
      %p163 = scmp.ne.s32.totalorder %s146, %s162
      %p164 = scmp.eq.s32.totalorder %s22, 0
      %p165 = por %p163, %p164
      %s166 = ssub.s32 %s24, %s31
      %p167 = scmp.eq.s32.totalorder %s166, 0
      %s169 = sadd.s32 %s168, 1
      %s170 = scalar_select %p167, %s168, %s169
      %p173 = pneg %p167
      %p174 = scmp.eq.s32.totalorder %s16, 3
      %p175 = por %p173, %p174
      %p176 = scmp.ne.s32.totalorder %s168, %s171
      %p177 = scmp.eq.s32.totalorder %s16, 0
      %p178 = por %p176, %p177
      %p179 = scmp.ne.s32.totalorder %s168, %s171
      %p180 = scmp.eq.s32.totalorder %s21, 3
      %p181 = por %p179, %p180
      %p182 = scmp.ne.s32.totalorder %s171, %s172
      %p183 = scmp.eq.s32.totalorder %s21, 0
      %p184 = por %p182, %p183
      %p185 = scmp.ne.s32.totalorder %s171, %s172
      %p186 = scmp.eq.s32.totalorder %s22, 3
      %p187 = por %p185, %p186
      %p189 = scmp.ne.s32.totalorder %s172, %s188
      %p190 = scmp.eq.s32.totalorder %s22, 0
      %p191 = por %p189, %p190
      %s192 = ssub.s32 %s23, %s35
      %p193 = scmp.eq.s32.totalorder %s192, 0
      %s195 = sadd.s32 %s194, 1
      %s196 = scalar_select %p193, %s194, %s195
      %p199 = pneg %p193
      %p200 = scmp.eq.s32.totalorder %s16, 3
      %p201 = por %p199, %p200
      %p202 = scmp.ne.s32.totalorder %s194, %s197
      %p203 = scmp.eq.s32.totalorder %s16, 0
      %p204 = por %p202, %p203
      %p205 = scmp.ne.s32.totalorder %s194, %s197
      %p206 = scmp.eq.s32.totalorder %s21, 3
      %p207 = por %p205, %p206
      %p208 = scmp.ne.s32.totalorder %s197, %s198
      %p209 = scmp.eq.s32.totalorder %s21, 0
      %p210 = por %p208, %p209
      %p211 = scmp.ne.s32.totalorder %s197, %s198
      %p212 = scmp.eq.s32.totalorder %s22, 3
      %p213 = por %p211, %p212
      %p215 = scmp.ne.s32.totalorder %s198, %s214
      %p216 = scmp.eq.s32.totalorder %s22, 0
      %p217 = por %p215, %p216
      %p218 = scmp.le.s32.totalorder 1, %s16
      %p219 = scmp.lt.s32.totalorder %s16, 5
      %p220 = pnand %p218, %p219
      %p221 = pneg %p220
      // Predicated region
      $region9: #{simple_vit_forward.3} parent=5 // pred_check
        _
      $region10: #{simple_vit_forward.3} parent=5 // pred_check_branch
        %223 = sbr.rel (%p220) target = $region12
      $region11: #{simple_vit_forward.3} parent=5 // pred_region
        %s224 = ssub.s32 %s16, 1
      $region12: #{simple_vit_forward.3} parent=5 // pred_fallthru
        _
      %p225 = scmp.lt.s32.totalorder %s16, 4
      // Predicated region
      $region13: #{simple_vit_forward.3} parent=5 // pred_check
        %p226 = pneg %p225
      $region14: #{simple_vit_forward.3} parent=5 // pred_check_branch
        %228 = sbr.rel (%p226) target = $region16
      $region15: #{simple_vit_forward.3} parent=5 // pred_region
        // Predicated region
        $region17: #{simple_vit_forward.3} parent=15 // pred_check
          %p229 = pneg %p48
        $region18: #{simple_vit_forward.3} parent=15 // pred_check_branch
          %231 = sbr.rel (%p229) target = $region20
        $region19: #{simple_vit_forward.3} parent=15 // pred_region
          %p232 = scmp.lt.s32.totalorder %s24, 1
          %s233 = scalar_select %p232, %s24, 1
          %s234 = smul.addr %s233, 8
          %s235 = scalar_lea.vmem %s1, %s234
        $region20: #{simple_vit_forward.3} parent=15 // pred_fallthru
          _
        // Predicated region
        $region21: #{simple_vit_forward.3} parent=15 // pred_check
          %p236 = pneg %p74
        $region22: #{simple_vit_forward.3} parent=15 // pred_check_branch
          %238 = sbr.rel (%p236) target = $region24
        $region23: #{simple_vit_forward.3} parent=15 // pred_region
          %p239 = scmp.lt.s32.totalorder %s24, 1
          %s240 = scalar_select %p239, %s24, 1
          %s241 = smul.addr %s240, 2
          %s242 = scalar_lea.vmem %s2, %s241
        $region24: #{simple_vit_forward.3} parent=15 // pred_fallthru
          _
        // Predicated region
        $region25: #{simple_vit_forward.3} parent=15 // pred_check
          %p243 = pneg %p100
        $region26: #{simple_vit_forward.3} parent=15 // pred_check_branch
          %245 = sbr.rel (%p243) target = $region28
        $region27: #{simple_vit_forward.3} parent=15 // pred_region
          %p246 = scmp.lt.s32.totalorder %s24, 1
          %s247 = scalar_select %p246, %s24, 1
          %s248 = smul.addr %s247, 192
          %s249 = smul.addr %s248, 4
          %s250 = scalar_lea.vmem %s3, %s249
        $region28: #{simple_vit_forward.3} parent=15 // pred_fallthru
          _
        // Predicated region
        $region29: #{simple_vit_forward.3} parent=15 // pred_check
          %p251 = pneg %p126
        $region30: #{simple_vit_forward.3} parent=15 // pred_check_branch
          %253 = sbr.rel (%p251) target = $region32
        $region31: #{simple_vit_forward.3} parent=15 // pred_region
          %p254 = scmp.lt.s32.totalorder %s24, 1
          %s255 = scalar_select %p254, %s24, 1
          %s256 = smul.addr %s255, 16
          %s257 = smul.addr %s256, 4
          %s258 = scalar_lea.vmem %s4, %s257
        $region32: #{simple_vit_forward.3} parent=15 // pred_fallthru
          _
        // Predicated region
        $region33: #{simple_vit_forward.3} parent=15 // pred_check
          %p259 = pneg %p152
        $region34: #{simple_vit_forward.3} parent=15 // pred_check_branch
          %261 = sbr.rel (%p259) target = $region36
        $region35: #{simple_vit_forward.3} parent=15 // pred_region
          %p262 = scmp.lt.s32.totalorder %s24, 1
          %s263 = scalar_select %p262, %s24, 1
          %s264 = smul.addr %s263, 32
          %s265 = smul.addr %s264, 4
          %s266 = scalar_lea.vmem %s5, %s265
        $region36: #{simple_vit_forward.3} parent=15 // pred_fallthru
          _
        // Predicated region
        $region37: #{simple_vit_forward.3} parent=15 // pred_check
          %p267 = pneg %p178
        $region38: #{simple_vit_forward.3} parent=15 // pred_check_branch
          %269 = sbr.rel (%p267) target = $region40
        $region39: #{simple_vit_forward.3} parent=15 // pred_region
          %p270 = scmp.lt.s32.totalorder %s24, 1
          %s271 = scalar_select %p270, %s24, 1
          %s272 = smul.addr %s271, 32
          %s273 = smul.addr %s272, 4
          %s274 = scalar_lea.vmem %s6, %s273
        $region40: #{simple_vit_forward.3} parent=15 // pred_fallthru
          _
      $region16: #{simple_vit_forward.3} parent=5 // pred_fallthru
        _
      %p275 = scmp.le.s32.totalorder 1, %s16
      %p276 = scmp.lt.s32.totalorder %s16, 5
      %p277 = pnand %p275, %p276
      %p278 = pneg %p277
      // Predicated region
      $region41: #{simple_vit_forward.3} parent=5 // pred_check
        _
      $region42: #{simple_vit_forward.3} parent=5 // pred_check_branch
        %280 = sbr.rel (%p277) target = $region44
      $region43: #{simple_vit_forward.3} parent=5 // pred_region
        %s281 = ssub.s32 %s16, 1
        %p282 = scmp.lt.s32.totalorder %s26, 1
        %s283 = scalar_select %p282, %s26, 1
        %s284 = smul.addr %s283, 8
        %s285 = scalar_lea.vmem %s1, %s284
        %p286 = pneg %p54
        %p287 = pneg %p51
        %p288 = scmp.lt.s32.totalorder %s26, 1
        %s289 = scalar_select %p288, %s26, 1
        %s290 = smul.addr %s289, 2
        %s291 = scalar_lea.vmem %s2, %s290
        %p292 = pneg %p80
        %p293 = pneg %p77
        %p294 = scmp.lt.s32.totalorder %s26, 1
        %s295 = scalar_select %p294, %s26, 1
        %s296 = smul.addr %s295, 192
        %s297 = smul.addr %s296, 4
        %s298 = scalar_lea.vmem %s3, %s297
        %p299 = pneg %p106
        %p300 = pneg %p103
        %p301 = scmp.lt.s32.totalorder %s26, 1
        %s302 = scalar_select %p301, %s26, 1
        %s303 = smul.addr %s302, 16
        %s304 = smul.addr %s303, 4
        %s305 = scalar_lea.vmem %s4, %s304
        %p306 = pneg %p132
        %p307 = pneg %p129
        %p308 = scmp.lt.s32.totalorder %s26, 1
        %s309 = scalar_select %p308, %s26, 1
        %s310 = smul.addr %s309, 32
        %s311 = smul.addr %s310, 4
        %s312 = scalar_lea.vmem %s5, %s311
        %p313 = pneg %p158
        %p314 = pneg %p155
        %p315 = scmp.lt.s32.totalorder %s26, 1
        %s316 = scalar_select %p315, %s26, 1
        %s317 = smul.addr %s316, 32
        %s318 = smul.addr %s317, 4
        %s319 = scalar_lea.vmem %s6, %s318
        %p320 = pneg %p184
        %p321 = pneg %p181
        %p322 = pneg %p210
        %p323 = pneg %p207
        %s324 = sand.u32 %s197, 1
        %s325 = scalar_lea.sflag [#allocation4], %s324
        %s326 = sand.u32 %s197, 1
        %s327 = smul.addr %s326, 16
        %s328 = scalar_lea.vmem [#allocation3], %s327
        %p329 = scmp.lt.s32.totalorder %s26, 1
        %s330 = scalar_select %p329, %s26, 1
        %s331 = smul.addr %s330, 8
        %s332 = scalar_lea.vmem %s1, %s331
        %p333 = scmp.lt.s32.totalorder %s26, 1
        %s334 = scalar_select %p333, %s26, 1
        %s335 = smul.addr %s334, 2
        %s336 = scalar_lea.vmem %s2, %s335
        %p337 = scmp.lt.s32.totalorder %s26, 1
        %s338 = scalar_select %p337, %s26, 1
        %s339 = smul.addr %s338, 192
        %s340 = smul.addr %s339, 4
        %s341 = scalar_lea.vmem %s3, %s340
        %p342 = scmp.lt.s32.totalorder %s26, 1
        %s343 = scalar_select %p342, %s26, 1
        %s344 = smul.addr %s343, 16
        %s345 = smul.addr %s344, 4
        %s346 = scalar_lea.vmem %s4, %s345
        %p347 = scmp.lt.s32.totalorder %s26, 1
        %s348 = scalar_select %p347, %s26, 1
        %s349 = smul.addr %s348, 32
        %s350 = smul.addr %s349, 4
        %s351 = scalar_lea.vmem %s5, %s350
        %p352 = scmp.lt.s32.totalorder %s26, 1
        %s353 = scalar_select %p352, %s26, 1
        %s354 = smul.addr %s353, 32
        %s355 = smul.addr %s354, 4
        %s356 = scalar_lea.vmem %s6, %s355
        %s357 = smul.u32 2, %s25
        %p359 = scmp.eq.s32.totalorder %s26, 0
        // Predicated region
        $region45: #{simple_vit_forward.3} parent=43 // pred_check
          %p360 = pneg %p359
        $region46: #{simple_vit_forward.3} parent=43 // pred_check_branch
          %362 = sbr.rel (%p360) target = $region48
        $region47: #{simple_vit_forward.3} parent=43 // pred_region
          %s363 = smul.u32 %s25, 16
          %s364 = scalar_lea.vmem %s0, %s363
          %p366 = scmp.lt.u32.totalorder 16, 8
          %p367 = pneg %p366
          // Predicated region
          $region49: #{simple_vit_forward.3} parent=47 // pred_check
            _
          $region50: #{simple_vit_forward.3} parent=47 // pred_check_branch
            %369 = sbr.rel (%p366) target = $region52
          $region51: #{simple_vit_forward.3} parent=47 // pred_region
            %s384 = sand.u32 16, 7
            %p385 = scmp.eq.s32.totalorder %s384, 0
            // Predicated region
            $region64: #{simple_vit_forward.3} parent=51 // pred_check
              %p386 = pneg %p385
            $region65: #{simple_vit_forward.3} parent=51 // pred_check_branch
              %388 = sbr.rel (%p386) target = $region67
            $region66: #{simple_vit_forward.3} parent=51 // pred_region
              loop: start=0, step=1, limit=1
              $region68: #{simple_vit_forward.3} parent=66 // loop_pre_header
                _
              $region69: #{simple_vit_forward.3} parent=66 // loop_header
                %s390 = sphi 0, %s394
                %p391 = scmp.ge.s32.totalorder %s390, 1
                %s395 = sphi %s364, %s364
                %s396 = sphi %s328, %s328
              $region70: #{simple_vit_forward.3} parent=66 // loop_header_branch
                %393 = sbr.rel (%p391) target = $region74
              $region71: #{simple_vit_forward.3} parent=66 // loop_body
                %v397 = vld [vmem:[%s395] sm:$0xff]
                %398 = vst [vmem:[%s396] sm:$0xff] %v397
                %v399 = vld [vmem:[%s395 + $0x8] sm:$0xff]
                %400 = vst [vmem:[%s396 + $0x8] sm:$0xff] %v399
              $region72: #{simple_vit_forward.3} parent=66 // loop_footer
                %s394 = sadd.s32 1, %s390
              $region73: #{simple_vit_forward.3} parent=66 // loop_footer_branch
                %389 = sbr.rel target = $region69
              $region74: #{simple_vit_forward.3} parent=66 // loop_exit
                _
            $region67: #{simple_vit_forward.3} parent=51 // pred_fallthru
              _
            %p401 = pneg %p385
            // Predicated region
            $region75: #{simple_vit_forward.3} parent=51 // pred_check
              _
            $region76: #{simple_vit_forward.3} parent=51 // pred_check_branch
              %403 = sbr.rel (%p385) target = $region78
            $region77: #{simple_vit_forward.3} parent=51 // pred_region
              %s404 = sand.u32 16, 7
            $region78: #{simple_vit_forward.3} parent=51 // pred_fallthru
              _
          $region52: #{simple_vit_forward.3} parent=47 // pred_fallthru
            _
          // Predicated region
          $region53: #{simple_vit_forward.3} parent=47 // pred_check
            %p370 = pneg %p366
          $region54: #{simple_vit_forward.3} parent=47 // pred_check_branch
            %372 = sbr.rel (%p370) target = $region56
          $region55: #{simple_vit_forward.3} parent=47 // pred_region
            %s373 = sshllo.u32 0, 16
            loop: start=0, step=1, limit=1
            $region57: #{simple_vit_forward.3} parent=55 // loop_pre_header
              _
            $region58: #{simple_vit_forward.3} parent=55 // loop_header
              %s375 = sphi 0, %s379
              %p376 = scmp.ge.s32.totalorder %s375, 1
              %s380 = sphi %s364, %s364
              %s381 = sphi %s328, %s328
            $region59: #{simple_vit_forward.3} parent=55 // loop_header_branch
              %378 = sbr.rel (%p376) target = $region63
            $region60: #{simple_vit_forward.3} parent=55 // loop_body
              %v382 = vld [vmem:[%s380] sm:%s373]
              %383 = vst [vmem:[%s381] sm:%s373] %v382
            $region61: #{simple_vit_forward.3} parent=55 // loop_footer
              %s379 = sadd.s32 1, %s375
            $region62: #{simple_vit_forward.3} parent=55 // loop_footer_branch
              %374 = sbr.rel target = $region58
            $region63: #{simple_vit_forward.3} parent=55 // loop_exit
              _
          $region56: #{simple_vit_forward.3} parent=47 // pred_fallthru
            _
          // Predicated region
          $region79: #{simple_vit_forward.3} parent=47 // pred_check
            _
          $region80: #{simple_vit_forward.3} parent=47 // pred_check_branch
            %407 = sbr.rel (0) target = $region82
          $region81: #{simple_vit_forward.3} parent=47 // pred_region
            %408 = vsyncadd [#allocation2], 256
          $region82: #{simple_vit_forward.3} parent=47 // pred_fallthru
            _
          %s409 = smul.u32 16, 1
          %s410 = sshll.u32 %s409, 4
          %411 = dma.done [#allocation2], %s410
        $region48: #{simple_vit_forward.3} parent=43 // pred_fallthru
          _
        %v412 = vld [vmem:[%s328] sm:$0xff]
        %v413 = vld [vmem:[%s328 + $0x8] sm:$0xff]
        %v414 = vld [vmem:[%s332] sm:$0x1]
        %v415 = vld [vmem:[%s332 + $0x1] sm:$0x1]
        %v416 = vld [vmem:[%s332 + $0x2] sm:$0x1]
        %v417 = vld [vmem:[%s332 + $0x3] sm:$0x1]
        %v418 = vld [vmem:[%s332 + $0x4] sm:$0x1]
        %v419 = vld [vmem:[%s332 + $0x5] sm:$0x1]
        %420 = vadd.xlane.f32.xlu0 %v412
        %v421 = vpop.xlane.xlu0 %420
        %422 = vadd.xlane.f32.xlu0 %v413
        %v423 = vpop.xlane.xlu0 %422
        %v424 = vrcp.pop 128.0
        %v425 = vmul.f32 %v421, %v424
        %v426 = vmul.f32 %v423, %v424
        %v427 = vsub.f32 %v412, %v425
        %v428 = vsub.f32 %v413, %v426
        %v429 = vmul.f32 %v427, %v427
        %v430 = vmul.f32 %v428, %v428
        %431 = vadd.xlane.f32.xlu0 %v429
        %v432 = vpop.xlane.xlu0 %431
        %433 = vadd.xlane.f32.xlu0 %v430
        %v434 = vpop.xlane.xlu0 %433
        %v435 = vmul.f32 %v432, %v424
        %v436 = vmul.f32 %v434, %v424
        %v437 = vadd.f32 %v435, 1e-05
        %v438 = vadd.f32 %v436, 1e-05
        %v439 = vrsqrt.pop %v437
        %v440 = vrsqrt.pop %v438
        %v441 = vmul.f32 %v427, %v439
        %v442 = vmul.f32 %v428, %v440
        %v443 = vlaneseq
        %v444 = vshrl.u32 %v443, 7
        %v445 = vsub.s32 0, %v444
        %v446 = vrot.slane %v414, %v445
        %v447 = vmul.f32 %v441, %v446
        %v448 = vmul.f32 %v442, %v446
        %v449 = vlaneseq
        %v450 = vshrl.u32 %v449, 7
        %v451 = vsub.s32 0, %v450
        %v452 = vrot.slane %v415, %v451
        %v453 = vadd.f32 %v447, %v452
        %v454 = vadd.f32 %v448, %v452
        %v455 = vpack.c.bf16 %v454, %v453
        %v456 = vld [vmem:[%s341] sm:$0xf]
        %v457 = vld [vmem:[%s341 + $0x4] sm:$0xf]
        %v458 = vld [vmem:[%s341 + $0x8] sm:$0xf]
        %v459 = vld [vmem:[%s341 + $0xc] sm:$0xf]
        %v460 = vld [vmem:[%s341 + $0x10] sm:$0xf]
        %v461 = vld [vmem:[%s341 + $0x14] sm:$0xf]
        %v462 = vld [vmem:[%s341 + $0x18] sm:$0xf]
        %v463 = vld [vmem:[%s341 + $0x1c] sm:$0xf]
        %v464 = vld [vmem:[%s341 + $0x20] sm:$0xf]
        %v465 = vld [vmem:[%s341 + $0x24] sm:$0xf]
        %v466 = vld [vmem:[%s341 + $0x28] sm:$0xf]
        %v467 = vld [vmem:[%s341 + $0x2c] sm:$0xf]
        %v468 = vld [vmem:[%s341 + $0x30] sm:$0xf]
        %v469 = vld [vmem:[%s341 + $0x34] sm:$0xf]
        %v470 = vld [vmem:[%s341 + $0x38] sm:$0xf]
        %v471 = vld [vmem:[%s341 + $0x3c] sm:$0xf]
        %v488 = vunpack.c.l.b16 %v456
        %v489 = vunpack.c.l.b16 %v457
        %v490 = vunpack.c.l.b16 %v458
        %v491 = vunpack.c.l.b16 %v459
        %v492 = vunpack.c.l.b16 %v460
        %v493 = vunpack.c.l.b16 %v461
        %v494 = vunpack.c.l.b16 %v462
        %v495 = vunpack.c.l.b16 %v463
        %v496 = vunpack.c.l.b16 %v464
        %v497 = vunpack.c.l.b16 %v465
        %v498 = vunpack.c.l.b16 %v466
        %v499 = vunpack.c.l.b16 %v467
        %v500 = vunpack.c.l.b16 %v468
        %v501 = vunpack.c.l.b16 %v469
        %v502 = vunpack.c.l.b16 %v470
        %v503 = vunpack.c.l.b16 %v471
        %v504 = vpack.c.b16 %v489, %v488
        %v505 = vpack.c.b16 %v491, %v490
        %v506 = vpack.c.b16 %v493, %v492
        %v507 = vpack.c.b16 %v495, %v494
        %v508 = vpack.c.b16 %v497, %v496
        %v509 = vpack.c.b16 %v499, %v498
        %v510 = vpack.c.b16 %v501, %v500
        %v511 = vpack.c.b16 %v503, %v502
        %520 = vmatprep.subr.bf16.mxu0 0
        %521 = vmatpush1.bf16.msra.mxu0 %v504
        %522 = vmatprep.subr.bf16.mxu0 0
        %523 = vmatpush1.bf16.msra.mxu0 %v505
        %524 = vmatprep.subr.bf16.mxu0 0
        %525 = vmatpush1.bf16.msra.mxu0 %v506
        %526 = vmatprep.subr.bf16.mxu0 0
        %527 = vmatpush1.bf16.msra.mxu0 %v507
        %528 = vmatprep.subr.bf16.mxu0 0
        %529 = vmatpush1.bf16.msra.mxu0 %v508
        %530 = vmatprep.subr.bf16.mxu0 0
        %531 = vmatpush1.bf16.msra.mxu0 %v509
        %532 = vmatprep.subr.bf16.mxu0 0
        %533 = vmatpush1.bf16.msra.mxu0 %v510
        %534 = vmatprep.subr.bf16.mxu0 0
        %535 = vmatpush1.bf16.msra.mxu0 %v511
        %536 = vmatprep.subr.bf16.mxu0 0
        %537 = vmatpush1.bf16.msra.mxu0 0
        %538 = vmatprep.subr.bf16.mxu0 0
        %539 = vmatpush1.bf16.msra.mxu0 0
        %540 = vmatprep.subr.bf16.mxu0 0
        %541 = vmatpush1.bf16.msra.mxu0 0
        %542 = vmatprep.subr.bf16.mxu0 0
        %543 = vmatpush1.bf16.msra.mxu0 0
        %544 = vmatprep.subr.bf16.mxu0 0
        %545 = vmatpush1.bf16.msra.mxu0 0
        %546 = vmatprep.subr.bf16.mxu0 0
        %547 = vmatpush1.bf16.msra.mxu0 0
        %548 = vmatprep.subr.bf16.mxu0 0
        %549 = vmatpush1.bf16.msra.mxu0 0
        %550 = vmatprep.subr.bf16.mxu0 0
        %551 = vmatpush1.bf16.msra.mxu0 0
        %552 = vmatprep.mubr.bf16.mxu0 0
        %553 = vmatmul.mubr.bf16.gmra.mrb[0].mxu0 %v455
        %v554 = vpop.f32.mrb[0].mxu0
        %v555 = vadd.f32 0.0, %v554
        %v556 = vpop.f32.mrb[0].mxu0
        %v557 = vpop.f32.mrb[0].mxu0
        %v558 = vadd.f32 0.0, %v557
        %v559 = vpop.f32.mrb[0].mxu0
        %560 = vdwg.mxu0
        %s561 = scalar_lea.vmem %s341, 64
        %v562 = vld [vmem:[%s561] sm:$0xf]
        %v563 = vld [vmem:[%s561 + $0x4] sm:$0xf]
        %v564 = vld [vmem:[%s561 + $0x8] sm:$0xf]
        %v565 = vld [vmem:[%s561 + $0xc] sm:$0xf]
        %v566 = vld [vmem:[%s561 + $0x10] sm:$0xf]
        %v567 = vld [vmem:[%s561 + $0x14] sm:$0xf]
        %v568 = vld [vmem:[%s561 + $0x18] sm:$0xf]
        %v569 = vld [vmem:[%s561 + $0x1c] sm:$0xf]
        %v570 = vld [vmem:[%s561 + $0x20] sm:$0xf]
        %v571 = vld [vmem:[%s561 + $0x24] sm:$0xf]
        %v572 = vld [vmem:[%s561 + $0x28] sm:$0xf]
        %v573 = vld [vmem:[%s561 + $0x2c] sm:$0xf]
        %v574 = vld [vmem:[%s561 + $0x30] sm:$0xf]
        %v575 = vld [vmem:[%s561 + $0x34] sm:$0xf]
        %v576 = vld [vmem:[%s561 + $0x38] sm:$0xf]
        %v577 = vld [vmem:[%s561 + $0x3c] sm:$0xf]
        %v594 = vunpack.c.l.b16 %v562
        %v595 = vunpack.c.l.b16 %v563
        %v596 = vunpack.c.l.b16 %v564
        %v597 = vunpack.c.l.b16 %v565
        %v598 = vunpack.c.l.b16 %v566
        %v599 = vunpack.c.l.b16 %v567
        %v600 = vunpack.c.l.b16 %v568
        %v601 = vunpack.c.l.b16 %v569
        %v602 = vunpack.c.l.b16 %v570
        %v603 = vunpack.c.l.b16 %v571
        %v604 = vunpack.c.l.b16 %v572
        %v605 = vunpack.c.l.b16 %v573
        %v606 = vunpack.c.l.b16 %v574
        %v607 = vunpack.c.l.b16 %v575
        %v608 = vunpack.c.l.b16 %v576
        %v609 = vunpack.c.l.b16 %v577
        %v610 = vpack.c.b16 %v595, %v594
        %v611 = vpack.c.b16 %v597, %v596
        %v612 = vpack.c.b16 %v599, %v598
        %v613 = vpack.c.b16 %v601, %v600
        %v614 = vpack.c.b16 %v603, %v602
        %v615 = vpack.c.b16 %v605, %v604
        %v616 = vpack.c.b16 %v607, %v606
        %v617 = vpack.c.b16 %v609, %v608
        %626 = vmatprep.subr.bf16.mxu0 0
        %627 = vmatpush1.bf16.msra.mxu0 %v610
        %628 = vmatprep.subr.bf16.mxu0 0
        %629 = vmatpush1.bf16.msra.mxu0 %v611
        %630 = vmatprep.subr.bf16.mxu0 0
        %631 = vmatpush1.bf16.msra.mxu0 %v612
        %632 = vmatprep.subr.bf16.mxu0 0
        %633 = vmatpush1.bf16.msra.mxu0 %v613
        %634 = vmatprep.subr.bf16.mxu0 0
        %635 = vmatpush1.bf16.msra.mxu0 %v614
        %636 = vmatprep.subr.bf16.mxu0 0
        %637 = vmatpush1.bf16.msra.mxu0 %v615
        %638 = vmatprep.subr.bf16.mxu0 0
        %639 = vmatpush1.bf16.msra.mxu0 %v616
        %640 = vmatprep.subr.bf16.mxu0 0
        %641 = vmatpush1.bf16.msra.mxu0 %v617
        %642 = vmatprep.subr.bf16.mxu0 0
        %643 = vmatpush1.bf16.msra.mxu0 0
        %644 = vmatprep.subr.bf16.mxu0 0
        %645 = vmatpush1.bf16.msra.mxu0 0
        %646 = vmatprep.subr.bf16.mxu0 0
        %647 = vmatpush1.bf16.msra.mxu0 0
        %648 = vmatprep.subr.bf16.mxu0 0
        %649 = vmatpush1.bf16.msra.mxu0 0
        %650 = vmatprep.subr.bf16.mxu0 0
        %651 = vmatpush1.bf16.msra.mxu0 0
        %652 = vmatprep.subr.bf16.mxu0 0
        %653 = vmatpush1.bf16.msra.mxu0 0
        %654 = vmatprep.subr.bf16.mxu0 0
        %655 = vmatpush1.bf16.msra.mxu0 0
        %656 = vmatprep.subr.bf16.mxu0 0
        %657 = vmatpush1.bf16.msra.mxu0 0
        %658 = vmatprep.mubr.bf16.mxu0 0
        %659 = vmatmul.mubr.bf16.gmra.mrb[0].mxu0 %v455
        %v660 = vpop.f32.mrb[0].mxu0
        %v661 = vadd.f32 0.0, %v660
        %v662 = vpop.f32.mrb[0].mxu0
        %v663 = vpop.f32.mrb[0].mxu0
        %v664 = vadd.f32 0.0, %v663
        %v665 = vpop.f32.mrb[0].mxu0
        %666 = vdwg.mxu0
        %s667 = scalar_lea.vmem %s341, 128
        %v668 = vld [vmem:[%s667] sm:$0xf]
        %v669 = vld [vmem:[%s667 + $0x4] sm:$0xf]
        %v670 = vld [vmem:[%s667 + $0x8] sm:$0xf]
        %v671 = vld [vmem:[%s667 + $0xc] sm:$0xf]
        %v672 = vld [vmem:[%s667 + $0x10] sm:$0xf]
        %v673 = vld [vmem:[%s667 + $0x14] sm:$0xf]
        %v674 = vld [vmem:[%s667 + $0x18] sm:$0xf]
        %v675 = vld [vmem:[%s667 + $0x1c] sm:$0xf]
        %v676 = vld [vmem:[%s667 + $0x20] sm:$0xf]
        %v677 = vld [vmem:[%s667 + $0x24] sm:$0xf]
        %v678 = vld [vmem:[%s667 + $0x28] sm:$0xf]
        %v679 = vld [vmem:[%s667 + $0x2c] sm:$0xf]
        %v680 = vld [vmem:[%s667 + $0x30] sm:$0xf]
        %v681 = vld [vmem:[%s667 + $0x34] sm:$0xf]
        %v682 = vld [vmem:[%s667 + $0x38] sm:$0xf]
        %v683 = vld [vmem:[%s667 + $0x3c] sm:$0xf]
        %v700 = vunpack.c.l.b16 %v668
        %v701 = vunpack.c.l.b16 %v669
        %v702 = vunpack.c.l.b16 %v670
        %v703 = vunpack.c.l.b16 %v671
        %v704 = vunpack.c.l.b16 %v672
        %v705 = vunpack.c.l.b16 %v673
        %v706 = vunpack.c.l.b16 %v674
        %v707 = vunpack.c.l.b16 %v675
        %v708 = vunpack.c.l.b16 %v676
        %v709 = vunpack.c.l.b16 %v677
        %v710 = vunpack.c.l.b16 %v678
        %v711 = vunpack.c.l.b16 %v679
        %v712 = vunpack.c.l.b16 %v680
        %v713 = vunpack.c.l.b16 %v681
        %v714 = vunpack.c.l.b16 %v682
        %v715 = vunpack.c.l.b16 %v683
        %v716 = vpack.c.b16 %v701, %v700
        %v717 = vpack.c.b16 %v703, %v702
        %v718 = vpack.c.b16 %v705, %v704
        %v719 = vpack.c.b16 %v707, %v706
        %v720 = vpack.c.b16 %v709, %v708
        %v721 = vpack.c.b16 %v711, %v710
        %v722 = vpack.c.b16 %v713, %v712
        %v723 = vpack.c.b16 %v715, %v714
        %732 = vmatprep.subr.bf16.mxu0 0
        %733 = vmatpush1.bf16.msra.mxu0 %v716
        %734 = vmatprep.subr.bf16.mxu0 0
        %735 = vmatpush1.bf16.msra.mxu0 %v717
        %736 = vmatprep.subr.bf16.mxu0 0
        %737 = vmatpush1.bf16.msra.mxu0 %v718
        %738 = vmatprep.subr.bf16.mxu0 0
        %739 = vmatpush1.bf16.msra.mxu0 %v719
        %740 = vmatprep.subr.bf16.mxu0 0
        %741 = vmatpush1.bf16.msra.mxu0 %v720
        %742 = vmatprep.subr.bf16.mxu0 0
        %743 = vmatpush1.bf16.msra.mxu0 %v721
        %744 = vmatprep.subr.bf16.mxu0 0
        %745 = vmatpush1.bf16.msra.mxu0 %v722
        %746 = vmatprep.subr.bf16.mxu0 0
        %747 = vmatpush1.bf16.msra.mxu0 %v723
        %748 = vmatprep.subr.bf16.mxu0 0
        %749 = vmatpush1.bf16.msra.mxu0 0
        %750 = vmatprep.subr.bf16.mxu0 0
        %751 = vmatpush1.bf16.msra.mxu0 0
        %752 = vmatprep.subr.bf16.mxu0 0
        %753 = vmatpush1.bf16.msra.mxu0 0
        %754 = vmatprep.subr.bf16.mxu0 0
        %755 = vmatpush1.bf16.msra.mxu0 0
        %756 = vmatprep.subr.bf16.mxu0 0
        %757 = vmatpush1.bf16.msra.mxu0 0
        %758 = vmatprep.subr.bf16.mxu0 0
        %759 = vmatpush1.bf16.msra.mxu0 0
        %760 = vmatprep.subr.bf16.mxu0 0
        %761 = vmatpush1.bf16.msra.mxu0 0
        %762 = vmatprep.subr.bf16.mxu0 0
        %763 = vmatpush1.bf16.msra.mxu0 0
        %764 = vmatprep.mubr.bf16.mxu0 0
        %765 = vmatmul.mubr.bf16.gmra.mrb[0].mxu0 %v455
        %v766 = vpop.f32.mrb[0].mxu0
        %v767 = vadd.f32 0.0, %v766
        %v768 = vpop.f32.mrb[0].mxu0
        %v769 = vpop.f32.mrb[0].mxu0
        %v770 = vadd.f32 0.0, %v769
        %v771 = vpop.f32.mrb[0].mxu0
        %772 = vdwg.mxu0
        %s773 = scalar_lea.vmem %s341, 192
        %v774 = vld [vmem:[%s773] sm:$0xf]
        %v775 = vld [vmem:[%s773 + $0x4] sm:$0xf]
        %v776 = vld [vmem:[%s773 + $0x8] sm:$0xf]
        %v777 = vld [vmem:[%s773 + $0xc] sm:$0xf]
        %v778 = vld [vmem:[%s773 + $0x10] sm:$0xf]
        %v779 = vld [vmem:[%s773 + $0x14] sm:$0xf]
        %v780 = vld [vmem:[%s773 + $0x18] sm:$0xf]
        %v781 = vld [vmem:[%s773 + $0x1c] sm:$0xf]
        %v782 = vld [vmem:[%s773 + $0x20] sm:$0xf]
        %v783 = vld [vmem:[%s773 + $0x24] sm:$0xf]
        %v784 = vld [vmem:[%s773 + $0x28] sm:$0xf]
        %v785 = vld [vmem:[%s773 + $0x2c] sm:$0xf]
        %v786 = vld [vmem:[%s773 + $0x30] sm:$0xf]
        %v787 = vld [vmem:[%s773 + $0x34] sm:$0xf]
        %v788 = vld [vmem:[%s773 + $0x38] sm:$0xf]
        %v789 = vld [vmem:[%s773 + $0x3c] sm:$0xf]
        %v806 = vunpack.c.l.b16 %v774
        %v807 = vunpack.c.l.b16 %v775
        %v808 = vunpack.c.l.b16 %v776
        %v809 = vunpack.c.l.b16 %v777
        %v810 = vunpack.c.l.b16 %v778
        %v811 = vunpack.c.l.b16 %v779
        %v812 = vunpack.c.l.b16 %v780
        %v813 = vunpack.c.l.b16 %v781
        %v814 = vunpack.c.l.b16 %v782
        %v815 = vunpack.c.l.b16 %v783
        %v816 = vunpack.c.l.b16 %v784
        %v817 = vunpack.c.l.b16 %v785
        %v818 = vunpack.c.l.b16 %v786
        %v819 = vunpack.c.l.b16 %v787
        %v820 = vunpack.c.l.b16 %v788
        %v821 = vunpack.c.l.b16 %v789
        %v822 = vpack.c.b16 %v807, %v806
        %v823 = vpack.c.b16 %v809, %v808
        %v824 = vpack.c.b16 %v811, %v810
        %v825 = vpack.c.b16 %v813, %v812
        %v826 = vpack.c.b16 %v815, %v814
        %v827 = vpack.c.b16 %v817, %v816
        %v828 = vpack.c.b16 %v819, %v818
        %v829 = vpack.c.b16 %v821, %v820
        %838 = vmatprep.subr.bf16.mxu0 0
        %839 = vmatpush1.bf16.msra.mxu0 %v822
        %840 = vmatprep.subr.bf16.mxu0 0
        %841 = vmatpush1.bf16.msra.mxu0 %v823
        %842 = vmatprep.subr.bf16.mxu0 0
        %843 = vmatpush1.bf16.msra.mxu0 %v824
        %844 = vmatprep.subr.bf16.mxu0 0
        %845 = vmatpush1.bf16.msra.mxu0 %v825
        %846 = vmatprep.subr.bf16.mxu0 0
        %847 = vmatpush1.bf16.msra.mxu0 %v826
        %848 = vmatprep.subr.bf16.mxu0 0
        %849 = vmatpush1.bf16.msra.mxu0 %v827
        %850 = vmatprep.subr.bf16.mxu0 0
        %851 = vmatpush1.bf16.msra.mxu0 %v828
        %852 = vmatprep.subr.bf16.mxu0 0
        %853 = vmatpush1.bf16.msra.mxu0 %v829
        %854 = vmatprep.subr.bf16.mxu0 0
        %855 = vmatpush1.bf16.msra.mxu0 0
        %856 = vmatprep.subr.bf16.mxu0 0
        %857 = vmatpush1.bf16.msra.mxu0 0
        %858 = vmatprep.subr.bf16.mxu0 0
        %859 = vmatpush1.bf16.msra.mxu0 0
        %860 = vmatprep.subr.bf16.mxu0 0
        %861 = vmatpush1.bf16.msra.mxu0 0
        %862 = vmatprep.subr.bf16.mxu0 0
        %863 = vmatpush1.bf16.msra.mxu0 0
        %864 = vmatprep.subr.bf16.mxu0 0
        %865 = vmatpush1.bf16.msra.mxu0 0
        %866 = vmatprep.subr.bf16.mxu0 0
        %867 = vmatpush1.bf16.msra.mxu0 0
        %868 = vmatprep.subr.bf16.mxu0 0
        %869 = vmatpush1.bf16.msra.mxu0 0
        %870 = vmatprep.mubr.bf16.mxu0 0
        %871 = vmatmul.mubr.bf16.gmra.mrb[0].mxu0 %v455
        %v872 = vpop.f32.mrb[0].mxu0
        %v873 = vadd.f32 0.0, %v872
        %v874 = vpop.f32.mrb[0].mxu0
        %v875 = vpop.f32.mrb[0].mxu0
        %v876 = vadd.f32 0.0, %v875
        %v877 = vpop.f32.mrb[0].mxu0
        %878 = vdwg.mxu0
        %s879 = scalar_lea.vmem %s341, 256
        %v880 = vld [vmem:[%s879] sm:$0xf]
        %v881 = vld [vmem:[%s879 + $0x4] sm:$0xf]
        %v882 = vld [vmem:[%s879 + $0x8] sm:$0xf]
        %v883 = vld [vmem:[%s879 + $0xc] sm:$0xf]
        %v884 = vld [vmem:[%s879 + $0x10] sm:$0xf]
        %v885 = vld [vmem:[%s879 + $0x14] sm:$0xf]
        %v886 = vld [vmem:[%s879 + $0x18] sm:$0xf]
        %v887 = vld [vmem:[%s879 + $0x1c] sm:$0xf]
        %v888 = vld [vmem:[%s879 + $0x20] sm:$0xf]
        %v889 = vld [vmem:[%s879 + $0x24] sm:$0xf]
        %v890 = vld [vmem:[%s879 + $0x28] sm:$0xf]
        %v891 = vld [vmem:[%s879 + $0x2c] sm:$0xf]
        %v892 = vld [vmem:[%s879 + $0x30] sm:$0xf]
        %v893 = vld [vmem:[%s879 + $0x34] sm:$0xf]
        %v894 = vld [vmem:[%s879 + $0x38] sm:$0xf]
        %v895 = vld [vmem:[%s879 + $0x3c] sm:$0xf]
        %v912 = vunpack.c.l.b16 %v880
        %v913 = vunpack.c.l.b16 %v881
        %v914 = vunpack.c.l.b16 %v882
        %v915 = vunpack.c.l.b16 %v883
        %v916 = vunpack.c.l.b16 %v884
        %v917 = vunpack.c.l.b16 %v885
        %v918 = vunpack.c.l.b16 %v886
        %v919 = vunpack.c.l.b16 %v887
        %v920 = vunpack.c.l.b16 %v888
        %v921 = vunpack.c.l.b16 %v889
        %v922 = vunpack.c.l.b16 %v890
        %v923 = vunpack.c.l.b16 %v891
        %v924 = vunpack.c.l.b16 %v892
        %v925 = vunpack.c.l.b16 %v893
        %v926 = vunpack.c.l.b16 %v894
        %v927 = vunpack.c.l.b16 %v895
        %v928 = vpack.c.b16 %v913, %v912
        %v929 = vpack.c.b16 %v915, %v914
        %v930 = vpack.c.b16 %v917, %v916
        %v931 = vpack.c.b16 %v919, %v918
        %v932 = vpack.c.b16 %v921, %v920
        %v933 = vpack.c.b16 %v923, %v922
        %v934 = vpack.c.b16 %v925, %v924
        %v935 = vpack.c.b16 %v927, %v926
        %944 = vmatprep.subr.bf16.mxu0 0
        %945 = vmatpush1.bf16.msra.mxu0 %v928
        %946 = vmatprep.subr.bf16.mxu0 0
        %947 = vmatpush1.bf16.msra.mxu0 %v929
        %948 = vmatprep.subr.bf16.mxu0 0
        %949 = vmatpush1.bf16.msra.mxu0 %v930
        %950 = vmatprep.subr.bf16.mxu0 0
        %951 = vmatpush1.bf16.msra.mxu0 %v931
        %952 = vmatprep.subr.bf16.mxu0 0
        %953 = vmatpush1.bf16.msra.mxu0 %v932
        %954 = vmatprep.subr.bf16.mxu0 0
        %955 = vmatpush1.bf16.msra.mxu0 %v933
        %956 = vmatprep.subr.bf16.mxu0 0
        %957 = vmatpush1.bf16.msra.mxu0 %v934
        %958 = vmatprep.subr.bf16.mxu0 0
        %959 = vmatpush1.bf16.msra.mxu0 %v935
        %960 = vmatprep.subr.bf16.mxu0 0
        %961 = vmatpush1.bf16.msra.mxu0 0
        %962 = vmatprep.subr.bf16.mxu0 0
        %963 = vmatpush1.bf16.msra.mxu0 0
        %964 = vmatprep.subr.bf16.mxu0 0
        %965 = vmatpush1.bf16.msra.mxu0 0
        %966 = vmatprep.subr.bf16.mxu0 0
        %967 = vmatpush1.bf16.msra.mxu0 0
        %968 = vmatprep.subr.bf16.mxu0 0
        %969 = vmatpush1.bf16.msra.mxu0 0
        %970 = vmatprep.subr.bf16.mxu0 0
        %971 = vmatpush1.bf16.msra.mxu0 0
        %972 = vmatprep.subr.bf16.mxu0 0
        %973 = vmatpush1.bf16.msra.mxu0 0
        %974 = vmatprep.subr.bf16.mxu0 0
        %975 = vmatpush1.bf16.msra.mxu0 0
        %976 = vmatprep.mubr.bf16.mxu0 0
        %977 = vmatmul.mubr.bf16.gmra.mrb[0].mxu0 %v455
        %v978 = vpop.f32.mrb[0].mxu0
        %v979 = vadd.f32 0.0, %v978
        %v980 = vpop.f32.mrb[0].mxu0
        %v981 = vpop.f32.mrb[0].mxu0
        %v982 = vadd.f32 0.0, %v981
        %v983 = vpop.f32.mrb[0].mxu0
        %984 = vdwg.mxu0
        %s985 = scalar_lea.vmem %s341, 320
        %v986 = vld [vmem:[%s985] sm:$0xf]
        %v987 = vld [vmem:[%s985 + $0x4] sm:$0xf]
        %v988 = vld [vmem:[%s985 + $0x8] sm:$0xf]
        %v989 = vld [vmem:[%s985 + $0xc] sm:$0xf]
        %v990 = vld [vmem:[%s985 + $0x10] sm:$0xf]
        %v991 = vld [vmem:[%s985 + $0x14] sm:$0xf]
        %v992 = vld [vmem:[%s985 + $0x18] sm:$0xf]
        %v993 = vld [vmem:[%s985 + $0x1c] sm:$0xf]
        %v994 = vld [vmem:[%s985 + $0x20] sm:$0xf]
        %v995 = vld [vmem:[%s985 + $0x24] sm:$0xf]
        %v996 = vld [vmem:[%s985 + $0x28] sm:$0xf]
        %v997 = vld [vmem:[%s985 + $0x2c] sm:$0xf]
        %v998 = vld [vmem:[%s985 + $0x30] sm:$0xf]
        %v999 = vld [vmem:[%s985 + $0x34] sm:$0xf]
        %v1000 = vld [vmem:[%s985 + $0x38] sm:$0xf]
        %v1001 = vld [vmem:[%s985 + $0x3c] sm:$0xf]
        %v1018 = vunpack.c.l.b16 %v986
        %v1019 = vunpack.c.l.b16 %v987
        %v1020 = vunpack.c.l.b16 %v988
        %v1021 = vunpack.c.l.b16 %v989
        %v1022 = vunpack.c.l.b16 %v990
        %v1023 = vunpack.c.l.b16 %v991
        %v1024 = vunpack.c.l.b16 %v992
        %v1025 = vunpack.c.l.b16 %v993
        %v1026 = vunpack.c.l.b16 %v994
        %v1027 = vunpack.c.l.b16 %v995
        %v1028 = vunpack.c.l.b16 %v996
        %v1029 = vunpack.c.l.b16 %v997
        %v1030 = vunpack.c.l.b16 %v998
        %v1031 = vunpack.c.l.b16 %v999
        %v1032 = vunpack.c.l.b16 %v1000
        %v1033 = vunpack.c.l.b16 %v1001
        %v1034 = vpack.c.b16 %v1019, %v1018
        %v1035 = vpack.c.b16 %v1021, %v1020
        %v1036 = vpack.c.b16 %v1023, %v1022
        %v1037 = vpack.c.b16 %v1025, %v1024
        %v1038 = vpack.c.b16 %v1027, %v1026
        %v1039 = vpack.c.b16 %v1029, %v1028
        %v1040 = vpack.c.b16 %v1031, %v1030
        %v1041 = vpack.c.b16 %v1033, %v1032
        %1050 = vmatprep.subr.bf16.mxu0 0
        %1051 = vmatpush1.bf16.msra.mxu0 %v1034
        %1052 = vmatprep.subr.bf16.mxu0 0
        %1053 = vmatpush1.bf16.msra.mxu0 %v1035
        %1054 = vmatprep.subr.bf16.mxu0 0
        %1055 = vmatpush1.bf16.msra.mxu0 %v1036
        %1056 = vmatprep.subr.bf16.mxu0 0
        %1057 = vmatpush1.bf16.msra.mxu0 %v1037
        %1058 = vmatprep.subr.bf16.mxu0 0
        %1059 = vmatpush1.bf16.msra.mxu0 %v1038
        %1060 = vmatprep.subr.bf16.mxu0 0
        %1061 = vmatpush1.bf16.msra.mxu0 %v1039
        %1062 = vmatprep.subr.bf16.mxu0 0
        %1063 = vmatpush1.bf16.msra.mxu0 %v1040
        %1064 = vmatprep.subr.bf16.mxu0 0
        %1065 = vmatpush1.bf16.msra.mxu0 %v1041
        %1066 = vmatprep.subr.bf16.mxu0 0
        %1067 = vmatpush1.bf16.msra.mxu0 0
        %1068 = vmatprep.subr.bf16.mxu0 0
        %1069 = vmatpush1.bf16.msra.mxu0 0
        %1070 = vmatprep.subr.bf16.mxu0 0
        %1071 = vmatpush1.bf16.msra.mxu0 0
        %1072 = vmatprep.subr.bf16.mxu0 0
        %1073 = vmatpush1.bf16.msra.mxu0 0
        %1074 = vmatprep.subr.bf16.mxu0 0
        %1075 = vmatpush1.bf16.msra.mxu0 0
        %1076 = vmatprep.subr.bf16.mxu0 0
        %1077 = vmatpush1.bf16.msra.mxu0 0
        %1078 = vmatprep.subr.bf16.mxu0 0
        %1079 = vmatpush1.bf16.msra.mxu0 0
        %1080 = vmatprep.subr.bf16.mxu0 0
        %1081 = vmatpush1.bf16.msra.mxu0 0
        %1082 = vmatprep.mubr.bf16.mxu0 0
        %1083 = vmatmul.mubr.bf16.gmra.mrb[0].mxu0 %v455
        %v1084 = vpop.f32.mrb[0].mxu0
        %v1085 = vadd.f32 0.0, %v1084
        %v1086 = vpop.f32.mrb[0].mxu0
        %v1087 = vpop.f32.mrb[0].mxu0
        %v1088 = vadd.f32 0.0, %v1087
        %v1089 = vpop.f32.mrb[0].mxu0
        %1090 = vdwg.mxu0
        %s1091 = scalar_lea.vmem %s341, 384
        %v1092 = vld [vmem:[%s1091] sm:$0xf]
        %v1093 = vld [vmem:[%s1091 + $0x4] sm:$0xf]
        %v1094 = vld [vmem:[%s1091 + $0x8] sm:$0xf]
        %v1095 = vld [vmem:[%s1091 + $0xc] sm:$0xf]
        %v1096 = vld [vmem:[%s1091 + $0x10] sm:$0xf]
        %v1097 = vld [vmem:[%s1091 + $0x14] sm:$0xf]
        %v1098 = vld [vmem:[%s1091 + $0x18] sm:$0xf]
        %v1099 = vld [vmem:[%s1091 + $0x1c] sm:$0xf]
        %v1100 = vld [vmem:[%s1091 + $0x20] sm:$0xf]
        %v1101 = vld [vmem:[%s1091 + $0x24] sm:$0xf]
        %v1102 = vld [vmem:[%s1091 + $0x28] sm:$0xf]
        %v1103 = vld [vmem:[%s1091 + $0x2c] sm:$0xf]
        %v1104 = vld [vmem:[%s1091 + $0x30] sm:$0xf]
        %v1105 = vld [vmem:[%s1091 + $0x34] sm:$0xf]
        %v1106 = vld [vmem:[%s1091 + $0x38] sm:$0xf]
        %v1107 = vld [vmem:[%s1091 + $0x3c] sm:$0xf]
        %v1124 = vunpack.c.l.b16 %v1092
        %v1125 = vunpack.c.l.b16 %v1093
        %v1126 = vunpack.c.l.b16 %v1094
        %v1127 = vunpack.c.l.b16 %v1095
        %v1128 = vunpack.c.l.b16 %v1096
        %v1129 = vunpack.c.l.b16 %v1097
        %v1130 = vunpack.c.l.b16 %v1098
        %v1131 = vunpack.c.l.b16 %v1099
        %v1132 = vunpack.c.l.b16 %v1100
        %v1133 = vunpack.c.l.b16 %v1101
        %v1134 = vunpack.c.l.b16 %v1102
        %v1135 = vunpack.c.l.b16 %v1103
        %v1136 = vunpack.c.l.b16 %v1104
        %v1137 = vunpack.c.l.b16 %v1105
        %v1138 = vunpack.c.l.b16 %v1106
        %v1139 = vunpack.c.l.b16 %v1107
        %v1140 = vpack.c.b16 %v1125, %v1124
        %v1141 = vpack.c.b16 %v1127, %v1126
        %v1142 = vpack.c.b16 %v1129, %v1128
        %v1143 = vpack.c.b16 %v1131, %v1130
        %v1144 = vpack.c.b16 %v1133, %v1132
        %v1145 = vpack.c.b16 %v1135, %v1134
        %v1146 = vpack.c.b16 %v1137, %v1136
        %v1147 = vpack.c.b16 %v1139, %v1138
        %1156 = vmatprep.subr.bf16.mxu0 0
        %1157 = vmatpush1.bf16.msra.mxu0 %v1140
        %1158 = vmatprep.subr.bf16.mxu0 0
        %1159 = vmatpush1.bf16.msra.mxu0 %v1141
        %1160 = vmatprep.subr.bf16.mxu0 0
        %1161 = vmatpush1.bf16.msra.mxu0 %v1142
        %1162 = vmatprep.subr.bf16.mxu0 0
        %1163 = vmatpush1.bf16.msra.mxu0 %v1143
        %1164 = vmatprep.subr.bf16.mxu0 0
        %1165 = vmatpush1.bf16.msra.mxu0 %v1144
        %1166 = vmatprep.subr.bf16.mxu0 0
        %1167 = vmatpush1.bf16.msra.mxu0 %v1145
        %1168 = vmatprep.subr.bf16.mxu0 0
        %1169 = vmatpush1.bf16.msra.mxu0 %v1146
        %1170 = vmatprep.subr.bf16.mxu0 0
        %1171 = vmatpush1.bf16.msra.mxu0 %v1147
        %1172 = vmatprep.subr.bf16.mxu0 0
        %1173 = vmatpush1.bf16.msra.mxu0 0
        %1174 = vmatprep.subr.bf16.mxu0 0
        %1175 = vmatpush1.bf16.msra.mxu0 0
        %1176 = vmatprep.subr.bf16.mxu0 0
        %1177 = vmatpush1.bf16.msra.mxu0 0
        %1178 = vmatprep.subr.bf16.mxu0 0
        %1179 = vmatpush1.bf16.msra.mxu0 0
        %1180 = vmatprep.subr.bf16.mxu0 0
        %1181 = vmatpush1.bf16.msra.mxu0 0
        %1182 = vmatprep.subr.bf16.mxu0 0
        %1183 = vmatpush1.bf16.msra.mxu0 0
        %1184 = vmatprep.subr.bf16.mxu0 0
        %1185 = vmatpush1.bf16.msra.mxu0 0
        %1186 = vmatprep.subr.bf16.mxu0 0
        %1187 = vmatpush1.bf16.msra.mxu0 0
        %1188 = vmatprep.mubr.bf16.mxu0 0
        %1189 = vmatmul.mubr.bf16.gmra.mrb[0].mxu0 %v455
        %v1190 = vpop.f32.mrb[0].mxu0
        %v1191 = vadd.f32 0.0, %v1190
        %v1192 = vpop.f32.mrb[0].mxu0
        %v1193 = vpop.f32.mrb[0].mxu0
        %v1194 = vadd.f32 0.0, %v1193
        %v1195 = vpop.f32.mrb[0].mxu0
        %1196 = vdwg.mxu0
        %s1197 = scalar_lea.vmem %s341, 448
        %v1198 = vld [vmem:[%s1197] sm:$0xf]
        %v1199 = vld [vmem:[%s1197 + $0x4] sm:$0xf]
        %v1200 = vld [vmem:[%s1197 + $0x8] sm:$0xf]
        %v1201 = vld [vmem:[%s1197 + $0xc] sm:$0xf]
        %v1202 = vld [vmem:[%s1197 + $0x10] sm:$0xf]
        %v1203 = vld [vmem:[%s1197 + $0x14] sm:$0xf]
        %v1204 = vld [vmem:[%s1197 + $0x18] sm:$0xf]
        %v1205 = vld [vmem:[%s1197 + $0x1c] sm:$0xf]
        %v1206 = vld [vmem:[%s1197 + $0x20] sm:$0xf]
        %v1207 = vld [vmem:[%s1197 + $0x24] sm:$0xf]
        %v1208 = vld [vmem:[%s1197 + $0x28] sm:$0xf]
        %v1209 = vld [vmem:[%s1197 + $0x2c] sm:$0xf]
        %v1210 = vld [vmem:[%s1197 + $0x30] sm:$0xf]
        %v1211 = vld [vmem:[%s1197 + $0x34] sm:$0xf]
        %v1212 = vld [vmem:[%s1197 + $0x38] sm:$0xf]
        %v1213 = vld [vmem:[%s1197 + $0x3c] sm:$0xf]
        %v1230 = vunpack.c.l.b16 %v1198
        %v1231 = vunpack.c.l.b16 %v1199
        %v1232 = vunpack.c.l.b16 %v1200
        %v1233 = vunpack.c.l.b16 %v1201
        %v1234 = vunpack.c.l.b16 %v1202
        %v1235 = vunpack.c.l.b16 %v1203
        %v1236 = vunpack.c.l.b16 %v1204
        %v1237 = vunpack.c.l.b16 %v1205
        %v1238 = vunpack.c.l.b16 %v1206
        %v1239 = vunpack.c.l.b16 %v1207
        %v1240 = vunpack.c.l.b16 %v1208
        %v1241 = vunpack.c.l.b16 %v1209
        %v1242 = vunpack.c.l.b16 %v1210
        %v1243 = vunpack.c.l.b16 %v1211
        %v1244 = vunpack.c.l.b16 %v1212
        %v1245 = vunpack.c.l.b16 %v1213
        %v1246 = vpack.c.b16 %v1231, %v1230
        %v1247 = vpack.c.b16 %v1233, %v1232
        %v1248 = vpack.c.b16 %v1235, %v1234
        %v1249 = vpack.c.b16 %v1237, %v1236
        %v1250 = vpack.c.b16 %v1239, %v1238
        %v1251 = vpack.c.b16 %v1241, %v1240
        %v1252 = vpack.c.b16 %v1243, %v1242
        %v1253 = vpack.c.b16 %v1245, %v1244
        %1262 = vmatprep.subr.bf16.mxu0 0
        %1263 = vmatpush1.bf16.msra.mxu0 %v1246
        %1264 = vmatprep.subr.bf16.mxu0 0
        %1265 = vmatpush1.bf16.msra.mxu0 %v1247
        %1266 = vmatprep.subr.bf16.mxu0 0
        %1267 = vmatpush1.bf16.msra.mxu0 %v1248
        %1268 = vmatprep.subr.bf16.mxu0 0
        %1269 = vmatpush1.bf16.msra.mxu0 %v1249
        %1270 = vmatprep.subr.bf16.mxu0 0
        %1271 = vmatpush1.bf16.msra.mxu0 %v1250
        %1272 = vmatprep.subr.bf16.mxu0 0
        %1273 = vmatpush1.bf16.msra.mxu0 %v1251
        %1274 = vmatprep.subr.bf16.mxu0 0
        %1275 = vmatpush1.bf16.msra.mxu0 %v1252
        %1276 = vmatprep.subr.bf16.mxu0 0
        %1277 = vmatpush1.bf16.msra.mxu0 %v1253
        %1278 = vmatprep.subr.bf16.mxu0 0
        %1279 = vmatpush1.bf16.msra.mxu0 0
        %1280 = vmatprep.subr.bf16.mxu0 0
        %1281 = vmatpush1.bf16.msra.mxu0 0
        %1282 = vmatprep.subr.bf16.mxu0 0
        %1283 = vmatpush1.bf16.msra.mxu0 0
        %1284 = vmatprep.subr.bf16.mxu0 0
        %1285 = vmatpush1.bf16.msra.mxu0 0
        %1286 = vmatprep.subr.bf16.mxu0 0
        %1287 = vmatpush1.bf16.msra.mxu0 0
        %1288 = vmatprep.subr.bf16.mxu0 0
        %1289 = vmatpush1.bf16.msra.mxu0 0
        %1290 = vmatprep.subr.bf16.mxu0 0
        %1291 = vmatpush1.bf16.msra.mxu0 0
        %1292 = vmatprep.subr.bf16.mxu0 0
        %1293 = vmatpush1.bf16.msra.mxu0 0
        %1294 = vmatprep.mubr.bf16.mxu0 0
        %1295 = vmatmul.mubr.bf16.gmra.mrb[0].mxu0 %v455
        %v1296 = vpop.f32.mrb[0].mxu0
        %v1297 = vadd.f32 0.0, %v1296
        %v1298 = vpop.f32.mrb[0].mxu0
        %v1299 = vpop.f32.mrb[0].mxu0
        %v1300 = vadd.f32 0.0, %v1299
        %v1301 = vpop.f32.mrb[0].mxu0
        %1302 = vdwg.mxu0
        %s1303 = scalar_lea.vmem %s341, 512
        %v1304 = vld [vmem:[%s1303] sm:$0xf]
        %v1305 = vld [vmem:[%s1303 + $0x4] sm:$0xf]
        %v1306 = vld [vmem:[%s1303 + $0x8] sm:$0xf]
        %v1307 = vld [vmem:[%s1303 + $0xc] sm:$0xf]
        %v1308 = vld [vmem:[%s1303 + $0x10] sm:$0xf]
        %v1309 = vld [vmem:[%s1303 + $0x14] sm:$0xf]
        %v1310 = vld [vmem:[%s1303 + $0x18] sm:$0xf]
        %v1311 = vld [vmem:[%s1303 + $0x1c] sm:$0xf]
        %v1312 = vld [vmem:[%s1303 + $0x20] sm:$0xf]
        %v1313 = vld [vmem:[%s1303 + $0x24] sm:$0xf]
        %v1314 = vld [vmem:[%s1303 + $0x28] sm:$0xf]
        %v1315 = vld [vmem:[%s1303 + $0x2c] sm:$0xf]
        %v1316 = vld [vmem:[%s1303 + $0x30] sm:$0xf]
        %v1317 = vld [vmem:[%s1303 + $0x34] sm:$0xf]
        %v1318 = vld [vmem:[%s1303 + $0x38] sm:$0xf]
        %v1319 = vld [vmem:[%s1303 + $0x3c] sm:$0xf]
        %v1336 = vunpack.c.l.b16 %v1304
        %v1337 = vunpack.c.l.b16 %v1305
        %v1338 = vunpack.c.l.b16 %v1306
        %v1339 = vunpack.c.l.b16 %v1307
        %v1340 = vunpack.c.l.b16 %v1308
        %v1341 = vunpack.c.l.b16 %v1309
        %v1342 = vunpack.c.l.b16 %v1310
        %v1343 = vunpack.c.l.b16 %v1311
        %v1344 = vunpack.c.l.b16 %v1312
        %v1345 = vunpack.c.l.b16 %v1313
        %v1346 = vunpack.c.l.b16 %v1314
        %v1347 = vunpack.c.l.b16 %v1315
        %v1348 = vunpack.c.l.b16 %v1316
        %v1349 = vunpack.c.l.b16 %v1317
        %v1350 = vunpack.c.l.b16 %v1318
        %v1351 = vunpack.c.l.b16 %v1319
        %v1352 = vpack.c.b16 %v1337, %v1336
        %v1353 = vpack.c.b16 %v1339, %v1338
        %v1354 = vpack.c.b16 %v1341, %v1340
        %v1355 = vpack.c.b16 %v1343, %v1342
        %v1356 = vpack.c.b16 %v1345, %v1344
        %v1357 = vpack.c.b16 %v1347, %v1346
        %v1358 = vpack.c.b16 %v1349, %v1348
        %v1359 = vpack.c.b16 %v1351, %v1350
        %1368 = vmatprep.subr.bf16.mxu0 0
        %1369 = vmatpush1.bf16.msra.mxu0 %v1352
        %1370 = vmatprep.subr.bf16.mxu0 0
        %1371 = vmatpush1.bf16.msra.mxu0 %v1353
        %1372 = vmatprep.subr.bf16.mxu0 0
        %1373 = vmatpush1.bf16.msra.mxu0 %v1354
        %1374 = vmatprep.subr.bf16.mxu0 0
        %1375 = vmatpush1.bf16.msra.mxu0 %v1355
        %1376 = vmatprep.subr.bf16.mxu0 0
        %1377 = vmatpush1.bf16.msra.mxu0 %v1356
        %1378 = vmatprep.subr.bf16.mxu0 0
        %1379 = vmatpush1.bf16.msra.mxu0 %v1357
        %1380 = vmatprep.subr.bf16.mxu0 0
        %1381 = vmatpush1.bf16.msra.mxu0 %v1358
        %1382 = vmatprep.subr.bf16.mxu0 0
        %1383 = vmatpush1.bf16.msra.mxu0 %v1359
        %1384 = vmatprep.subr.bf16.mxu0 0
        %1385 = vmatpush1.bf16.msra.mxu0 0
        %1386 = vmatprep.subr.bf16.mxu0 0
        %1387 = vmatpush1.bf16.msra.mxu0 0
        %1388 = vmatprep.subr.bf16.mxu0 0
        %1389 = vmatpush1.bf16.msra.mxu0 0
        %1390 = vmatprep.subr.bf16.mxu0 0
        %1391 = vmatpush1.bf16.msra.mxu0 0
        %1392 = vmatprep.subr.bf16.mxu0 0
        %1393 = vmatpush1.bf16.msra.mxu0 0
        %1394 = vmatprep.subr.bf16.mxu0 0
        %1395 = vmatpush1.bf16.msra.mxu0 0
        %1396 = vmatprep.subr.bf16.mxu0 0
        %1397 = vmatpush1.bf16.msra.mxu0 0
        %1398 = vmatprep.subr.bf16.mxu0 0
        %1399 = vmatpush1.bf16.msra.mxu0 0
        %1400 = vmatprep.mubr.bf16.mxu0 0
        %1401 = vmatmul.mubr.bf16.gmra.mrb[0].mxu0 %v455
        %v1402 = vpop.f32.mrb[0].mxu0
        %v1403 = vadd.f32 0.0, %v1402
        %v1404 = vpop.f32.mrb[0].mxu0
        %v1405 = vpop.f32.mrb[0].mxu0
        %v1406 = vadd.f32 0.0, %v1405
        %v1407 = vpop.f32.mrb[0].mxu0
        %1408 = vdwg.mxu0
        %s1409 = scalar_lea.vmem %s341, 576
        %v1410 = vld [vmem:[%s1409] sm:$0xf]
        %v1411 = vld [vmem:[%s1409 + $0x4] sm:$0xf]
        %v1412 = vld [vmem:[%s1409 + $0x8] sm:$0xf]
        %v1413 = vld [vmem:[%s1409 + $0xc] sm:$0xf]
        %v1414 = vld [vmem:[%s1409 + $0x10] sm:$0xf]
        %v1415 = vld [vmem:[%s1409 + $0x14] sm:$0xf]
        %v1416 = vld [vmem:[%s1409 + $0x18] sm:$0xf]
        %v1417 = vld [vmem:[%s1409 + $0x1c] sm:$0xf]
        %v1418 = vld [vmem:[%s1409 + $0x20] sm:$0xf]
        %v1419 = vld [vmem:[%s1409 + $0x24] sm:$0xf]
        %v1420 = vld [vmem:[%s1409 + $0x28] sm:$0xf]
        %v1421 = vld [vmem:[%s1409 + $0x2c] sm:$0xf]
        %v1422 = vld [vmem:[%s1409 + $0x30] sm:$0xf]
        %v1423 = vld [vmem:[%s1409 + $0x34] sm:$0xf]
        %v1424 = vld [vmem:[%s1409 + $0x38] sm:$0xf]
        %v1425 = vld [vmem:[%s1409 + $0x3c] sm:$0xf]
        %v1442 = vunpack.c.l.b16 %v1410
        %v1443 = vunpack.c.l.b16 %v1411
        %v1444 = vunpack.c.l.b16 %v1412
        %v1445 = vunpack.c.l.b16 %v1413
        %v1446 = vunpack.c.l.b16 %v1414
        %v1447 = vunpack.c.l.b16 %v1415
        %v1448 = vunpack.c.l.b16 %v1416
        %v1449 = vunpack.c.l.b16 %v1417
        %v1450 = vunpack.c.l.b16 %v1418
        %v1451 = vunpack.c.l.b16 %v1419
        %v1452 = vunpack.c.l.b16 %v1420
        %v1453 = vunpack.c.l.b16 %v1421
        %v1454 = vunpack.c.l.b16 %v1422
        %v1455 = vunpack.c.l.b16 %v1423
        %v1456 = vunpack.c.l.b16 %v1424
        %v1457 = vunpack.c.l.b16 %v1425
        %v1458 = vpack.c.b16 %v1443, %v1442
        %v1459 = vpack.c.b16 %v1445, %v1444
        %v1460 = vpack.c.b16 %v1447, %v1446
        %v1461 = vpack.c.b16 %v1449, %v1448
        %v1462 = vpack.c.b16 %v1451, %v1450
        %v1463 = vpack.c.b16 %v1453, %v1452
        %v1464 = vpack.c.b16 %v1455, %v1454
        %v1465 = vpack.c.b16 %v1457, %v1456
        %1474 = vmatprep.subr.bf16.mxu0 0
        %1475 = vmatpush1.bf16.msra.mxu0 %v1458
        %1476 = vmatprep.subr.bf16.mxu0 0
        %1477 = vmatpush1.bf16.msra.mxu0 %v1459
        %1478 = vmatprep.subr.bf16.mxu0 0
        %1479 = vmatpush1.bf16.msra.mxu0 %v1460
        %1480 = vmatprep.subr.bf16.mxu0 0
        %1481 = vmatpush1.bf16.msra.mxu0 %v1461
        %1482 = vmatprep.subr.bf16.mxu0 0
        %1483 = vmatpush1.bf16.msra.mxu0 %v1462
        %1484 = vmatprep.subr.bf16.mxu0 0
        %1485 = vmatpush1.bf16.msra.mxu0 %v1463
        %1486 = vmatprep.subr.bf16.mxu0 0
        %1487 = vmatpush1.bf16.msra.mxu0 %v1464
        %1488 = vmatprep.subr.bf16.mxu0 0
        %1489 = vmatpush1.bf16.msra.mxu0 %v1465
        %1490 = vmatprep.subr.bf16.mxu0 0
        %1491 = vmatpush1.bf16.msra.mxu0 0
        %1492 = vmatprep.subr.bf16.mxu0 0
        %1493 = vmatpush1.bf16.msra.mxu0 0
        %1494 = vmatprep.subr.bf16.mxu0 0
        %1495 = vmatpush1.bf16.msra.mxu0 0
        %1496 = vmatprep.subr.bf16.mxu0 0
        %1497 = vmatpush1.bf16.msra.mxu0 0
        %1498 = vmatprep.subr.bf16.mxu0 0
        %1499 = vmatpush1.bf16.msra.mxu0 0
        %1500 = vmatprep.subr.bf16.mxu0 0
        %1501 = vmatpush1.bf16.msra.mxu0 0
        %1502 = vmatprep.subr.bf16.mxu0 0
        %1503 = vmatpush1.bf16.msra.mxu0 0
        %1504 = vmatprep.subr.bf16.mxu0 0
        %1505 = vmatpush1.bf16.msra.mxu0 0
        %1506 = vmatprep.mubr.bf16.mxu0 0
        %1507 = vmatmul.mubr.bf16.gmra.mrb[0].mxu0 %v455
        %v1508 = vpop.f32.mrb[0].mxu0
        %v1509 = vadd.f32 0.0, %v1508
        %v1510 = vpop.f32.mrb[0].mxu0
        %v1511 = vpop.f32.mrb[0].mxu0
        %v1512 = vadd.f32 0.0, %v1511
        %v1513 = vpop.f32.mrb[0].mxu0
        %1514 = vdwg.mxu0
        %s1515 = scalar_lea.vmem %s341, 640
        %v1516 = vld [vmem:[%s1515] sm:$0xf]
        %v1517 = vld [vmem:[%s1515 + $0x4] sm:$0xf]
        %v1518 = vld [vmem:[%s1515 + $0x8] sm:$0xf]
        %v1519 = vld [vmem:[%s1515 + $0xc] sm:$0xf]
        %v1520 = vld [vmem:[%s1515 + $0x10] sm:$0xf]
        %v1521 = vld [vmem:[%s1515 + $0x14] sm:$0xf]
        %v1522 = vld [vmem:[%s1515 + $0x18] sm:$0xf]
        %v1523 = vld [vmem:[%s1515 + $0x1c] sm:$0xf]
        %v1524 = vld [vmem:[%s1515 + $0x20] sm:$0xf]
        %v1525 = vld [vmem:[%s1515 + $0x24] sm:$0xf]
        %v1526 = vld [vmem:[%s1515 + $0x28] sm:$0xf]
        %v1527 = vld [vmem:[%s1515 + $0x2c] sm:$0xf]
        %v1528 = vld [vmem:[%s1515 + $0x30] sm:$0xf]
        %v1529 = vld [vmem:[%s1515 + $0x34] sm:$0xf]
        %v1530 = vld [vmem:[%s1515 + $0x38] sm:$0xf]
        %v1531 = vld [vmem:[%s1515 + $0x3c] sm:$0xf]
        %v1548 = vunpack.c.l.b16 %v1516
        %v1549 = vunpack.c.l.b16 %v1517
        %v1550 = vunpack.c.l.b16 %v1518
        %v1551 = vunpack.c.l.b16 %v1519
        %v1552 = vunpack.c.l.b16 %v1520
        %v1553 = vunpack.c.l.b16 %v1521
        %v1554 = vunpack.c.l.b16 %v1522
        %v1555 = vunpack.c.l.b16 %v1523
        %v1556 = vunpack.c.l.b16 %v1524
        %v1557 = vunpack.c.l.b16 %v1525
        %v1558 = vunpack.c.l.b16 %v1526
        %v1559 = vunpack.c.l.b16 %v1527
        %v1560 = vunpack.c.l.b16 %v1528
        %v1561 = vunpack.c.l.b16 %v1529
        %v1562 = vunpack.c.l.b16 %v1530
        %v1563 = vunpack.c.l.b16 %v1531
        %v1564 = vpack.c.b16 %v1549, %v1548
        %v1565 = vpack.c.b16 %v1551, %v1550
        %v1566 = vpack.c.b16 %v1553, %v1552
        %v1567 = vpack.c.b16 %v1555, %v1554
        %v1568 = vpack.c.b16 %v1557, %v1556
        %v1569 = vpack.c.b16 %v1559, %v1558
        %v1570 = vpack.c.b16 %v1561, %v1560
        %v1571 = vpack.c.b16 %v1563, %v1562
        %1580 = vmatprep.subr.bf16.mxu0 0
        %1581 = vmatpush1.bf16.msra.mxu0 %v1564
        %1582 = vmatprep.subr.bf16.mxu0 0
        %1583 = vmatpush1.bf16.msra.mxu0 %v1565
        %1584 = vmatprep.subr.bf16.mxu0 0
        %1585 = vmatpush1.bf16.msra.mxu0 %v1566
        %1586 = vmatprep.subr.bf16.mxu0 0
        %1587 = vmatpush1.bf16.msra.mxu0 %v1567
        %1588 = vmatprep.subr.bf16.mxu0 0
        %1589 = vmatpush1.bf16.msra.mxu0 %v1568
        %1590 = vmatprep.subr.bf16.mxu0 0
        %1591 = vmatpush1.bf16.msra.mxu0 %v1569
        %1592 = vmatprep.subr.bf16.mxu0 0
        %1593 = vmatpush1.bf16.msra.mxu0 %v1570
        %1594 = vmatprep.subr.bf16.mxu0 0
        %1595 = vmatpush1.bf16.msra.mxu0 %v1571
        %1596 = vmatprep.subr.bf16.mxu0 0
        %1597 = vmatpush1.bf16.msra.mxu0 0
        %1598 = vmatprep.subr.bf16.mxu0 0
        %1599 = vmatpush1.bf16.msra.mxu0 0
        %1600 = vmatprep.subr.bf16.mxu0 0
        %1601 = vmatpush1.bf16.msra.mxu0 0
        %1602 = vmatprep.subr.bf16.mxu0 0
        %1603 = vmatpush1.bf16.msra.mxu0 0
        %1604 = vmatprep.subr.bf16.mxu0 0
        %1605 = vmatpush1.bf16.msra.mxu0 0
        %1606 = vmatprep.subr.bf16.mxu0 0
        %1607 = vmatpush1.bf16.msra.mxu0 0
        %1608 = vmatprep.subr.bf16.mxu0 0
        %1609 = vmatpush1.bf16.msra.mxu0 0
        %1610 = vmatprep.subr.bf16.mxu0 0
        %1611 = vmatpush1.bf16.msra.mxu0 0
        %1612 = vmatprep.mubr.bf16.mxu0 0
        %1613 = vmatmul.mubr.bf16.gmra.mrb[0].mxu0 %v455
        %v1614 = vpop.f32.mrb[0].mxu0
        %v1615 = vadd.f32 0.0, %v1614
        %v1616 = vpop.f32.mrb[0].mxu0
        %v1617 = vpop.f32.mrb[0].mxu0
        %v1618 = vadd.f32 0.0, %v1617
        %v1619 = vpop.f32.mrb[0].mxu0
        %1620 = vdwg.mxu0
        %s1621 = scalar_lea.vmem %s341, 704
        %v1622 = vld [vmem:[%s1621] sm:$0xf]
        %v1623 = vld [vmem:[%s1621 + $0x4] sm:$0xf]
        %v1624 = vld [vmem:[%s1621 + $0x8] sm:$0xf]
        %v1625 = vld [vmem:[%s1621 + $0xc] sm:$0xf]
        %v1626 = vld [vmem:[%s1621 + $0x10] sm:$0xf]
        %v1627 = vld [vmem:[%s1621 + $0x14] sm:$0xf]
        %v1628 = vld [vmem:[%s1621 + $0x18] sm:$0xf]
        %v1629 = vld [vmem:[%s1621 + $0x1c] sm:$0xf]
        %v1630 = vld [vmem:[%s1621 + $0x20] sm:$0xf]
        %v1631 = vld [vmem:[%s1621 + $0x24] sm:$0xf]
        %v1632 = vld [vmem:[%s1621 + $0x28] sm:$0xf]
        %v1633 = vld [vmem:[%s1621 + $0x2c] sm:$0xf]
        %v1634 = vld [vmem:[%s1621 + $0x30] sm:$0xf]
        %v1635 = vld [vmem:[%s1621 + $0x34] sm:$0xf]
        %v1636 = vld [vmem:[%s1621 + $0x38] sm:$0xf]
        %v1637 = vld [vmem:[%s1621 + $0x3c] sm:$0xf]
        %v1654 = vunpack.c.l.b16 %v1622
        %v1655 = vunpack.c.l.b16 %v1623
        %v1656 = vunpack.c.l.b16 %v1624
        %v1657 = vunpack.c.l.b16 %v1625
        %v1658 = vunpack.c.l.b16 %v1626
        %v1659 = vunpack.c.l.b16 %v1627
        %v1660 = vunpack.c.l.b16 %v1628
        %v1661 = vunpack.c.l.b16 %v1629
        %v1662 = vunpack.c.l.b16 %v1630
        %v1663 = vunpack.c.l.b16 %v1631
        %v1664 = vunpack.c.l.b16 %v1632
        %v1665 = vunpack.c.l.b16 %v1633
        %v1666 = vunpack.c.l.b16 %v1634
        %v1667 = vunpack.c.l.b16 %v1635
        %v1668 = vunpack.c.l.b16 %v1636
        %v1669 = vunpack.c.l.b16 %v1637
        %v1670 = vpack.c.b16 %v1655, %v1654
        %v1671 = vpack.c.b16 %v1657, %v1656
        %v1672 = vpack.c.b16 %v1659, %v1658
        %v1673 = vpack.c.b16 %v1661, %v1660
        %v1674 = vpack.c.b16 %v1663, %v1662
        %v1675 = vpack.c.b16 %v1665, %v1664
        %v1676 = vpack.c.b16 %v1667, %v1666
        %v1677 = vpack.c.b16 %v1669, %v1668
        %1686 = vmatprep.subr.bf16.mxu0 0
        %1687 = vmatpush1.bf16.msra.mxu0 %v1670
        %1688 = vmatprep.subr.bf16.mxu0 0
        %1689 = vmatpush1.bf16.msra.mxu0 %v1671
        %1690 = vmatprep.subr.bf16.mxu0 0
        %1691 = vmatpush1.bf16.msra.mxu0 %v1672
        %1692 = vmatprep.subr.bf16.mxu0 0
        %1693 = vmatpush1.bf16.msra.mxu0 %v1673
        %1694 = vmatprep.subr.bf16.mxu0 0
        %1695 = vmatpush1.bf16.msra.mxu0 %v1674
        %1696 = vmatprep.subr.bf16.mxu0 0
        %1697 = vmatpush1.bf16.msra.mxu0 %v1675
        %1698 = vmatprep.subr.bf16.mxu0 0
        %1699 = vmatpush1.bf16.msra.mxu0 %v1676
        %1700 = vmatprep.subr.bf16.mxu0 0
        %1701 = vmatpush1.bf16.msra.mxu0 %v1677
        %1702 = vmatprep.subr.bf16.mxu0 0
        %1703 = vmatpush1.bf16.msra.mxu0 0
        %1704 = vmatprep.subr.bf16.mxu0 0
        %1705 = vmatpush1.bf16.msra.mxu0 0
        %1706 = vmatprep.subr.bf16.mxu0 0
        %1707 = vmatpush1.bf16.msra.mxu0 0
        %1708 = vmatprep.subr.bf16.mxu0 0
        %1709 = vmatpush1.bf16.msra.mxu0 0
        %1710 = vmatprep.subr.bf16.mxu0 0
        %1711 = vmatpush1.bf16.msra.mxu0 0
        %1712 = vmatprep.subr.bf16.mxu0 0
        %1713 = vmatpush1.bf16.msra.mxu0 0
        %1714 = vmatprep.subr.bf16.mxu0 0
        %1715 = vmatpush1.bf16.msra.mxu0 0
        %1716 = vmatprep.subr.bf16.mxu0 0
        %1717 = vmatpush1.bf16.msra.mxu0 0
        %1718 = vmatprep.mubr.bf16.mxu0 0
        %1719 = vmatmul.mubr.bf16.gmra.mrb[0].mxu0 %v455
        %v1720 = vpop.f32.mrb[0].mxu0
        %v1721 = vadd.f32 0.0, %v1720
        %v1722 = vpop.f32.mrb[0].mxu0
        %v1723 = vpop.f32.mrb[0].mxu0
        %v1724 = vadd.f32 0.0, %v1723
        %v1725 = vpop.f32.mrb[0].mxu0
        %1726 = vdwg.mxu0
        %v1727 = vmul.f32 %v555, 0.17677669
        %v1728 = vmul.f32 %v558, 0.17677669
        %v1729 = vmul.f32 %v661, 0.17677669
        %v1730 = vmul.f32 %v664, 0.17677669
        %v1731 = vmul.f32 %v767, 0.17677669
        %v1732 = vmul.f32 %v770, 0.17677669
        %v1733 = vmul.f32 %v873, 0.17677669
        %v1734 = vmul.f32 %v876, 0.17677669
        %v1735 = vpack.c.bf16 %v1728, %v1727
        %v1736 = vpack.c.bf16 %v1730, %v1729
        %v1737 = vpack.c.bf16 %v1732, %v1731
        %v1738 = vpack.c.bf16 %v1734, %v1733
        %v1739 = vpack.c.bf16 %v982, %v979
        %v1740 = vpack.c.bf16 %v1088, %v1085
        %v1741 = vpack.c.bf16 %v1194, %v1191
        %v1742 = vpack.c.bf16 %v1300, %v1297
        %v1743 = vpack.c.bf16 %v1406, %v1403
        %v1744 = vpack.c.bf16 %v1512, %v1509
        %v1745 = vpack.c.bf16 %v1618, %v1615
        %v1746 = vpack.c.bf16 %v1724, %v1721
        %vm1747 = vcmask 261120
        %v1749 = vsel %vm1747, %v1735, 0
        %v1752 = vsel %vm1747, %v1739, 0
        %1754 = vmatprep.subr.bf16.mxu0 0
        %1755 = vmatpush1.bf16.xpose.msra.mxu0 %v1752
        %1756 = vmatprep.subr.bf16.mxu0 0
        %1757 = vmatpush1.bf16.xpose.msra.mxu0 0
        %1758 = vmatprep.subr.bf16.mxu0 0
        %1759 = vmatpush1.bf16.xpose.msra.mxu0 0
        %1760 = vmatprep.subr.bf16.mxu0 0
        %1761 = vmatpush1.bf16.xpose.msra.mxu0 0
        %1762 = vmatprep.subr.bf16.mxu0 0
        %1763 = vmatpush1.bf16.xpose.msra.mxu0 0
        %1764 = vmatprep.subr.bf16.mxu0 0
        %1765 = vmatpush1.bf16.xpose.msra.mxu0 0
        %1766 = vmatprep.subr.bf16.mxu0 0
        %1767 = vmatpush1.bf16.xpose.msra.mxu0 0
        %1768 = vmatprep.subr.bf16.mxu0 0
        %1769 = vmatpush1.bf16.xpose.msra.mxu0 0
        %1770 = vmatprep.subr.bf16.mxu0 0
        %1771 = vmatpush1.bf16.xpose.msra.mxu0 0
        %1772 = vmatprep.subr.bf16.mxu0 0
        %1773 = vmatpush1.bf16.xpose.msra.mxu0 0
        %1774 = vmatprep.subr.bf16.mxu0 0
        %1775 = vmatpush1.bf16.xpose.msra.mxu0 0
        %1776 = vmatprep.subr.bf16.mxu0 0
        %1777 = vmatpush1.bf16.xpose.msra.mxu0 0
        %1778 = vmatprep.subr.bf16.mxu0 0
        %1779 = vmatpush1.bf16.xpose.msra.mxu0 0
        %1780 = vmatprep.subr.bf16.mxu0 0
        %1781 = vmatpush1.bf16.xpose.msra.mxu0 0
        %1782 = vmatprep.subr.bf16.mxu0 0
        %1783 = vmatpush1.bf16.xpose.msra.mxu0 0
        %1784 = vmatprep.subr.bf16.mxu0 0
        %1785 = vmatpush1.bf16.xpose.msra.mxu0 0
        %1786 = vmatprep.mubr.bf16.mxu0 0
        %1787 = vmatmul.mubr.bf16.gmra.mrb[0].mxu0 %v1749
        %v1788 = vpop.f32.mrb[0].mxu0
        %v1789 = vadd.f32 0.0, %v1788
        %v1790 = vpop.f32.mrb[0].mxu0
        %v1791 = vpop.f32.mrb[0].mxu0
        %v1792 = vadd.f32 0.0, %v1791
        %v1793 = vpop.f32.mrb[0].mxu0
        %1794 = vdwg.mxu0
        %v1796 = vsel %vm1747, %v1736, 0
        %v1799 = vsel %vm1747, %v1740, 0
        %1801 = vmatprep.subr.bf16.mxu0 0
        %1802 = vmatpush1.bf16.xpose.msra.mxu0 %v1799
        %1803 = vmatprep.subr.bf16.mxu0 0
        %1804 = vmatpush1.bf16.xpose.msra.mxu0 0
        %1805 = vmatprep.subr.bf16.mxu0 0
        %1806 = vmatpush1.bf16.xpose.msra.mxu0 0
        %1807 = vmatprep.subr.bf16.mxu0 0
        %1808 = vmatpush1.bf16.xpose.msra.mxu0 0
        %1809 = vmatprep.subr.bf16.mxu0 0
        %1810 = vmatpush1.bf16.xpose.msra.mxu0 0
        %1811 = vmatprep.subr.bf16.mxu0 0
        %1812 = vmatpush1.bf16.xpose.msra.mxu0 0
        %1813 = vmatprep.subr.bf16.mxu0 0
        %1814 = vmatpush1.bf16.xpose.msra.mxu0 0
        %1815 = vmatprep.subr.bf16.mxu0 0
        %1816 = vmatpush1.bf16.xpose.msra.mxu0 0
        %1817 = vmatprep.subr.bf16.mxu0 0
        %1818 = vmatpush1.bf16.xpose.msra.mxu0 0
        %1819 = vmatprep.subr.bf16.mxu0 0
        %1820 = vmatpush1.bf16.xpose.msra.mxu0 0
        %1821 = vmatprep.subr.bf16.mxu0 0
        %1822 = vmatpush1.bf16.xpose.msra.mxu0 0
        %1823 = vmatprep.subr.bf16.mxu0 0
        %1824 = vmatpush1.bf16.xpose.msra.mxu0 0
        %1825 = vmatprep.subr.bf16.mxu0 0
        %1826 = vmatpush1.bf16.xpose.msra.mxu0 0
        %1827 = vmatprep.subr.bf16.mxu0 0
        %1828 = vmatpush1.bf16.xpose.msra.mxu0 0
        %1829 = vmatprep.subr.bf16.mxu0 0
        %1830 = vmatpush1.bf16.xpose.msra.mxu0 0
        %1831 = vmatprep.subr.bf16.mxu0 0
        %1832 = vmatpush1.bf16.xpose.msra.mxu0 0
        %1833 = vmatprep.mubr.bf16.mxu0 0
        %1834 = vmatmul.mubr.bf16.gmra.mrb[0].mxu0 %v1796
        %v1835 = vpop.f32.mrb[0].mxu0
        %v1836 = vadd.f32 0.0, %v1835
        %v1837 = vpop.f32.mrb[0].mxu0
        %v1838 = vpop.f32.mrb[0].mxu0
        %v1839 = vadd.f32 0.0, %v1838
        %v1840 = vpop.f32.mrb[0].mxu0
        %1841 = vdwg.mxu0
        %v1843 = vsel %vm1747, %v1737, 0
        %v1846 = vsel %vm1747, %v1741, 0
        %1848 = vmatprep.subr.bf16.mxu0 0
        %1849 = vmatpush1.bf16.xpose.msra.mxu0 %v1846
        %1850 = vmatprep.subr.bf16.mxu0 0
        %1851 = vmatpush1.bf16.xpose.msra.mxu0 0
        %1852 = vmatprep.subr.bf16.mxu0 0
        %1853 = vmatpush1.bf16.xpose.msra.mxu0 0
        %1854 = vmatprep.subr.bf16.mxu0 0
        %1855 = vmatpush1.bf16.xpose.msra.mxu0 0
        %1856 = vmatprep.subr.bf16.mxu0 0
        %1857 = vmatpush1.bf16.xpose.msra.mxu0 0
        %1858 = vmatprep.subr.bf16.mxu0 0
        %1859 = vmatpush1.bf16.xpose.msra.mxu0 0
        %1860 = vmatprep.subr.bf16.mxu0 0
        %1861 = vmatpush1.bf16.xpose.msra.mxu0 0
        %1862 = vmatprep.subr.bf16.mxu0 0
        %1863 = vmatpush1.bf16.xpose.msra.mxu0 0
        %1864 = vmatprep.subr.bf16.mxu0 0
        %1865 = vmatpush1.bf16.xpose.msra.mxu0 0
        %1866 = vmatprep.subr.bf16.mxu0 0
        %1867 = vmatpush1.bf16.xpose.msra.mxu0 0
        %1868 = vmatprep.subr.bf16.mxu0 0
        %1869 = vmatpush1.bf16.xpose.msra.mxu0 0
        %1870 = vmatprep.subr.bf16.mxu0 0
        %1871 = vmatpush1.bf16.xpose.msra.mxu0 0
        %1872 = vmatprep.subr.bf16.mxu0 0
        %1873 = vmatpush1.bf16.xpose.msra.mxu0 0
        %1874 = vmatprep.subr.bf16.mxu0 0
        %1875 = vmatpush1.bf16.xpose.msra.mxu0 0
        %1876 = vmatprep.subr.bf16.mxu0 0
        %1877 = vmatpush1.bf16.xpose.msra.mxu0 0
        %1878 = vmatprep.subr.bf16.mxu0 0
        %1879 = vmatpush1.bf16.xpose.msra.mxu0 0
        %1880 = vmatprep.mubr.bf16.mxu0 0
        %1881 = vmatmul.mubr.bf16.gmra.mrb[0].mxu0 %v1843
        %v1882 = vpop.f32.mrb[0].mxu0
        %v1883 = vadd.f32 0.0, %v1882
        %v1884 = vpop.f32.mrb[0].mxu0
        %v1885 = vpop.f32.mrb[0].mxu0
        %v1886 = vadd.f32 0.0, %v1885
        %v1887 = vpop.f32.mrb[0].mxu0
        %1888 = vdwg.mxu0
        %v1890 = vsel %vm1747, %v1738, 0
        %v1893 = vsel %vm1747, %v1742, 0
        %1895 = vmatprep.subr.bf16.mxu0 0
        %1896 = vmatpush1.bf16.xpose.msra.mxu0 %v1893
        %1897 = vmatprep.subr.bf16.mxu0 0
        %1898 = vmatpush1.bf16.xpose.msra.mxu0 0
        %1899 = vmatprep.subr.bf16.mxu0 0
        %1900 = vmatpush1.bf16.xpose.msra.mxu0 0
        %1901 = vmatprep.subr.bf16.mxu0 0
        %1902 = vmatpush1.bf16.xpose.msra.mxu0 0
        %1903 = vmatprep.subr.bf16.mxu0 0
        %1904 = vmatpush1.bf16.xpose.msra.mxu0 0
        %1905 = vmatprep.subr.bf16.mxu0 0
        %1906 = vmatpush1.bf16.xpose.msra.mxu0 0
        %1907 = vmatprep.subr.bf16.mxu0 0
        %1908 = vmatpush1.bf16.xpose.msra.mxu0 0
        %1909 = vmatprep.subr.bf16.mxu0 0
        %1910 = vmatpush1.bf16.xpose.msra.mxu0 0
        %1911 = vmatprep.subr.bf16.mxu0 0
        %1912 = vmatpush1.bf16.xpose.msra.mxu0 0
        %1913 = vmatprep.subr.bf16.mxu0 0
        %1914 = vmatpush1.bf16.xpose.msra.mxu0 0
        %1915 = vmatprep.subr.bf16.mxu0 0
        %1916 = vmatpush1.bf16.xpose.msra.mxu0 0
        %1917 = vmatprep.subr.bf16.mxu0 0
        %1918 = vmatpush1.bf16.xpose.msra.mxu0 0
        %1919 = vmatprep.subr.bf16.mxu0 0
        %1920 = vmatpush1.bf16.xpose.msra.mxu0 0
        %1921 = vmatprep.subr.bf16.mxu0 0
        %1922 = vmatpush1.bf16.xpose.msra.mxu0 0
        %1923 = vmatprep.subr.bf16.mxu0 0
        %1924 = vmatpush1.bf16.xpose.msra.mxu0 0
        %1925 = vmatprep.subr.bf16.mxu0 0
        %1926 = vmatpush1.bf16.xpose.msra.mxu0 0
        %1927 = vmatprep.mubr.bf16.mxu0 0
        %1928 = vmatmul.mubr.bf16.gmra.mrb[0].mxu0 %v1890
        %v1929 = vpop.f32.mrb[0].mxu0
        %v1930 = vadd.f32 0.0, %v1929
        %v1931 = vpop.f32.mrb[0].mxu0
        %v1932 = vpop.f32.mrb[0].mxu0
        %v1933 = vadd.f32 0.0, %v1932
        %v1934 = vpop.f32.mrb[0].mxu0
        %1935 = vdwg.mxu0
        %vm1936 = vcmask 130048
        %v1937 = vsel %vm1936, %v1789, -inf
        %1938 = vmax.xlane.f32.xlu0 %v1937
        %v1939 = vpop.xlane.xlu0 %1938
        %v1940 = vsel %vm1936, %v1792, -inf
        %1941 = vmax.xlane.f32.xlu0 %v1940
        %v1942 = vpop.xlane.xlu0 %1941
        %v1943 = vsel %vm1936, %v1836, -inf
        %1944 = vmax.xlane.f32.xlu0 %v1943
        %v1945 = vpop.xlane.xlu0 %1944
        %v1946 = vsel %vm1936, %v1839, -inf
        %1947 = vmax.xlane.f32.xlu0 %v1946
        %v1948 = vpop.xlane.xlu0 %1947
        %v1949 = vsel %vm1936, %v1883, -inf
        %1950 = vmax.xlane.f32.xlu0 %v1949
        %v1951 = vpop.xlane.xlu0 %1950
        %v1952 = vsel %vm1936, %v1886, -inf
        %1953 = vmax.xlane.f32.xlu0 %v1952
        %v1954 = vpop.xlane.xlu0 %1953
        %v1955 = vsel %vm1936, %v1930, -inf
        %1956 = vmax.xlane.f32.xlu0 %v1955
        %v1957 = vpop.xlane.xlu0 %1956
        %v1958 = vsel %vm1936, %v1933, -inf
        %1959 = vmax.xlane.f32.xlu0 %v1958
        %v1960 = vpop.xlane.xlu0 %1959
        %v1961 = vsub.f32 %v1789, %v1939
        %v1962 = vsub.f32 %v1792, %v1942
        %v1963 = vsub.f32 %v1836, %v1945
        %v1964 = vsub.f32 %v1839, %v1948
        %v1965 = vsub.f32 %v1883, %v1951
        %v1966 = vsub.f32 %v1886, %v1954
        %v1967 = vsub.f32 %v1930, %v1957
        %v1968 = vsub.f32 %v1933, %v1960
        %v1969 = vmul.f32 %v1961, 1.442695
        %v1970 = vpow.pop %v1969
        %v1971 = vmul.f32 %v1962, 1.442695
        %v1972 = vpow.pop %v1971
        %v1973 = vmul.f32 %v1963, 1.442695
        %v1974 = vpow.pop %v1973
        %v1975 = vmul.f32 %v1964, 1.442695
        %v1976 = vpow.pop %v1975
        %v1977 = vmul.f32 %v1965, 1.442695
        %v1978 = vpow.pop %v1977
        %v1979 = vmul.f32 %v1966, 1.442695
        %v1980 = vpow.pop %v1979
        %v1981 = vmul.f32 %v1967, 1.442695
        %v1982 = vpow.pop %v1981
        %v1983 = vmul.f32 %v1968, 1.442695
        %v1984 = vpow.pop %v1983
        %v1985 = vsel %vm1936, %v1970, 0.0
        %1986 = vadd.xlane.f32.xlu0 %v1985
        %v1987 = vpop.xlane.xlu0 %1986
        %v1988 = vsel %vm1936, %v1972, 0.0
        %1989 = vadd.xlane.f32.xlu0 %v1988
        %v1990 = vpop.xlane.xlu0 %1989
        %v1991 = vsel %vm1936, %v1974, 0.0
        %1992 = vadd.xlane.f32.xlu0 %v1991
        %v1993 = vpop.xlane.xlu0 %1992
        %v1994 = vsel %vm1936, %v1976, 0.0
        %1995 = vadd.xlane.f32.xlu0 %v1994
        %v1996 = vpop.xlane.xlu0 %1995
        %v1997 = vsel %vm1936, %v1978, 0.0
        %1998 = vadd.xlane.f32.xlu0 %v1997
        %v1999 = vpop.xlane.xlu0 %1998
        %v2000 = vsel %vm1936, %v1980, 0.0
        %2001 = vadd.xlane.f32.xlu0 %v2000
        %v2002 = vpop.xlane.xlu0 %2001
        %v2003 = vsel %vm1936, %v1982, 0.0
        %2004 = vadd.xlane.f32.xlu0 %v2003
        %v2005 = vpop.xlane.xlu0 %2004
        %v2006 = vsel %vm1936, %v1984, 0.0
        %2007 = vadd.xlane.f32.xlu0 %v2006
        %v2008 = vpop.xlane.xlu0 %2007
        %v2009 = vrcp.pop %v1987
        %v2010 = vrcp.pop %v1990
        %v2011 = vrcp.pop %v1993
        %v2012 = vrcp.pop %v1996
        %v2013 = vrcp.pop %v1999
        %v2014 = vrcp.pop %v2002
        %v2015 = vrcp.pop %v2005
        %v2016 = vrcp.pop %v2008
        %v2017 = vmul.f32 %v1970, %v2009
        %v2018 = vmul.f32 %v1972, %v2010
        %v2019 = vmul.f32 %v1974, %v2011
        %v2020 = vmul.f32 %v1976, %v2012
        %v2021 = vmul.f32 %v1978, %v2013
        %v2022 = vmul.f32 %v1980, %v2014
        %v2023 = vmul.f32 %v1982, %v2015
        %v2024 = vmul.f32 %v1984, %v2016
        %v2025 = vpack.c.bf16 %v2018, %v2017
        %v2026 = vpack.c.bf16 %v2020, %v2019
        %v2027 = vpack.c.bf16 %v2022, %v2021
        %v2028 = vpack.c.bf16 %v2024, %v2023
        %v2030 = vsel %vm1936, %v2025, 0
        %2032 = vmatprep.subr.bf16.mxu0 0
        %2033 = vmatpush1.bf16.msra.mxu0 %v1743
        %2034 = vmatprep.subr.bf16.mxu0 0
        %2035 = vmatpush1.bf16.msra.mxu0 0
        %2036 = vmatprep.subr.bf16.mxu0 0
        %2037 = vmatpush1.bf16.msra.mxu0 0
        %2038 = vmatprep.subr.bf16.mxu0 0
        %2039 = vmatpush1.bf16.msra.mxu0 0
        %2040 = vmatprep.subr.bf16.mxu0 0
        %2041 = vmatpush1.bf16.msra.mxu0 0
        %2042 = vmatprep.subr.bf16.mxu0 0
        %2043 = vmatpush1.bf16.msra.mxu0 0
        %2044 = vmatprep.subr.bf16.mxu0 0
        %2045 = vmatpush1.bf16.msra.mxu0 0
        %2046 = vmatprep.subr.bf16.mxu0 0
        %2047 = vmatpush1.bf16.msra.mxu0 0
        %2048 = vmatprep.subr.bf16.mxu0 0
        %2049 = vmatpush1.bf16.msra.mxu0 0
        %2050 = vmatprep.subr.bf16.mxu0 0
        %2051 = vmatpush1.bf16.msra.mxu0 0
        %2052 = vmatprep.subr.bf16.mxu0 0
        %2053 = vmatpush1.bf16.msra.mxu0 0
        %2054 = vmatprep.subr.bf16.mxu0 0
        %2055 = vmatpush1.bf16.msra.mxu0 0
        %2056 = vmatprep.subr.bf16.mxu0 0
        %2057 = vmatpush1.bf16.msra.mxu0 0
        %2058 = vmatprep.subr.bf16.mxu0 0
        %2059 = vmatpush1.bf16.msra.mxu0 0
        %2060 = vmatprep.subr.bf16.mxu0 0
        %2061 = vmatpush1.bf16.msra.mxu0 0
        %2062 = vmatprep.subr.bf16.mxu0 0
        %2063 = vmatpush1.bf16.msra.mxu0 0
        %2064 = vmatprep.mubr.bf16.mxu0 0
        %2065 = vmatmul.mubr.bf16.gmra.mrb[0].mxu0 %v2030
        %v2066 = vpop.f32.mrb[0].mxu0
        %v2067 = vadd.f32 0.0, %v2066
        %v2068 = vpop.f32.mrb[0].mxu0
        %v2069 = vpop.f32.mrb[0].mxu0
        %v2070 = vadd.f32 0.0, %v2069
        %v2071 = vpop.f32.mrb[0].mxu0
        %2072 = vdwg.mxu0
        %v2074 = vsel %vm1936, %v2026, 0
        %2076 = vmatprep.subr.bf16.mxu0 0
        %2077 = vmatpush1.bf16.msra.mxu0 %v1744
        %2078 = vmatprep.subr.bf16.mxu0 0
        %2079 = vmatpush1.bf16.msra.mxu0 0
        %2080 = vmatprep.subr.bf16.mxu0 0
        %2081 = vmatpush1.bf16.msra.mxu0 0
        %2082 = vmatprep.subr.bf16.mxu0 0
        %2083 = vmatpush1.bf16.msra.mxu0 0
        %2084 = vmatprep.subr.bf16.mxu0 0
        %2085 = vmatpush1.bf16.msra.mxu0 0
        %2086 = vmatprep.subr.bf16.mxu0 0
        %2087 = vmatpush1.bf16.msra.mxu0 0
        %2088 = vmatprep.subr.bf16.mxu0 0
        %2089 = vmatpush1.bf16.msra.mxu0 0
        %2090 = vmatprep.subr.bf16.mxu0 0
        %2091 = vmatpush1.bf16.msra.mxu0 0
        %2092 = vmatprep.subr.bf16.mxu0 0
        %2093 = vmatpush1.bf16.msra.mxu0 0
        %2094 = vmatprep.subr.bf16.mxu0 0
        %2095 = vmatpush1.bf16.msra.mxu0 0
        %2096 = vmatprep.subr.bf16.mxu0 0
        %2097 = vmatpush1.bf16.msra.mxu0 0
        %2098 = vmatprep.subr.bf16.mxu0 0
        %2099 = vmatpush1.bf16.msra.mxu0 0
        %2100 = vmatprep.subr.bf16.mxu0 0
        %2101 = vmatpush1.bf16.msra.mxu0 0
        %2102 = vmatprep.subr.bf16.mxu0 0
        %2103 = vmatpush1.bf16.msra.mxu0 0
        %2104 = vmatprep.subr.bf16.mxu0 0
        %2105 = vmatpush1.bf16.msra.mxu0 0
        %2106 = vmatprep.subr.bf16.mxu0 0
        %2107 = vmatpush1.bf16.msra.mxu0 0
        %2108 = vmatprep.mubr.bf16.mxu0 0
        %2109 = vmatmul.mubr.bf16.gmra.mrb[0].mxu0 %v2074
        %v2110 = vpop.f32.mrb[0].mxu0
        %v2111 = vadd.f32 0.0, %v2110
        %v2112 = vpop.f32.mrb[0].mxu0
        %v2113 = vpop.f32.mrb[0].mxu0
        %v2114 = vadd.f32 0.0, %v2113
        %v2115 = vpop.f32.mrb[0].mxu0
        %2116 = vdwg.mxu0
        %v2118 = vsel %vm1936, %v2027, 0
        %2120 = vmatprep.subr.bf16.mxu0 0
        %2121 = vmatpush1.bf16.msra.mxu0 %v1745
        %2122 = vmatprep.subr.bf16.mxu0 0
        %2123 = vmatpush1.bf16.msra.mxu0 0
        %2124 = vmatprep.subr.bf16.mxu0 0
        %2125 = vmatpush1.bf16.msra.mxu0 0
        %2126 = vmatprep.subr.bf16.mxu0 0
        %2127 = vmatpush1.bf16.msra.mxu0 0
        %2128 = vmatprep.subr.bf16.mxu0 0
        %2129 = vmatpush1.bf16.msra.mxu0 0
        %2130 = vmatprep.subr.bf16.mxu0 0
        %2131 = vmatpush1.bf16.msra.mxu0 0
        %2132 = vmatprep.subr.bf16.mxu0 0
        %2133 = vmatpush1.bf16.msra.mxu0 0
        %2134 = vmatprep.subr.bf16.mxu0 0
        %2135 = vmatpush1.bf16.msra.mxu0 0
        %2136 = vmatprep.subr.bf16.mxu0 0
        %2137 = vmatpush1.bf16.msra.mxu0 0
        %2138 = vmatprep.subr.bf16.mxu0 0
        %2139 = vmatpush1.bf16.msra.mxu0 0
        %2140 = vmatprep.subr.bf16.mxu0 0
        %2141 = vmatpush1.bf16.msra.mxu0 0
        %2142 = vmatprep.subr.bf16.mxu0 0
        %2143 = vmatpush1.bf16.msra.mxu0 0
        %2144 = vmatprep.subr.bf16.mxu0 0
        %2145 = vmatpush1.bf16.msra.mxu0 0
        %2146 = vmatprep.subr.bf16.mxu0 0
        %2147 = vmatpush1.bf16.msra.mxu0 0
        %2148 = vmatprep.subr.bf16.mxu0 0
        %2149 = vmatpush1.bf16.msra.mxu0 0
        %2150 = vmatprep.subr.bf16.mxu0 0
        %2151 = vmatpush1.bf16.msra.mxu0 0
        %2152 = vmatprep.mubr.bf16.mxu0 0
        %2153 = vmatmul.mubr.bf16.gmra.mrb[0].mxu0 %v2118
        %v2154 = vpop.f32.mrb[0].mxu0
        %v2155 = vadd.f32 0.0, %v2154
        %v2156 = vpop.f32.mrb[0].mxu0
        %v2157 = vpop.f32.mrb[0].mxu0
        %v2158 = vadd.f32 0.0, %v2157
        %v2159 = vpop.f32.mrb[0].mxu0
        %2160 = vdwg.mxu0
        %v2162 = vsel %vm1936, %v2028, 0
        %2164 = vmatprep.subr.bf16.mxu0 0
        %2165 = vmatpush1.bf16.msra.mxu0 %v1746
        %2166 = vmatprep.subr.bf16.mxu0 0
        %2167 = vmatpush1.bf16.msra.mxu0 0
        %2168 = vmatprep.subr.bf16.mxu0 0
        %2169 = vmatpush1.bf16.msra.mxu0 0
        %2170 = vmatprep.subr.bf16.mxu0 0
        %2171 = vmatpush1.bf16.msra.mxu0 0
        %2172 = vmatprep.subr.bf16.mxu0 0
        %2173 = vmatpush1.bf16.msra.mxu0 0
        %2174 = vmatprep.subr.bf16.mxu0 0
        %2175 = vmatpush1.bf16.msra.mxu0 0
        %2176 = vmatprep.subr.bf16.mxu0 0
        %2177 = vmatpush1.bf16.msra.mxu0 0
        %2178 = vmatprep.subr.bf16.mxu0 0
        %2179 = vmatpush1.bf16.msra.mxu0 0
        %2180 = vmatprep.subr.bf16.mxu0 0
        %2181 = vmatpush1.bf16.msra.mxu0 0
        %2182 = vmatprep.subr.bf16.mxu0 0
        %2183 = vmatpush1.bf16.msra.mxu0 0
        %2184 = vmatprep.subr.bf16.mxu0 0
        %2185 = vmatpush1.bf16.msra.mxu0 0
        %2186 = vmatprep.subr.bf16.mxu0 0
        %2187 = vmatpush1.bf16.msra.mxu0 0
        %2188 = vmatprep.subr.bf16.mxu0 0
        %2189 = vmatpush1.bf16.msra.mxu0 0
        %2190 = vmatprep.subr.bf16.mxu0 0
        %2191 = vmatpush1.bf16.msra.mxu0 0
        %2192 = vmatprep.subr.bf16.mxu0 0
        %2193 = vmatpush1.bf16.msra.mxu0 0
        %2194 = vmatprep.subr.bf16.mxu0 0
        %2195 = vmatpush1.bf16.msra.mxu0 0
        %2196 = vmatprep.mubr.bf16.mxu0 0
        %2197 = vmatmul.mubr.bf16.gmra.mrb[0].mxu0 %v2162
        %v2198 = vpop.f32.mrb[0].mxu0
        %v2199 = vadd.f32 0.0, %v2198
        %v2200 = vpop.f32.mrb[0].mxu0
        %v2201 = vpop.f32.mrb[0].mxu0
        %v2202 = vadd.f32 0.0, %v2201
        %v2203 = vpop.f32.mrb[0].mxu0
        %2204 = vdwg.mxu0
        %2207 = vrot.lane.b32.xlu0 %v2111, 32
        %v2208 = vpop.permute.xlu0 %2207
        %2209 = vrot.lane.b32.xlu0 %v2114, 32
        %v2210 = vpop.permute.xlu0 %2209
        %2215 = vrot.lane.b32.xlu0 %v2155, 64
        %v2216 = vpop.permute.xlu0 %2215
        %2217 = vrot.lane.b32.xlu0 %v2158, 64
        %v2218 = vpop.permute.xlu0 %2217
        %2223 = vrot.lane.b32.xlu0 %v2199, 96
        %v2224 = vpop.permute.xlu0 %2223
        %2225 = vrot.lane.b32.xlu0 %v2202, 96
        %v2226 = vpop.permute.xlu0 %2225
        %v2229 = vsel %vm1747, %v2067, %v2208
        %v2230 = vsel %vm1747, %v2070, %v2210
        %vm2231 = vcmask 523264
        %v2232 = vsel %vm2231, %v2229, %v2216
        %v2233 = vsel %vm2231, %v2230, %v2218
        %vm2234 = vcmask 785408
        %v2235 = vsel %vm2234, %v2232, %v2224
        %v2236 = vsel %vm2234, %v2233, %v2226
        %v2237 = vpack.c.bf16 %v2236, %v2235
        %v2238 = vld [vmem:[%s346] sm:$0xf]
        %v2239 = vld [vmem:[%s346 + $0x4] sm:$0xf]
        %v2240 = vld [vmem:[%s346 + $0x8] sm:$0xf]
        %v2241 = vld [vmem:[%s346 + $0xc] sm:$0xf]
        %v2242 = vld [vmem:[%s346 + $0x10] sm:$0xf]
        %v2243 = vld [vmem:[%s346 + $0x14] sm:$0xf]
        %v2244 = vld [vmem:[%s346 + $0x18] sm:$0xf]
        %v2245 = vld [vmem:[%s346 + $0x1c] sm:$0xf]
        %v2246 = vld [vmem:[%s346 + $0x20] sm:$0xf]
        %v2247 = vld [vmem:[%s346 + $0x24] sm:$0xf]
        %v2248 = vld [vmem:[%s346 + $0x28] sm:$0xf]
        %v2249 = vld [vmem:[%s346 + $0x2c] sm:$0xf]
        %v2250 = vld [vmem:[%s346 + $0x30] sm:$0xf]
        %v2251 = vld [vmem:[%s346 + $0x34] sm:$0xf]
        %v2252 = vld [vmem:[%s346 + $0x38] sm:$0xf]
        %v2253 = vld [vmem:[%s346 + $0x3c] sm:$0xf]
        %v2270 = vunpack.c.l.b16 %v2238
        %v2271 = vunpack.c.l.b16 %v2239
        %v2272 = vunpack.c.l.b16 %v2240
        %v2273 = vunpack.c.l.b16 %v2241
        %v2274 = vunpack.c.l.b16 %v2242
        %v2275 = vunpack.c.l.b16 %v2243
        %v2276 = vunpack.c.l.b16 %v2244
        %v2277 = vunpack.c.l.b16 %v2245
        %v2278 = vunpack.c.l.b16 %v2246
        %v2279 = vunpack.c.l.b16 %v2247
        %v2280 = vunpack.c.l.b16 %v2248
        %v2281 = vunpack.c.l.b16 %v2249
        %v2282 = vunpack.c.l.b16 %v2250
        %v2283 = vunpack.c.l.b16 %v2251
        %v2284 = vunpack.c.l.b16 %v2252
        %v2285 = vunpack.c.l.b16 %v2253
        %v2286 = vpack.c.b16 %v2271, %v2270
        %v2287 = vpack.c.b16 %v2273, %v2272
        %v2288 = vpack.c.b16 %v2275, %v2274
        %v2289 = vpack.c.b16 %v2277, %v2276
        %v2290 = vpack.c.b16 %v2279, %v2278
        %v2291 = vpack.c.b16 %v2281, %v2280
        %v2292 = vpack.c.b16 %v2283, %v2282
        %v2293 = vpack.c.b16 %v2285, %v2284
        %2302 = vmatprep.subr.bf16.mxu0 0
        %2303 = vmatpush1.bf16.msra.mxu0 %v2286
        %2304 = vmatprep.subr.bf16.mxu0 0
        %2305 = vmatpush1.bf16.msra.mxu0 %v2287
        %2306 = vmatprep.subr.bf16.mxu0 0
        %2307 = vmatpush1.bf16.msra.mxu0 %v2288
        %2308 = vmatprep.subr.bf16.mxu0 0
        %2309 = vmatpush1.bf16.msra.mxu0 %v2289
        %2310 = vmatprep.subr.bf16.mxu0 0
        %2311 = vmatpush1.bf16.msra.mxu0 %v2290
        %2312 = vmatprep.subr.bf16.mxu0 0
        %2313 = vmatpush1.bf16.msra.mxu0 %v2291
        %2314 = vmatprep.subr.bf16.mxu0 0
        %2315 = vmatpush1.bf16.msra.mxu0 %v2292
        %2316 = vmatprep.subr.bf16.mxu0 0
        %2317 = vmatpush1.bf16.msra.mxu0 %v2293
        %2318 = vmatprep.subr.bf16.mxu0 0
        %2319 = vmatpush1.bf16.msra.mxu0 0
        %2320 = vmatprep.subr.bf16.mxu0 0
        %2321 = vmatpush1.bf16.msra.mxu0 0
        %2322 = vmatprep.subr.bf16.mxu0 0
        %2323 = vmatpush1.bf16.msra.mxu0 0
        %2324 = vmatprep.subr.bf16.mxu0 0
        %2325 = vmatpush1.bf16.msra.mxu0 0
        %2326 = vmatprep.subr.bf16.mxu0 0
        %2327 = vmatpush1.bf16.msra.mxu0 0
        %2328 = vmatprep.subr.bf16.mxu0 0
        %2329 = vmatpush1.bf16.msra.mxu0 0
        %2330 = vmatprep.subr.bf16.mxu0 0
        %2331 = vmatpush1.bf16.msra.mxu0 0
        %2332 = vmatprep.subr.bf16.mxu0 0
        %2333 = vmatpush1.bf16.msra.mxu0 0
        %2334 = vmatprep.mubr.bf16.mxu0 0
        %2335 = vmatmul.mubr.bf16.gmra.mrb[0].mxu0 %v2237
        %v2336 = vpop.f32.mrb[0].mxu0
        %v2337 = vadd.f32 0.0, %v2336
        %v2338 = vpop.f32.mrb[0].mxu0
        %v2339 = vpop.f32.mrb[0].mxu0
        %v2340 = vadd.f32 0.0, %v2339
        %v2341 = vpop.f32.mrb[0].mxu0
        %2342 = vdwg.mxu0
        %v2343 = vadd.f32 %v412, %v2337
        %v2344 = vadd.f32 %v413, %v2340
        %v2345 = vlaneseq
        %v2346 = vshrl.u32 %v2345, 7
        %v2347 = vsub.s32 0, %v2346
        %v2348 = vrot.slane %v416, %v2347
        %v2349 = vadd.f32 %v2343, %v2348
        %v2350 = vadd.f32 %v2344, %v2348
        %2351 = vadd.xlane.f32.xlu0 %v2349
        %v2352 = vpop.xlane.xlu0 %2351
        %2353 = vadd.xlane.f32.xlu0 %v2350
        %v2354 = vpop.xlane.xlu0 %2353
        %v2355 = vmul.f32 %v2352, %v424
        %v2356 = vmul.f32 %v2354, %v424
        %v2357 = vsub.f32 %v2349, %v2355
        %v2358 = vsub.f32 %v2350, %v2356
        %v2359 = vmul.f32 %v2357, %v2357
        %v2360 = vmul.f32 %v2358, %v2358
        %2361 = vadd.xlane.f32.xlu0 %v2359
        %v2362 = vpop.xlane.xlu0 %2361
        %2363 = vadd.xlane.f32.xlu0 %v2360
        %v2364 = vpop.xlane.xlu0 %2363
        %v2365 = vmul.f32 %v2362, %v424
        %v2366 = vmul.f32 %v2364, %v424
        %v2367 = vadd.f32 %v2365, 1e-05
        %v2368 = vadd.f32 %v2366, 1e-05
        %v2369 = vrsqrt.pop %v2367
        %v2370 = vrsqrt.pop %v2368
        %v2371 = vmul.f32 %v2357, %v2369
        %v2372 = vmul.f32 %v2358, %v2370
        %v2373 = vlaneseq
        %v2374 = vshrl.u32 %v2373, 7
        %v2375 = vsub.s32 0, %v2374
        %v2376 = vrot.slane %v417, %v2375
        %v2377 = vmul.f32 %v2371, %v2376
        %v2378 = vmul.f32 %v2372, %v2376
        %v2379 = vlaneseq
        %v2380 = vshrl.u32 %v2379, 7
        %v2381 = vsub.s32 0, %v2380
        %v2382 = vrot.slane %v418, %v2381
        %v2383 = vadd.f32 %v2377, %v2382
        %v2384 = vadd.f32 %v2378, %v2382
        %v2385 = vpack.c.bf16 %v2384, %v2383
        %v2386 = vld [vmem:[%s351] sm:$0xff]
        %v2387 = vld [vmem:[%s351 + $0x8] sm:$0xff]
        %v2388 = vld [vmem:[%s351 + $0x10] sm:$0xff]
        %v2389 = vld [vmem:[%s351 + $0x18] sm:$0xff]
        %v2390 = vld [vmem:[%s351 + $0x20] sm:$0xff]
        %v2391 = vld [vmem:[%s351 + $0x28] sm:$0xff]
        %v2392 = vld [vmem:[%s351 + $0x30] sm:$0xff]
        %v2393 = vld [vmem:[%s351 + $0x38] sm:$0xff]
        %v2394 = vld [vmem:[%s351 + $0x40] sm:$0xff]
        %v2395 = vld [vmem:[%s351 + $0x48] sm:$0xff]
        %v2396 = vld [vmem:[%s351 + $0x50] sm:$0xff]
        %v2397 = vld [vmem:[%s351 + $0x58] sm:$0xff]
        %v2398 = vld [vmem:[%s351 + $0x60] sm:$0xff]
        %v2399 = vld [vmem:[%s351 + $0x68] sm:$0xff]
        %v2400 = vld [vmem:[%s351 + $0x70] sm:$0xff]
        %v2401 = vld [vmem:[%s351 + $0x78] sm:$0xff]
        %v2402 = vld [vmem:[%s336] sm:$0x3]
        %v2404 = vlaneseq
        %v2405 = vshrl.u32 %v2404, 7
        %v2406 = vsub.s32 0, %v2405
        %v2407 = vrot.slane %v2402, %v2406
        %v2408 = vlaneseq
        %v2409 = vshrl.u32 %v2408, 7
        %v2410 = vsub.s32 1, %v2409
        %v2411 = vrot.slane %v2402, %v2410
        %v2430 = vunpack.c.l.b16 %v2386
        %v2431 = vunpack.c.h.b16 %v2386
        %v2432 = vunpack.c.l.b16 %v2387
        %v2433 = vunpack.c.h.b16 %v2387
        %v2434 = vunpack.c.l.b16 %v2388
        %v2435 = vunpack.c.h.b16 %v2388
        %v2436 = vunpack.c.l.b16 %v2389
        %v2437 = vunpack.c.h.b16 %v2389
        %v2438 = vunpack.c.l.b16 %v2390
        %v2439 = vunpack.c.h.b16 %v2390
        %v2440 = vunpack.c.l.b16 %v2391
        %v2441 = vunpack.c.h.b16 %v2391
        %v2442 = vunpack.c.l.b16 %v2392
        %v2443 = vunpack.c.h.b16 %v2392
        %v2444 = vunpack.c.l.b16 %v2393
        %v2445 = vunpack.c.h.b16 %v2393
        %v2446 = vunpack.c.l.b16 %v2394
        %v2447 = vunpack.c.h.b16 %v2394
        %v2448 = vunpack.c.l.b16 %v2395
        %v2449 = vunpack.c.h.b16 %v2395
        %v2450 = vunpack.c.l.b16 %v2396
        %v2451 = vunpack.c.h.b16 %v2396
        %v2452 = vunpack.c.l.b16 %v2397
        %v2453 = vunpack.c.h.b16 %v2397
        %v2454 = vunpack.c.l.b16 %v2398
        %v2455 = vunpack.c.h.b16 %v2398
        %v2456 = vunpack.c.l.b16 %v2399
        %v2457 = vunpack.c.h.b16 %v2399
        %v2458 = vunpack.c.l.b16 %v2400
        %v2459 = vunpack.c.h.b16 %v2400
        %v2460 = vunpack.c.l.b16 %v2401
        %v2461 = vunpack.c.h.b16 %v2401
        %v2462 = vpack.c.b16 %v2432, %v2430
        %v2463 = vpack.c.b16 %v2433, %v2431
        %v2464 = vpack.c.b16 %v2436, %v2434
        %v2465 = vpack.c.b16 %v2437, %v2435
        %v2466 = vpack.c.b16 %v2440, %v2438
        %v2467 = vpack.c.b16 %v2441, %v2439
        %v2468 = vpack.c.b16 %v2444, %v2442
        %v2469 = vpack.c.b16 %v2445, %v2443
        %v2470 = vpack.c.b16 %v2448, %v2446
        %v2471 = vpack.c.b16 %v2449, %v2447
        %v2472 = vpack.c.b16 %v2452, %v2450
        %v2473 = vpack.c.b16 %v2453, %v2451
        %v2474 = vpack.c.b16 %v2456, %v2454
        %v2475 = vpack.c.b16 %v2457, %v2455
        %v2476 = vpack.c.b16 %v2460, %v2458
        %v2477 = vpack.c.b16 %v2461, %v2459
        %2494 = vmatprep.subr.bf16.mxu0 %v2463
        %2495 = vmatpush1.bf16.msra.mxu0 %v2462
        %2496 = vmatprep.subr.bf16.mxu0 %v2465
        %2497 = vmatpush1.bf16.msra.mxu0 %v2464
        %2498 = vmatprep.subr.bf16.mxu0 %v2467
        %2499 = vmatpush1.bf16.msra.mxu0 %v2466
        %2500 = vmatprep.subr.bf16.mxu0 %v2469
        %2501 = vmatpush1.bf16.msra.mxu0 %v2468
        %2502 = vmatprep.subr.bf16.mxu0 %v2471
        %2503 = vmatpush1.bf16.msra.mxu0 %v2470
        %2504 = vmatprep.subr.bf16.mxu0 %v2473
        %2505 = vmatpush1.bf16.msra.mxu0 %v2472
        %2506 = vmatprep.subr.bf16.mxu0 %v2475
        %2507 = vmatpush1.bf16.msra.mxu0 %v2474
        %2508 = vmatprep.subr.bf16.mxu0 %v2477
        %2509 = vmatpush1.bf16.msra.mxu0 %v2476
        %2510 = vmatprep.subr.bf16.mxu0 0
        %2511 = vmatpush1.bf16.msra.mxu0 0
        %2512 = vmatprep.subr.bf16.mxu0 0
        %2513 = vmatpush1.bf16.msra.mxu0 0
        %2514 = vmatprep.subr.bf16.mxu0 0
        %2515 = vmatpush1.bf16.msra.mxu0 0
        %2516 = vmatprep.subr.bf16.mxu0 0
        %2517 = vmatpush1.bf16.msra.mxu0 0
        %2518 = vmatprep.subr.bf16.mxu0 0
        %2519 = vmatpush1.bf16.msra.mxu0 0
        %2520 = vmatprep.subr.bf16.mxu0 0
        %2521 = vmatpush1.bf16.msra.mxu0 0
        %2522 = vmatprep.subr.bf16.mxu0 0
        %2523 = vmatpush1.bf16.msra.mxu0 0
        %2524 = vmatprep.subr.bf16.mxu0 0
        %2525 = vmatpush1.bf16.msra.mxu0 0
        %2526 = vmatprep.mubr.bf16.mxu0 0
        %2527 = vmatmul.mubr.bf16.gmra.mrb[0].mxu0 %v2385
        %v2528 = vpop.f32.mrb[0].mxu0
        %v2529 = vadd.f32 %v2407, %v2528
        %v2530 = vpop.f32.mrb[0].mxu0
        %v2531 = vadd.f32 %v2411, %v2530
        %v2532 = vpop.f32.mrb[0].mxu0
        %v2533 = vadd.f32 %v2407, %v2532
        %v2534 = vpop.f32.mrb[0].mxu0
        %v2535 = vadd.f32 %v2411, %v2534
        %2536 = vdwg.mxu0
        %v2537 = vmul.f32 %v2529, 0.5
        %v2538 = vmul.f32 %v2531, 0.5
        %v2539 = vmul.f32 %v2533, 0.5
        %v2540 = vmul.f32 %v2535, 0.5
        %v2541 = vmul.f32 %v2529, 0.70710677
        %v2542 = vmul.f32 %v2531, 0.70710677
        %v2543 = vmul.f32 %v2533, 0.70710677
        %v2544 = vmul.f32 %v2535, 0.70710677
        %v2545 = verf.f32.pop %v2541
        %v2546 = verf.f32.pop %v2542
        %v2547 = verf.f32.pop %v2543
        %v2548 = verf.f32.pop %v2544
        %v2549 = vadd.f32 %v2545, 1.0
        %v2550 = vadd.f32 %v2546, 1.0
        %v2551 = vadd.f32 %v2547, 1.0
        %v2552 = vadd.f32 %v2548, 1.0
        %v2553 = vmul.f32 %v2537, %v2549
        %v2554 = vmul.f32 %v2538, %v2550
        %v2555 = vmul.f32 %v2539, %v2551
        %v2556 = vmul.f32 %v2540, %v2552
        %v2557 = vpack.c.bf16 %v2555, %v2553
        %v2558 = vpack.c.bf16 %v2556, %v2554
        %v2559 = vld [vmem:[%s356] sm:$0xf]
        %v2560 = vld [vmem:[%s356 + $0x4] sm:$0xf]
        %v2561 = vld [vmem:[%s356 + $0x8] sm:$0xf]
        %v2562 = vld [vmem:[%s356 + $0xc] sm:$0xf]
        %v2563 = vld [vmem:[%s356 + $0x10] sm:$0xf]
        %v2564 = vld [vmem:[%s356 + $0x14] sm:$0xf]
        %v2565 = vld [vmem:[%s356 + $0x18] sm:$0xf]
        %v2566 = vld [vmem:[%s356 + $0x1c] sm:$0xf]
        %v2567 = vld [vmem:[%s356 + $0x20] sm:$0xf]
        %v2568 = vld [vmem:[%s356 + $0x24] sm:$0xf]
        %v2569 = vld [vmem:[%s356 + $0x28] sm:$0xf]
        %v2570 = vld [vmem:[%s356 + $0x2c] sm:$0xf]
        %v2571 = vld [vmem:[%s356 + $0x30] sm:$0xf]
        %v2572 = vld [vmem:[%s356 + $0x34] sm:$0xf]
        %v2573 = vld [vmem:[%s356 + $0x38] sm:$0xf]
        %v2574 = vld [vmem:[%s356 + $0x3c] sm:$0xf]
        %v2575 = vld [vmem:[%s356 + $0x40] sm:$0xf]
        %v2576 = vld [vmem:[%s356 + $0x44] sm:$0xf]
        %v2577 = vld [vmem:[%s356 + $0x48] sm:$0xf]
        %v2578 = vld [vmem:[%s356 + $0x4c] sm:$0xf]
        %v2579 = vld [vmem:[%s356 + $0x50] sm:$0xf]
        %v2580 = vld [vmem:[%s356 + $0x54] sm:$0xf]
        %v2581 = vld [vmem:[%s356 + $0x58] sm:$0xf]
        %v2582 = vld [vmem:[%s356 + $0x5c] sm:$0xf]
        %v2583 = vld [vmem:[%s356 + $0x60] sm:$0xf]
        %v2584 = vld [vmem:[%s356 + $0x64] sm:$0xf]
        %v2585 = vld [vmem:[%s356 + $0x68] sm:$0xf]
        %v2586 = vld [vmem:[%s356 + $0x6c] sm:$0xf]
        %v2587 = vld [vmem:[%s356 + $0x70] sm:$0xf]
        %v2588 = vld [vmem:[%s356 + $0x74] sm:$0xf]
        %v2589 = vld [vmem:[%s356 + $0x78] sm:$0xf]
        %v2590 = vld [vmem:[%s356 + $0x7c] sm:$0xf]
        %v2591 = vlaneseq
        %v2592 = vshrl.u32 %v2591, 7
        %v2593 = vsub.s32 0, %v2592
        %v2594 = vrot.slane %v419, %v2593
        %v2627 = vunpack.c.l.b16 %v2559
        %v2628 = vunpack.c.l.b16 %v2560
        %v2629 = vunpack.c.l.b16 %v2561
        %v2630 = vunpack.c.l.b16 %v2562
        %v2631 = vunpack.c.l.b16 %v2563
        %v2632 = vunpack.c.l.b16 %v2564
        %v2633 = vunpack.c.l.b16 %v2565
        %v2634 = vunpack.c.l.b16 %v2566
        %v2635 = vunpack.c.l.b16 %v2567
        %v2636 = vunpack.c.l.b16 %v2568
        %v2637 = vunpack.c.l.b16 %v2569
        %v2638 = vunpack.c.l.b16 %v2570
        %v2639 = vunpack.c.l.b16 %v2571
        %v2640 = vunpack.c.l.b16 %v2572
        %v2641 = vunpack.c.l.b16 %v2573
        %v2642 = vunpack.c.l.b16 %v2574
        %v2643 = vunpack.c.l.b16 %v2575
        %v2644 = vunpack.c.l.b16 %v2576
        %v2645 = vunpack.c.l.b16 %v2577
        %v2646 = vunpack.c.l.b16 %v2578
        %v2647 = vunpack.c.l.b16 %v2579
        %v2648 = vunpack.c.l.b16 %v2580
        %v2649 = vunpack.c.l.b16 %v2581
        %v2650 = vunpack.c.l.b16 %v2582
        %v2651 = vunpack.c.l.b16 %v2583
        %v2652 = vunpack.c.l.b16 %v2584
        %v2653 = vunpack.c.l.b16 %v2585
        %v2654 = vunpack.c.l.b16 %v2586
        %v2655 = vunpack.c.l.b16 %v2587
        %v2656 = vunpack.c.l.b16 %v2588
        %v2657 = vunpack.c.l.b16 %v2589
        %v2658 = vunpack.c.l.b16 %v2590
        %v2659 = vpack.c.b16 %v2628, %v2627
        %v2660 = vpack.c.b16 %v2630, %v2629
        %v2661 = vpack.c.b16 %v2632, %v2631
        %v2662 = vpack.c.b16 %v2634, %v2633
        %v2663 = vpack.c.b16 %v2636, %v2635
        %v2664 = vpack.c.b16 %v2638, %v2637
        %v2665 = vpack.c.b16 %v2640, %v2639
        %v2666 = vpack.c.b16 %v2642, %v2641
        %v2667 = vpack.c.b16 %v2644, %v2643
        %v2668 = vpack.c.b16 %v2646, %v2645
        %v2669 = vpack.c.b16 %v2648, %v2647
        %v2670 = vpack.c.b16 %v2650, %v2649
        %v2671 = vpack.c.b16 %v2652, %v2651
        %v2672 = vpack.c.b16 %v2654, %v2653
        %v2673 = vpack.c.b16 %v2656, %v2655
        %v2674 = vpack.c.b16 %v2658, %v2657
        %2691 = vmatprep.subr.bf16.mxu0 0
        %2692 = vmatpush1.bf16.msra.mxu0 %v2659
        %2693 = vmatprep.subr.bf16.mxu0 0
        %2694 = vmatpush1.bf16.msra.mxu0 %v2660
        %2695 = vmatprep.subr.bf16.mxu0 0
        %2696 = vmatpush1.bf16.msra.mxu0 %v2661
        %2697 = vmatprep.subr.bf16.mxu0 0
        %2698 = vmatpush1.bf16.msra.mxu0 %v2662
        %2699 = vmatprep.subr.bf16.mxu0 0
        %2700 = vmatpush1.bf16.msra.mxu0 %v2663
        %2701 = vmatprep.subr.bf16.mxu0 0
        %2702 = vmatpush1.bf16.msra.mxu0 %v2664
        %2703 = vmatprep.subr.bf16.mxu0 0
        %2704 = vmatpush1.bf16.msra.mxu0 %v2665
        %2705 = vmatprep.subr.bf16.mxu0 0
        %2706 = vmatpush1.bf16.msra.mxu0 %v2666
        %2707 = vmatprep.subr.bf16.mxu0 0
        %2708 = vmatpush1.bf16.msra.mxu0 %v2667
        %2709 = vmatprep.subr.bf16.mxu0 0
        %2710 = vmatpush1.bf16.msra.mxu0 %v2668
        %2711 = vmatprep.subr.bf16.mxu0 0
        %2712 = vmatpush1.bf16.msra.mxu0 %v2669
        %2713 = vmatprep.subr.bf16.mxu0 0
        %2714 = vmatpush1.bf16.msra.mxu0 %v2670
        %2715 = vmatprep.subr.bf16.mxu0 0
        %2716 = vmatpush1.bf16.msra.mxu0 %v2671
        %2717 = vmatprep.subr.bf16.mxu0 0
        %2718 = vmatpush1.bf16.msra.mxu0 %v2672
        %2719 = vmatprep.subr.bf16.mxu0 0
        %2720 = vmatpush1.bf16.msra.mxu0 %v2673
        %2721 = vmatprep.subr.bf16.mxu0 0
        %2722 = vmatpush1.bf16.msra.mxu0 %v2674
        %2723 = vmatprep.mubr.bf16.mxu0 %v2558
        %2724 = vmatmul.mubr.bf16.gmra.mrb[0].mxu0 %v2557
        %v2725 = vpop.f32.mrb[0].mxu0
        %v2726 = vadd.f32 %v2594, %v2725
        %v2727 = vpop.f32.mrb[0].mxu0
        %v2728 = vpop.f32.mrb[0].mxu0
        %v2729 = vadd.f32 %v2594, %v2728
        %v2730 = vpop.f32.mrb[0].mxu0
        %2731 = vdwg.mxu0
        %v2732 = vadd.f32 %v2349, %v2726
        %v2733 = vadd.f32 %v2350, %v2729
        %2734 = vst [vmem:[%s328] sm:$0xff] %v2732
        %2735 = vst [vmem:[%s328 + $0x8] sm:$0xff] %v2733
        %s2736 = sand.u32 %s197, 1
        %s2737 = scalar_lea.sflag [#allocation4], %s2736
        %s2738 = sand.u32 %s197, 1
        %s2739 = smul.addr %s2738, 16
        %s2740 = scalar_lea.vmem [#allocation3], %s2739
        // Predicated region
        $region83: #{simple_vit_forward.3} parent=43 // pred_check
          %p2741 = pneg %p207
        $region84: #{simple_vit_forward.3} parent=43 // pred_check_branch
          %2743 = sbr.rel (%p2741) target = $region86
        $region85: #{simple_vit_forward.3} parent=43 // pred_region
          %s2744 = smul.u32 2, %s25
          %s2746 = ssub.s32 256, 256
          %2747 = vsyncadd %s2737, %s2746
          %s2748 = smul.addr %s2744, 128
          %s2749 = scalar_lea.hbm %s7, %s2748
          %s2750 = sshll.u32 %s2740, 4
          %s2751 = int_to_ptr.vmem [resolvable:$true] %s2750
          %2756 = dma.vmem_to_hbm [thread:$0]  %s2751, 256, %s2749, %s2737, 128, 128, 8
        $region86: #{simple_vit_forward.3} parent=43 // pred_fallthru
          _
      $region44: #{simple_vit_forward.3} parent=5 // pred_fallthru
        _
      %p2757 = scmp.le.s32.totalorder 2, %s16
      // Predicated region
      $region87: #{simple_vit_forward.3} parent=5 // pred_check
        %p2758 = pneg %p2757
      $region88: #{simple_vit_forward.3} parent=5 // pred_check_branch
        %2760 = sbr.rel (%p2758) target = $region90
      $region89: #{simple_vit_forward.3} parent=5 // pred_region
        %s2761 = ssub.s32 %s16, 2
        // Predicated region
        $region91: #{simple_vit_forward.3} parent=89 // pred_check
          %p2762 = pneg %p213
        $region92: #{simple_vit_forward.3} parent=89 // pred_check_branch
          %2764 = sbr.rel (%p2762) target = $region94
        $region93: #{simple_vit_forward.3} parent=89 // pred_region
          %s2765 = sand.u32 %s198, 1
          %s2766 = scalar_lea.sflag [#allocation4], %s2765
          %s2767 = sand.u32 %s198, 1
          %s2768 = smul.addr %s2767, 16
          %s2769 = scalar_lea.vmem [#allocation3], %s2768
          %2770 = dma.done %s2766, 256
        $region94: #{simple_vit_forward.3} parent=89 // pred_fallthru
          _
      $region90: #{simple_vit_forward.3} parent=5 // pred_fallthru
        _
    $region6: #{simple_vit_forward.3} parent=1 // loop_footer
      %s20 = sadd.s32 1, %s16
    $region7: #{simple_vit_forward.3} parent=1 // loop_footer_branch
      %15 = sbr.rel target = $region3
    $region8: #{simple_vit_forward.3} parent=1 // loop_exit
      _
    %2771 = vsyncpa [#allocation4], 1
    %s2772 = scalar_lea.sflag [#allocation4], 1
    %2773 = vsyncpa %s2772, 1
  %2774 = vsyncmov [#allocation2]
  %s2775 = vpop.sfrf %2774
  %p2776 = scmp.eq.s32.totalorder %s2775, 0
  %p2777 = pneg %p2776
  %2779 = shalt.err (%p2777)

</llo_original>
